<compile_context>
chip_gen: v7x
topology: tpu7x:2x2x1
jax: 0.10.0
libtpu: 0.0.40
codegen_flags: <defaults>
</compile_context>

<pallas_src>
import functools
import itertools

import jax
import jax.numpy as jnp
from jax.experimental import pallas as pl
from jax.experimental.pallas import tpu as pltpu

EPS = 1e-5    # BatchNorm eps (PyTorch default)
LANE = 128    # TPU lane width


def _round_up(v, m):
    return (v + m - 1) // m * m


def _pad2(a, rows, cols):
    return jnp.pad(a, ((0, rows - a.shape[0]), (0, cols - a.shape[1])))


def _vmem_limit_bytes():
    """Generation-aware VMEM cap: ~100 MiB on v5e/v6e (128 MiB physical VMEM),
    ~48 MiB on v7x / unknown chips (64 MiB physical per TensorCore)."""
    try:
        kind = jax.devices()[0].device_kind.lower()
    except Exception:
        kind = ""
    if "v5" in kind or "v6" in kind:
        return 100 * 1024 * 1024
    return 48 * 1024 * 1024


def _compiler_params():
    return pltpu.CompilerParams(
        dimension_semantics=("arbitrary",),          # edge axis is a reduction
        vmem_limit_bytes=_vmem_limit_bytes(),
    )


# ----------------------------------------------------------------------------
# In-kernel math helpers (f32)
# ----------------------------------------------------------------------------
def _bn(y, g, b):
    mean = jnp.mean(y, axis=0, keepdims=True)
    var = jnp.mean((y - mean) ** 2, axis=0, keepdims=True)   # biased var (training-mode BN)
    return (y - mean) * jax.lax.rsqrt(var + EPS) * g + b


def _elu(z):
    return jnp.where(z > 0, z, jnp.exp(jnp.minimum(z, 0.0)) - 1.0)


def _accumulate_messages(xsrc_ref, coeff_ref, dst_ref, wmf_ref, o_ref, *, kt, coutp):
    """One edge-tile reduction step (matmul-first formulation):
         P    = x_src @ W_mf                        (single MXU matmul, width kt*coutp)
         msgs = sum_k coeff[:, k] * P[:, k-th coutp slab]
         o   += onehot(dst) @ msgs                  (bf16 scatter matmul, f32 accumulation)
    """
    te = xsrc_ref.shape[0]
    n = o_ref.shape[0]

    p = jnp.dot(xsrc_ref[...], wmf_ref[...],
                preferred_element_type=jnp.float32)            # (te, kt*coutp) f32
    coeff = coeff_ref[...]                                     # (te, kt) f32
    msgs = coeff[:, 0:1] * p[:, 0:coutp]
    for k in range(1, kt):                                     # small static unroll
        msgs += coeff[:, k:k + 1] * p[:, k * coutp:(k + 1) * coutp]

    # Scatter-sum into the resident output block; incidence built on the fly (never in HBM).
    # onehot is exact in bf16 (0/1); msgs sees one bf16 rounding before f32 MXU accumulation.
    node_ids = jax.lax.broadcasted_iota(jnp.int32, (n, te), 0)
    onehot = (dst_ref[...] == node_ids).astype(jnp.bfloat16)   # (n, te)
    o_ref[...] += jnp.dot(onehot, msgs.astype(jnp.bfloat16),
                          preferred_element_type=jnp.float32)


# ----------------------------------------------------------------------------
# Fused kernels (one per ConvBlock); o_ref doubles as the resident accumulator
# ----------------------------------------------------------------------------
def _conv_bn_elu_kernel(xsrc_ref, coeff_ref, dst_ref, x_ref, wmf_ref, wroot_ref,
                        deginv_ref, g_ref, b_ref, o_ref, *, kt, coutp):
    """ConvBlock: ELU(BN(mean_aggr(spline messages) + x @ W_root))."""
    et = pl.program_id(0)

    @pl.when(et == 0)
    def _init():
        o_ref[...] = jnp.zeros_like(o_ref)

    _accumulate_messages(xsrc_ref, coeff_ref, dst_ref, wmf_ref, o_ref, kt=kt, coutp=coutp)

    @pl.when(et == pl.num_programs(0) - 1)
    def _finalize():
        y = o_ref[...] * deginv_ref[...] + jnp.dot(               # mean aggregation + root
            x_ref[...], wroot_ref[...], preferred_element_type=jnp.float32)
        o_ref[...] = _elu(_bn(y, g_ref[...], b_ref[...]))


def _conv_skip_bn_elu_kernel(xsrc_ref, coeff_ref, dst_ref, h_ref, xskip_ref,
                             wmf_ref, wroot_ref, wlin_ref, deginv_ref,
                             gc_ref, bc_ref, gs_ref, bs_ref, o_ref, *, kt, coutp):
    """ConvBlockWithSkip: ELU(BN(conv) + BN(x_skip @ W_lin))."""
    et = pl.program_id(0)

    @pl.when(et == 0)
    def _init():
        o_ref[...] = jnp.zeros_like(o_ref)

    _accumulate_messages(xsrc_ref, coeff_ref, dst_ref, wmf_ref, o_ref, kt=kt, coutp=coutp)

    @pl.when(et == pl.num_programs(0) - 1)
    def _finalize():
        y_conv = o_ref[...] * deginv_ref[...] + jnp.dot(
            h_ref[...], wroot_ref[...], preferred_element_type=jnp.float32)
        y_skip = jnp.dot(xskip_ref[...], wlin_ref[...], preferred_element_type=jnp.float32)
        z = _bn(y_conv, gc_ref[...], bc_ref[...]) + _bn(y_skip, gs_ref[...], bs_ref[...])
        o_ref[...] = _elu(z)


# ----------------------------------------------------------------------------
# pallas_call wrappers (edge-tile reduction grid; node dim resident for global BN)
# ----------------------------------------------------------------------------
def conv_block1(x, x_src, coeff, dst, deg_inv, W, W_root, gamma, beta, *, edge_tile=512):
    n = x.shape[0]
    e = x_src.shape[0]
    kt, cin, cout = W.shape
    cinp = _round_up(cin, LANE)
    coutp = _round_up(cout, LANE)
    te = edge_tile                     # sweep 512-1024 per generation
    assert te % LANE == 0
    ep = _round_up(e, te)

    x_p = _pad2(x, n, cinp).astype(jnp.bfloat16)
    xsrc_p = _pad2(x_src, ep, cinp).astype(jnp.bfloat16)
    coeff_p = jnp.pad(coeff, ((0, ep - e), (0, 0))).astype(jnp.float32)
    dst_p = jnp.pad(dst, (0, ep - e)).astype(jnp.int32).reshape(1, ep)
    w_pad = jnp.pad(W, ((0, 0), (0, cinp - cin), (0, coutp - cout)))          # (kt,cinp,coutp)
    wmf = jnp.transpose(w_pad, (1, 0, 2)).reshape(cinp, kt * coutp).astype(jnp.bfloat16)
    wroot_p = _pad2(W_root, cinp, coutp).astype(jnp.bfloat16)
    g_p = _pad2(gamma, 1, coutp).astype(jnp.float32)
    b_p = _pad2(beta, 1, coutp).astype(jnp.float32)

    kern = functools.partial(_conv_bn_elu_kernel, kt=kt, coutp=coutp)
    return pl.pallas_call(
        kern,
        out_shape=jax.ShapeDtypeStruct((n, coutp), jnp.float32),
        grid_spec=pltpu.PrefetchScalarGridSpec(
            num_scalar_prefetch=0,
            grid=(ep // te,),
            in_specs=[
                pl.BlockSpec((te, cinp), lambda i: (i, 0)),          # x_src  (streamed)
                pl.BlockSpec((te, kt), lambda i: (i, 0)),            # coeff  (streamed)
                pl.BlockSpec((1, te), lambda i: (0, i)),             # dst    (streamed)
                pl.BlockSpec((n, cinp), lambda i: (0, 0)),           # x      (resident)
                pl.BlockSpec((cinp, kt * coutp), lambda i: (0, 0)),  # W (matmul-first layout)
                pl.BlockSpec((cinp, coutp), lambda i: (0, 0)),       # W_root
                pl.BlockSpec((n, 1), lambda i: (0, 0)),              # 1/deg
                pl.BlockSpec((1, coutp), lambda i: (0, 0)),          # gamma
                pl.BlockSpec((1, coutp), lambda i: (0, 0)),          # beta
            ],
            out_specs=pl.BlockSpec((n, coutp), lambda i: (0, 0)),    # resident accumulator
        ),
        compiler_params=_compiler_params(),
    )(xsrc_p, coeff_p, dst_p, x_p, wmf, wroot_p, deg_inv, g_p, b_p)


def conv_block2(h, h_src, x_skip, coeff, dst, deg_inv, W, W_root, W_lin,
                gamma, beta, gamma_s, beta_s, *, edge_tile=512):
    n = h.shape[0]
    e = h_src.shape[0]
    kt, cin, cout = W.shape
    cskip = W_lin.shape[0]
    cinp = _round_up(cin, LANE)
    coutp = _round_up(cout, LANE)
    cskipp = _round_up(cskip, LANE)
    te = edge_tile
    assert te % LANE == 0
    ep = _round_up(e, te)

    h_p = _pad2(h, n, cinp).astype(jnp.bfloat16)
    hsrc_p = _pad2(h_src, ep, cinp).astype(jnp.bfloat16)
    xskip_p = _pad2(x_skip, n, cskipp).astype(jnp.bfloat16)
    coeff_p = jnp.pad(coeff, ((0, ep - e), (0, 0))).astype(jnp.float32)
    dst_p = jnp.pad(dst, (0, ep - e)).astype(jnp.int32).reshape(1, ep)
    w_pad = jnp.pad(W, ((0, 0), (0, cinp - cin), (0, coutp - cout)))
    wmf = jnp.transpose(w_pad, (1, 0, 2)).reshape(cinp, kt * coutp).astype(jnp.bfloat16)
    wroot_p = _pad2(W_root, cinp, coutp).astype(jnp.bfloat16)
    wlin_p = _pad2(W_lin, cskipp, coutp).astype(jnp.bfloat16)
    gc_p = _pad2(gamma, 1, coutp).astype(jnp.float32)
    bc_p = _pad2(beta, 1, coutp).astype(jnp.float32)
    gs_p = _pad2(gamma_s, 1, coutp).astype(jnp.float32)
    bs_p = _pad2(beta_s, 1, coutp).astype(jnp.float32)

    kern = functools.partial(_conv_skip_bn_elu_kernel, kt=kt, coutp=coutp)
    return pl.pallas_call(
        kern,
        out_shape=jax.ShapeDtypeStruct((n, coutp), jnp.float32),
        grid_spec=pltpu.PrefetchScalarGridSpec(
            num_scalar_prefetch=0,
            grid=(ep // te,),
            in_specs=[
                pl.BlockSpec((te, cinp), lambda i: (i, 0)),          # h_src  (streamed)
                pl.BlockSpec((te, kt), lambda i: (i, 0)),            # coeff  (streamed)
                pl.BlockSpec((1, te), lambda i: (0, i)),             # dst    (streamed)
                pl.BlockSpec((n, cinp), lambda i: (0, 0)),           # h      (resident)
                pl.BlockSpec((n, cskipp), lambda i: (0, 0)),         # x_skip (resident)
                pl.BlockSpec((cinp, kt * coutp), lambda i: (0, 0)),  # W (matmul-first layout)
                pl.BlockSpec((cinp, coutp), lambda i: (0, 0)),       # W_root
                pl.BlockSpec((cskipp, coutp), lambda i: (0, 0)),     # W_lin
                pl.BlockSpec((n, 1), lambda i: (0, 0)),              # 1/deg
                pl.BlockSpec((1, coutp), lambda i: (0, 0)),          # gamma (conv)
                pl.BlockSpec((1, coutp), lambda i: (0, 0)),          # beta  (conv)
                pl.BlockSpec((1, coutp), lambda i: (0, 0)),          # gamma (skip)
                pl.BlockSpec((1, coutp), lambda i: (0, 0)),          # beta  (skip)
            ],
            out_specs=pl.BlockSpec((n, coutp), lambda i: (0, 0)),    # resident accumulator
        ),
        compiler_params=_compiler_params(),
    )(hsrc_p, coeff_p, dst_p, h_p, xskip_p, wmf, wroot_p, wlin_p, deg_inv,
      gc_p, bc_p, gs_p, bs_p)


# ----------------------------------------------------------------------------
# Plain-JAX glue: degree-1 open B-spline basis & scatter-mean degree
# ----------------------------------------------------------------------------
def spline_coeff(edge_attr, kernel_size):
    """Dense (E, K**D) coefficient matrix for a degree-1 open B-spline basis."""
    e, d = edge_attr.shape
    k = kernel_size
    kt = k ** d
    u = jnp.clip(edge_attr.astype(jnp.float32), 0.0, 1.0)
    pos = u * (k - 1)
    lo = jnp.clip(jnp.floor(pos), 0, k - 2)
    frac = pos - lo
    coeff = jnp.zeros((e, kt), jnp.float32)
    for bits in itertools.product((0, 1), repeat=d):
        idx = jnp.zeros((e,), jnp.int32)
        w = jnp.ones((e,), jnp.float32)
        stride = 1
        for dim in range(d):
            idx = idx + (lo[:, dim].astype(jnp.int32) + bits[dim]) * stride
            w = w * (frac[:, dim] if bits[dim] == 1 else (1.0 - frac[:, dim]))
            stride *= k
        coeff = coeff + jax.nn.one_hot(idx, kt, dtype=jnp.float32) * w[:, None]
    return coeff


def mean_degree_inv(dst, num_nodes):
    """1/deg(i) (isolated nodes get 1, their aggregated message is 0 anyway)."""
    deg = jnp.zeros((num_nodes,), jnp.float32).at[dst].add(1.0)
    return (1.0 / jnp.maximum(deg, 1.0)).reshape(num_nodes, 1)


# ----------------------------------------------------------------------------
# Layer forward
# ----------------------------------------------------------------------------
def layer_forward(x, edge_index, edge_attr, params, kernel_size, *, edge_tile=512):
    src, dst = edge_index[0], edge_index[1]
    n = x.shape[0]
    cout = params["W1"].shape[2]

    coeff = spline_coeff(edge_attr, kernel_size)
    deg_inv = mean_degree_inv(dst, n)

    h1_pad = conv_block1(x, x[src], coeff, dst, deg_inv,
                         params["W1"], params["Wroot1"], params["g1"], params["b1"],
                         edge_tile=edge_tile)                    # (N, C_out padded to 128)

    out_pad = conv_block2(h1_pad, h1_pad[src], x, coeff, dst, deg_inv,
                          params["W2"], params["Wroot2"], params["Wlin"],
                          params["g2"], params["b2"], params["gs"], params["bs"],
                          edge_tile=edge_tile)
    return out_pad[:, :cout]


def init_params(key, in_channels, out_channels, kernel_size, edge_attr_dim):
    kt = kernel_size ** edge_attr_dim
    ks = jax.random.split(key, 5)
    scale1 = 1.0 / jnp.sqrt(in_channels * kt)
    scale2 = 1.0 / jnp.sqrt(out_channels * kt)
    return {
        # conv_block1 spline conv (in -> out), bias=False, root_weight=True
        "W1": jax.random.uniform(ks[0], (kt, in_channels, out_channels), jnp.float32, -scale1, scale1),
        "Wroot1": jax.random.uniform(ks[1], (in_channels, out_channels), jnp.float32, -scale1, scale1),
        "g1": jnp.ones((1, out_channels), jnp.float32),
        "b1": jnp.zeros((1, out_channels), jnp.float32),
        # conv_block2 spline conv (out -> out)
        "W2": jax.random.uniform(ks[2], (kt, out_channels, out_channels), jnp.float32, -scale2, scale2),
        "Wroot2": jax.random.uniform(ks[3], (out_channels, out_channels), jnp.float32, -scale2, scale2),
        "g2": jnp.ones((1, out_channels), jnp.float32),
        "b2": jnp.zeros((1, out_channels), jnp.float32),
        # skip Linear(in -> out, bias=False) + its BN
        "Wlin": jax.random.uniform(ks[4], (in_channels, out_channels), jnp.float32,
                                   -1.0 / jnp.sqrt(in_channels), 1.0 / jnp.sqrt(in_channels)),
        "gs": jnp.ones((1, out_channels), jnp.float32),
        "bs": jnp.zeros((1, out_channels), jnp.float32),
    }


if __name__ == "__main__":
    # args: edge_attr_dim=2, kernel_size=3, degree=1, activation='elu'
    N, E = 64, 200
    IN_CH, OUT_CH = 4, 8
    EDGE_ATTR_DIM, KERNEL_SIZE = 2, 3

    key = jax.random.PRNGKey(0)
    k_x, k_src, k_dst, k_ea, k_p = jax.random.split(key, 5)

    x = jax.random.normal(k_x, (N, IN_CH), jnp.float32)
    src = jax.random.randint(k_src, (E,), 0, N, jnp.int32)
    dst = jax.random.randint(k_dst, (E,), 0, N, jnp.int32)
    edge_index = jnp.stack([src, dst], axis=0)
    edge_attr = jax.random.uniform(k_ea, (E, EDGE_ATTR_DIM), jnp.float32)

    params = init_params(k_p, IN_CH, OUT_CH, KERNEL_SIZE, EDGE_ATTR_DIM)

    out = layer_forward(x, edge_index, edge_attr, params, KERNEL_SIZE, edge_tile=512)
    out = jax.block_until_ready(out)
    assert out.shape == (N, OUT_CH) and out.dtype == jnp.float32
    assert bool(jnp.all(jnp.isfinite(out)))
    print("KERNEL_OK")
</pallas_src>

<mosaic_0001>
module attributes {stable_mosaic.version = 11 : i64} {
  func.func @_conv_bn_elu_kernel(%arg0: i32, %arg1: memref<512x128xbf16, #tpu.memory_space<vmem>>, %arg2: memref<512x9xf32, #tpu.memory_space<vmem>>, %arg3: memref<1x512xi32, #tpu.memory_space<vmem>>, %arg4: memref<64x128xbf16, #tpu.memory_space<vmem>>, %arg5: memref<128x1152xbf16, #tpu.memory_space<vmem>>, %arg6: memref<128x128xbf16, #tpu.memory_space<vmem>>, %arg7: memref<64x1xf32, #tpu.memory_space<vmem>>, %arg8: memref<1x128xf32, #tpu.memory_space<vmem>>, %arg9: memref<1x128xf32, #tpu.memory_space<vmem>>, %arg10: memref<64x128xf32, #tpu.memory_space<vmem>>) attributes {dimension_semantics = [#tpu.dimension_semantics<arbitrary>], iteration_bounds = array<i64: 1>, scalar_prefetch = 0 : i64, scratch_operands = 0 : i64, tpu.core_type = #tpu.core_type<tc>, window_params = [{transform_indices = @transform_0, window_bounds = array<i64: 512, 128>}, {transform_indices = @transform_1, window_bounds = array<i64: 512, 9>}, {transform_indices = @transform_2, window_bounds = array<i64: 1, 512>}, {pipeline_mode = #tpu.pipeline_mode<synchronous>, transform_indices = @transform_3, window_bounds = array<i64: 64, 128>}, {pipeline_mode = #tpu.pipeline_mode<synchronous>, transform_indices = @transform_4, window_bounds = array<i64: 128, 1152>}, {pipeline_mode = #tpu.pipeline_mode<synchronous>, transform_indices = @transform_5, window_bounds = array<i64: 128, 128>}, {pipeline_mode = #tpu.pipeline_mode<synchronous>, transform_indices = @transform_6, window_bounds = array<i64: 64, 1>}, {pipeline_mode = #tpu.pipeline_mode<synchronous>, transform_indices = @transform_7, window_bounds = array<i64: 1, 128>}, {pipeline_mode = #tpu.pipeline_mode<synchronous>, transform_indices = @transform_8, window_bounds = array<i64: 1, 128>}, {pipeline_mode = #tpu.pipeline_mode<synchronous>, transform_indices = @transform_9, window_bounds = array<i64: 64, 128>}]} {
    %c0_i32 = arith.constant 0 : i32
    %0 = arith.cmpi eq, %arg0, %c0_i32 : i32
    %1 = arith.extui %0 : i1 to i32
    %c0_i32_0 = arith.constant 0 : i32
    %2 = arith.cmpi ne, %1, %c0_i32_0 : i32
    scf.if %2 {
      %cst_15 = arith.constant 0.000000e+00 : f32
      %66 = vector.broadcast %cst_15 : f32 to vector<64x128xf32>
      %c0_16 = arith.constant 0 : index
      %c0_17 = arith.constant 0 : index
      %67 = vector.load %arg10[%c0_16, %c0_17] : memref<64x128xf32, #tpu.memory_space<vmem>>, vector<64x128xf32>
      tpu.vector_store %arg10[%c0_16, %c0_17], %66 {strides = array<i32>} : memref<64x128xf32, #tpu.memory_space<vmem>>, vector<64x128xf32>,
    } else {
    }
    %c0 = arith.constant 0 : index
    %c0_1 = arith.constant 0 : index
    %3 = vector.load %arg1[%c0, %c0_1] : memref<512x128xbf16, #tpu.memory_space<vmem>>, vector<512x128xbf16>
    %c0_2 = arith.constant 0 : index
    %c0_3 = arith.constant 0 : index
    %4 = vector.load %arg5[%c0_2, %c0_3] : memref<128x1152xbf16, #tpu.memory_space<vmem>>, vector<128x1152xbf16>
    %cst = arith.constant dense<0.000000e+00> : vector<512x1152xf32>
    %5 = tpu.matmul %3, %4, %cst {dimension_numbers = #tpu.dot_dimension_numbers<[1], [0], [0], [1], [0, 0, 1, 1], [], []>} : vector<512x128xbf16>, vector<128x1152xbf16>, vector<512x1152xf32> -> vector<512x1152xf32>
    %c0_4 = arith.constant 0 : index
    %c0_5 = arith.constant 0 : index
    %6 = vector.load %arg2[%c0_4, %c0_5] : memref<512x9xf32, #tpu.memory_space<vmem>>, vector<512x9xf32>
    %7 = vector.extract_strided_slice %6 {offsets = [0, 0], sizes = [512, 1], strides = [1, 1]} : vector<512x9xf32> to vector<512x1xf32>
    %8 = vector.extract_strided_slice %5 {offsets = [0, 0], sizes = [512, 128], strides = [1, 1]} : vector<512x1152xf32> to vector<512x128xf32>
    %9 = vector.broadcast %7 : vector<512x1xf32> to vector<512x128xf32>
    %10 = arith.mulf %9, %8 : vector<512x128xf32>
    %11 = vector.extract_strided_slice %6 {offsets = [0, 1], sizes = [512, 1], strides = [1, 1]} : vector<512x9xf32> to vector<512x1xf32>
    %12 = vector.extract_strided_slice %5 {offsets = [0, 128], sizes = [512, 128], strides = [1, 1]} : vector<512x1152xf32> to vector<512x128xf32>
    %13 = vector.broadcast %11 : vector<512x1xf32> to vector<512x128xf32>
    %14 = arith.mulf %13, %12 : vector<512x128xf32>
    %15 = arith.addf %10, %14 : vector<512x128xf32>
    %16 = vector.extract_strided_slice %6 {offsets = [0, 2], sizes = [512, 1], strides = [1, 1]} : vector<512x9xf32> to vector<512x1xf32>
    %17 = vector.extract_strided_slice %5 {offsets = [0, 256], sizes = [512, 128], strides = [1, 1]} : vector<512x1152xf32> to vector<512x128xf32>
    %18 = vector.broadcast %16 : vector<512x1xf32> to vector<512x128xf32>
    %19 = arith.mulf %18, %17 : vector<512x128xf32>
    %20 = arith.addf %15, %19 : vector<512x128xf32>
    %21 = vector.extract_strided_slice %6 {offsets = [0, 3], sizes = [512, 1], strides = [1, 1]} : vector<512x9xf32> to vector<512x1xf32>
    %22 = vector.extract_strided_slice %5 {offsets = [0, 384], sizes = [512, 128], strides = [1, 1]} : vector<512x1152xf32> to vector<512x128xf32>
    %23 = vector.broadcast %21 : vector<512x1xf32> to vector<512x128xf32>
    %24 = arith.mulf %23, %22 : vector<512x128xf32>
    %25 = arith.addf %20, %24 : vector<512x128xf32>
    %26 = vector.extract_strided_slice %6 {offsets = [0, 4], sizes = [512, 1], strides = [1, 1]} : vector<512x9xf32> to vector<512x1xf32>
    %27 = vector.extract_strided_slice %5 {offsets = [0, 512], sizes = [512, 128], strides = [1, 1]} : vector<512x1152xf32> to vector<512x128xf32>
    %28 = vector.broadcast %26 : vector<512x1xf32> to vector<512x128xf32>
    %29 = arith.mulf %28, %27 : vector<512x128xf32>
    %30 = arith.addf %25, %29 : vector<512x128xf32>
    %31 = vector.extract_strided_slice %6 {offsets = [0, 5], sizes = [512, 1], strides = [1, 1]} : vector<512x9xf32> to vector<512x1xf32>
    %32 = vector.extract_strided_slice %5 {offsets = [0, 640], sizes = [512, 128], strides = [1, 1]} : vector<512x1152xf32> to vector<512x128xf32>
    %33 = vector.broadcast %31 : vector<512x1xf32> to vector<512x128xf32>
    %34 = arith.mulf %33, %32 : vector<512x128xf32>
    %35 = arith.addf %30, %34 : vector<512x128xf32>
    %36 = vector.extract_strided_slice %6 {offsets = [0, 6], sizes = [512, 1], strides = [1, 1]} : vector<512x9xf32> to vector<512x1xf32>
    %37 = vector.extract_strided_slice %5 {offsets = [0, 768], sizes = [512, 128], strides = [1, 1]} : vector<512x1152xf32> to vector<512x128xf32>
    %38 = vector.broadcast %36 : vector<512x1xf32> to vector<512x128xf32>
    %39 = arith.mulf %38, %37 : vector<512x128xf32>
    %40 = arith.addf %35, %39 : vector<512x128xf32>
    %41 = vector.extract_strided_slice %6 {offsets = [0, 7], sizes = [512, 1], strides = [1, 1]} : vector<512x9xf32> to vector<512x1xf32>
    %42 = vector.extract_strided_slice %5 {offsets = [0, 896], sizes = [512, 128], strides = [1, 1]} : vector<512x1152xf32> to vector<512x128xf32>
    %43 = vector.broadcast %41 : vector<512x1xf32> to vector<512x128xf32>
    %44 = arith.mulf %43, %42 : vector<512x128xf32>
    %45 = arith.addf %40, %44 : vector<512x128xf32>
    %46 = vector.extract_strided_slice %6 {offsets = [0, 8], sizes = [512, 1], strides = [1, 1]} : vector<512x9xf32> to vector<512x1xf32>
    %47 = vector.extract_strided_slice %5 {offsets = [0, 1024], sizes = [512, 128], strides = [1, 1]} : vector<512x1152xf32> to vector<512x128xf32>
    %48 = vector.broadcast %46 : vector<512x1xf32> to vector<512x128xf32>
    %49 = arith.mulf %48, %47 : vector<512x128xf32>
    %50 = arith.addf %45, %49 : vector<512x128xf32>
    %51 = tpu.iota {dimensions = array<i32: 0>} : vector<64x512xi32>
    %c0_6 = arith.constant 0 : index
    %c0_7 = arith.constant 0 : index
    %52 = vector.load %arg3[%c0_6, %c0_7] : memref<1x512xi32, #tpu.memory_space<vmem>>, vector<1x512xi32>
    %53 = vector.broadcast %52 : vector<1x512xi32> to vector<64x512xi32>
    %54 = arith.cmpi eq, %53, %51 : vector<64x512xi32>
    %55 = arith.extui %54 : vector<64x512xi1> to vector<64x512xi32>
    %56 = arith.sitofp %55 : vector<64x512xi32> to vector<64x512xf32>
    %57 = arith.truncf %56 : vector<64x512xf32> to vector<64x512xbf16>
    %c0_8 = arith.constant 0 : index
    %c0_9 = arith.constant 0 : index
    %58 = vector.load %arg10[%c0_8, %c0_9] : memref<64x128xf32, #tpu.memory_space<vmem>>, vector<64x128xf32>
    %59 = arith.truncf %50 : vector<512x128xf32> to vector<512x128xbf16>
    %cst_10 = arith.constant dense<0.000000e+00> : vector<64x128xf32>
    %60 = tpu.matmul %57, %59, %cst_10 {dimension_numbers = #tpu.dot_dimension_numbers<[1], [0], [0], [1], [0, 0, 1, 1], [], []>} : vector<64x512xbf16>, vector<512x128xbf16>, vector<64x128xf32> -> vector<64x128xf32>
    %61 = arith.addf %58, %60 : vector<64x128xf32>
    %c0_11 = arith.constant 0 : index
    %c0_12 = arith.constant 0 : index
    %62 = vector.load %arg10[%c0_11, %c0_12] : memref<64x128xf32, #tpu.memory_space<vmem>>, vector<64x128xf32>
    tpu.vector_store %arg10[%c0_11, %c0_12], %61 {strides = array<i32>} : memref<64x128xf32, #tpu.memory_space<vmem>>, vector<64x128xf32>,
    %c0_i32_13 = arith.constant 0 : i32
    %63 = arith.cmpi eq, %arg0, %c0_i32_13 : i32
    %64 = arith.extui %63 : i1 to i32
    %c0_i32_14 = arith.constant 0 : i32
    %65 = arith.cmpi ne, %64, %c0_i32_14 : i32
    scf.if %65 {
      %c0_15 = arith.constant 0 : index
      %c0_16 = arith.constant 0 : index
      %66 = vector.load %arg10[%c0_15, %c0_16] : memref<64x128xf32, #tpu.memory_space<vmem>>, vector<64x128xf32>
      %c0_17 = arith.constant 0 : index
      %c0_18 = arith.constant 0 : index
      %67 = vector.load %arg7[%c0_17, %c0_18] : memref<64x1xf32, #tpu.memory_space<vmem>>, vector<64x1xf32>
      %68 = vector.broadcast %67 : vector<64x1xf32> to vector<64x128xf32>
      %69 = arith.mulf %66, %68 : vector<64x128xf32>
      %c0_19 = arith.constant 0 : index
      %c0_20 = arith.constant 0 : index
      %70 = vector.load %arg4[%c0_19, %c0_20] : memref<64x128xbf16, #tpu.memory_space<vmem>>, vector<64x128xbf16>
      %c0_21 = arith.constant 0 : index
      %c0_22 = arith.constant 0 : index
      %71 = vector.load %arg6[%c0_21, %c0_22] : memref<128x128xbf16, #tpu.memory_space<vmem>>, vector<128x128xbf16>
      %cst_23 = arith.constant dense<0.000000e+00> : vector<64x128xf32>
      %72 = tpu.matmul %70, %71, %cst_23 {dimension_numbers = #tpu.dot_dimension_numbers<[1], [0], [0], [1], [0, 0, 1, 1], [], []>} : vector<64x128xbf16>, vector<128x128xbf16>, vector<64x128xf32> -> vector<64x128xf32>
      %73 = arith.addf %69, %72 : vector<64x128xf32>
      %c0_24 = arith.constant 0 : index
      %c0_25 = arith.constant 0 : index
      %74 = vector.load %arg8[%c0_24, %c0_25] : memref<1x128xf32, #tpu.memory_space<vmem>>, vector<1x128xf32>
      %c0_26 = arith.constant 0 : index
      %c0_27 = arith.constant 0 : index
      %75 = vector.load %arg9[%c0_26, %c0_27] : memref<1x128xf32, #tpu.memory_space<vmem>>, vector<1x128xf32>
      %cst_28 = arith.constant dense<0.000000e+00> : vector<128xf32>
      %76 = vector.multi_reduction <add>, %73, %cst_28 [0] : vector<64x128xf32> to vector<128xf32>
      %77 = vector.shape_cast %76 : vector<128xf32> to vector<1x128xf32>
      %cst_29 = arith.constant 6.400000e+01 : f32
      %78 = vector.broadcast %cst_29 : f32 to vector<1x128xf32>
      %79 = arith.divf %77, %78 : vector<1x128xf32>
      %80 = vector.broadcast %79 : vector<1x128xf32> to vector<64x128xf32>
      %81 = arith.subf %73, %80 : vector<64x128xf32>
      %82 = arith.mulf %81, %81 : vector<64x128xf32>
      %cst_30 = arith.constant dense<0.000000e+00> : vector<128xf32>
      %83 = vector.multi_reduction <add>, %82, %cst_30 [0] : vector<64x128xf32> to vector<128xf32>
      %84 = vector.shape_cast %83 : vector<128xf32> to vector<1x128xf32>
      %cst_31 = arith.constant 6.400000e+01 : f32
      %85 = vector.broadcast %cst_31 : f32 to vector<1x128xf32>
      %86 = arith.divf %84, %85 : vector<1x128xf32>
      %87 = vector.broadcast %79 : vector<1x128xf32> to vector<64x128xf32>
      %88 = arith.subf %73, %87 : vector<64x128xf32>
      %cst_32 = arith.constant 9.99999974E-6 : f32
      %89 = vector.broadcast %cst_32 : f32 to vector<1x128xf32>
      %90 = arith.addf %86, %89 : vector<1x128xf32>
      %91 = math.rsqrt %90 : vector<1x128xf32>
      %92 = vector.broadcast %91 : vector<1x128xf32> to vector<64x128xf32>
      %93 = arith.mulf %88, %92 : vector<64x128xf32>
      %94 = vector.broadcast %74 : vector<1x128xf32> to vector<64x128xf32>
      %95 = arith.mulf %93, %94 : vector<64x128xf32>
      %96 = vector.broadcast %75 : vector<1x128xf32> to vector<64x128xf32>
      %97 = arith.addf %95, %96 : vector<64x128xf32>
      %cst_33 = arith.constant 0.000000e+00 : f32
      %98 = vector.broadcast %cst_33 : f32 to vector<64x128xf32>
      %99 = arith.cmpf ogt, %97, %98 : vector<64x128xf32>
      %cst_34 = arith.constant 0.000000e+00 : f32
      %100 = vector.broadcast %cst_34 : f32 to vector<64x128xf32>
      %101 = arith.minimumf %97, %100 : vector<64x128xf32>
      %102 = math.exp %101 : vector<64x128xf32>
      %cst_35 = arith.constant 1.000000e+00 : f32
      %103 = vector.broadcast %cst_35 : f32 to vector<64x128xf32>
      %104 = arith.subf %102, %103 : vector<64x128xf32>
      %105 = arith.select %99, %97, %104 : vector<64x128xi1>, vector<64x128xf32>
      %c0_36 = arith.constant 0 : index
      %c0_37 = arith.constant 0 : index
      %106 = vector.load %arg10[%c0_36, %c0_37] : memref<64x128xf32, #tpu.memory_space<vmem>>, vector<64x128xf32>
      tpu.vector_store %arg10[%c0_36, %c0_37], %105 {strides = array<i32>} : memref<64x128xf32, #tpu.memory_space<vmem>>, vector<64x128xf32>,
    } else {
    }
    return
  }
  func.func @transform_0(%arg0: i32) -> (i32, i32) {
    %c0_i32 = arith.constant 0 : i32
    %c0_i32_0 = arith.constant 0 : i32
    return %arg0, %c0_i32 : i32, i32
  }
  func.func @transform_1(%arg0: i32) -> (i32, i32) {
    %c0_i32 = arith.constant 0 : i32
    %c0_i32_0 = arith.constant 0 : i32
    return %arg0, %c0_i32 : i32, i32
  }
  func.func @transform_2(%arg0: i32) -> (i32, i32) {
    %c0_i32 = arith.constant 0 : i32
    %c0_i32_0 = arith.constant 0 : i32
    return %c0_i32, %arg0 : i32, i32
  }
  func.func @transform_3(%arg0: i32) -> (i32, i32) {
    %c0_i32 = arith.constant 0 : i32
    %c0_i32_0 = arith.constant 0 : i32
    %c0_i32_1 = arith.constant 0 : i32
    return %c0_i32, %c0_i32_0 : i32, i32
  }
  func.func @transform_4(%arg0: i32) -> (i32, i32) {
    %c0_i32 = arith.constant 0 : i32
    %c0_i32_0 = arith.constant 0 : i32
    %c0_i32_1 = arith.constant 0 : i32
    return %c0_i32, %c0_i32_0 : i32, i32
  }
  func.func @transform_5(%arg0: i32) -> (i32, i32) {
    %c0_i32 = arith.constant 0 : i32
    %c0_i32_0 = arith.constant 0 : i32
    %c0_i32_1 = arith.constant 0 : i32
    return %c0_i32, %c0_i32_0 : i32, i32
  }
  func.func @transform_6(%arg0: i32) -> (i32, i32) {
    %c0_i32 = arith.constant 0 : i32
    %c0_i32_0 = arith.constant 0 : i32
    %c0_i32_1 = arith.constant 0 : i32
    return %c0_i32, %c0_i32_0 : i32, i32
  }
  func.func @transform_7(%arg0: i32) -> (i32, i32) {
    %c0_i32 = arith.constant 0 : i32
    %c0_i32_0 = arith.constant 0 : i32
    %c0_i32_1 = arith.constant 0 : i32
    return %c0_i32, %c0_i32_0 : i32, i32
  }
  func.func @transform_8(%arg0: i32) -> (i32, i32) {
    %c0_i32 = arith.constant 0 : i32
    %c0_i32_0 = arith.constant 0 : i32
    %c0_i32_1 = arith.constant 0 : i32
    return %c0_i32, %c0_i32_0 : i32, i32
  }
  func.func @transform_9(%arg0: i32) -> (i32, i32) {
    %c0_i32 = arith.constant 0 : i32
    %c0_i32_0 = arith.constant 0 : i32
    %c0_i32_1 = arith.constant 0 : i32
    return %c0_i32, %c0_i32_0 : i32, i32
  }
}

</mosaic_0001>

<llo_original>
// kernel: tpu_custom_call.1
$region0: #{tpu_custom_call.1}
  #allocation0 [shape = 'u32[]', space=smem, size = 0x4, offset = 0x4, fixed_abs, tag = 'smem constant byte address 0x4 - core index']
  #allocation1 [shape = 'u32[144,128]{1,0:T(1,128)}', space=vmem, size = 0x12000, scoped, tag = 'internal scratch']
  %s0 = inlined_call_operand.hbm [shape: bf16[512,128], index: 0, kind: input, shape index: {}]
  %s1 = inlined_call_operand.vmem [shape: f32[512,9], index: 1, kind: input, shape index: {}]
  %s2 = inlined_call_operand.vmem [shape: s32[1,512], index: 2, kind: input, shape index: {}]
  %s3 = inlined_call_operand.hbm [shape: bf16[64,128], index: 3, kind: input, shape index: {}]
  %s4 = inlined_call_operand.vmem [shape: bf16[128,1152], index: 4, kind: input, shape index: {}]
  %s5 = inlined_call_operand.vmem [shape: bf16[128,128], index: 5, kind: input, shape index: {}]
  %s6 = inlined_call_operand.vmem [shape: f32[64,1], index: 6, kind: input, shape index: {}]
  %s7 = inlined_call_operand.vmem [shape: f32[1,128], index: 7, kind: input, shape index: {}]
  %s8 = inlined_call_operand.vmem [shape: f32[1,128], index: 8, kind: input, shape index: {}]
  %s9 = inlined_call_operand.hbm [shape: f32[64,128], index: 9, kind: output, shape index: {}]
  %s10 = sld [smem:[#allocation0]]
  $region62: #{tpu_custom_call.1} parent=0
    _
  %s12 = ssub.s32 1, %s10
  %s13 = scalar_select 0, %s12, %s10
  $region1: #{tpu_custom_call.1} parent=0
    #allocation2 [shape = 'u8[131072]{0}', space=vmem, size = 0x20000, scoped, tag = 'input window, operand 0, single buffered']
    #allocation3 [shape = 's32[1]{0}', space=sflag, size = 0x4, scoped, tag = 'scoped memory for tpu_custom_call.1']
    #allocation4 [shape = 's32[1]{0}', space=sflag, size = 0x4, scoped, tag = 'scoped memory for tpu_custom_call.1']
    #allocation5 [shape = 'u8[16384]{0}', space=vmem, size = 0x4000, scoped, tag = 'input window, operand 3, single buffered']
    #allocation6 [shape = 's32[1]{0}', space=sflag, size = 0x4, scoped, tag = 'scoped memory for tpu_custom_call.1']
    #allocation7 [shape = 'u8[32768]{0}', space=vmem, size = 0x8000, scoped, tag = 'output window, operand 0, single buffered']
    %14 = vsyncpa [#allocation3], 0
    %15 = vsyncpa [#allocation6], 0
    %16 = vsyncpa [#allocation4], 0
    // Predicated region
    $region2: #{tpu_custom_call.1} parent=1 // pred_check
      _
    $region3: #{tpu_custom_call.1} parent=1 // pred_check_branch
      %18 = sbr.rel (0) target = $region5
    $region4: #{tpu_custom_call.1} parent=1 // pred_region
      %s20 = ssub.s32 4096, 4096
      %21 = vsyncadd [#allocation3], %s20
      %s22 = sshll.u32 [#allocation2], 4
      %s23 = int_to_ptr.vmem [resolvable:$true] %s22
      %28 = dma.hbm_to_vmem [thread:$0]  %s0, 4096, %s23, [#allocation3], 64, 64, 4
    $region5: #{tpu_custom_call.1} parent=1 // pred_fallthru
      _
    // Predicated region
    $region6: #{tpu_custom_call.1} parent=1 // pred_check
      _
    $region7: #{tpu_custom_call.1} parent=1 // pred_check_branch
      %30 = sbr.rel (0) target = $region9
    $region8: #{tpu_custom_call.1} parent=1 // pred_region
      _
    $region9: #{tpu_custom_call.1} parent=1 // pred_fallthru
      _
    // Predicated region
    $region10: #{tpu_custom_call.1} parent=1 // pred_check
      _
    $region11: #{tpu_custom_call.1} parent=1 // pred_check_branch
      %32 = sbr.rel (0) target = $region13
    $region12: #{tpu_custom_call.1} parent=1 // pred_region
      _
    $region13: #{tpu_custom_call.1} parent=1 // pred_fallthru
      _
    // Predicated region
    $region14: #{tpu_custom_call.1} parent=1 // pred_check
      _
    $region15: #{tpu_custom_call.1} parent=1 // pred_check_branch
      %34 = sbr.rel (0) target = $region17
    $region16: #{tpu_custom_call.1} parent=1 // pred_region
      %s36 = ssub.s32 512, 512
      %37 = vsyncadd [#allocation6], %s36
      %s38 = sshll.u32 [#allocation5], 4
      %s39 = int_to_ptr.vmem [resolvable:$true] %s38
      %44 = dma.hbm_to_vmem [thread:$0]  %s3, 512, %s39, [#allocation6], 64, 64, 4
    $region17: #{tpu_custom_call.1} parent=1 // pred_fallthru
      _
    // Predicated region
    $region18: #{tpu_custom_call.1} parent=1 // pred_check
      _
    $region19: #{tpu_custom_call.1} parent=1 // pred_check_branch
      %46 = sbr.rel (0) target = $region21
    $region20: #{tpu_custom_call.1} parent=1 // pred_region
      _
    $region21: #{tpu_custom_call.1} parent=1 // pred_fallthru
      _
    // Predicated region
    $region22: #{tpu_custom_call.1} parent=1 // pred_check
      _
    $region23: #{tpu_custom_call.1} parent=1 // pred_check_branch
      %48 = sbr.rel (0) target = $region25
    $region24: #{tpu_custom_call.1} parent=1 // pred_region
      _
    $region25: #{tpu_custom_call.1} parent=1 // pred_fallthru
      _
    // Predicated region
    $region26: #{tpu_custom_call.1} parent=1 // pred_check
      _
    $region27: #{tpu_custom_call.1} parent=1 // pred_check_branch
      %50 = sbr.rel (0) target = $region29
    $region28: #{tpu_custom_call.1} parent=1 // pred_region
      _
    $region29: #{tpu_custom_call.1} parent=1 // pred_fallthru
      _
    // Predicated region
    $region30: #{tpu_custom_call.1} parent=1 // pred_check
      _
    $region31: #{tpu_custom_call.1} parent=1 // pred_check_branch
      %52 = sbr.rel (0) target = $region33
    $region32: #{tpu_custom_call.1} parent=1 // pred_region
      _
    $region33: #{tpu_custom_call.1} parent=1 // pred_fallthru
      _
    // Predicated region
    $region34: #{tpu_custom_call.1} parent=1 // pred_check
      _
    $region35: #{tpu_custom_call.1} parent=1 // pred_check_branch
      %54 = sbr.rel (0) target = $region37
    $region36: #{tpu_custom_call.1} parent=1 // pred_region
      _
    $region37: #{tpu_custom_call.1} parent=1 // pred_fallthru
      _
    // Predicated region
    $region38: #{tpu_custom_call.1} parent=1 // pred_check
      _
    $region39: #{tpu_custom_call.1} parent=1 // pred_check_branch
      %56 = sbr.rel (0) target = $region41
    $region40: #{tpu_custom_call.1} parent=1 // pred_region
      %57 = dma.done [#allocation3], 4096
    $region41: #{tpu_custom_call.1} parent=1 // pred_fallthru
      _
    // Predicated region
    $region42: #{tpu_custom_call.1} parent=1 // pred_check
      _
    $region43: #{tpu_custom_call.1} parent=1 // pred_check_branch
      %59 = sbr.rel (0) target = $region45
    $region44: #{tpu_custom_call.1} parent=1 // pred_region
      %60 = dma.done [#allocation6], 512
    $region45: #{tpu_custom_call.1} parent=1 // pred_fallthru
      _
    %p62 = scmp.eq.s32.totalorder 0, 0
    // Predicated region
    $region46: #{tpu_custom_call.1} parent=1 // pred_check
      %p63 = pneg %p62
    $region47: #{tpu_custom_call.1} parent=1 // pred_check_branch
      %65 = sbr.rel (%p63) target = $region49
    $region48: #{tpu_custom_call.1} parent=1 // pred_region
      %66 = vst [vmem:[#allocation7] sm:$0xff] 0.0
      %67 = vst [vmem:[#allocation7 + $0x8] sm:$0xff] 0.0
      %68 = vst [vmem:[#allocation7 + $0x10] sm:$0xff] 0.0
      %69 = vst [vmem:[#allocation7 + $0x18] sm:$0xff] 0.0
      %70 = vst [vmem:[#allocation7 + $0x20] sm:$0xff] 0.0
      %71 = vst [vmem:[#allocation7 + $0x28] sm:$0xff] 0.0
      %72 = vst [vmem:[#allocation7 + $0x30] sm:$0xff] 0.0
      %73 = vst [vmem:[#allocation7 + $0x38] sm:$0xff] 0.0
    $region49: #{tpu_custom_call.1} parent=1 // pred_fallthru
      _
    %v74 = vld [vmem:[#allocation2] sm:$0xf]
    %v75 = vld [vmem:[#allocation2 + $0x4] sm:$0xf]
    %v76 = vld [vmem:[#allocation2 + $0x8] sm:$0xf]
    %v77 = vld [vmem:[#allocation2 + $0xc] sm:$0xf]
    %v78 = vld [vmem:[#allocation2 + $0x10] sm:$0xf]
    %v79 = vld [vmem:[#allocation2 + $0x14] sm:$0xf]
    %v80 = vld [vmem:[#allocation2 + $0x18] sm:$0xf]
    %v81 = vld [vmem:[#allocation2 + $0x1c] sm:$0xf]
    %v82 = vld [vmem:[#allocation2 + $0x20] sm:$0xf]
    %v83 = vld [vmem:[#allocation2 + $0x24] sm:$0xf]
    %v84 = vld [vmem:[#allocation2 + $0x28] sm:$0xf]
    %v85 = vld [vmem:[#allocation2 + $0x2c] sm:$0xf]
    %v86 = vld [vmem:[#allocation2 + $0x30] sm:$0xf]
    %v87 = vld [vmem:[#allocation2 + $0x34] sm:$0xf]
    %v88 = vld [vmem:[#allocation2 + $0x38] sm:$0xf]
    %v89 = vld [vmem:[#allocation2 + $0x3c] sm:$0xf]
    %v90 = vld [vmem:[#allocation2 + $0x40] sm:$0xf]
    %v91 = vld [vmem:[#allocation2 + $0x44] sm:$0xf]
    %v92 = vld [vmem:[#allocation2 + $0x48] sm:$0xf]
    %v93 = vld [vmem:[#allocation2 + $0x4c] sm:$0xf]
    %v94 = vld [vmem:[#allocation2 + $0x50] sm:$0xf]
    %v95 = vld [vmem:[#allocation2 + $0x54] sm:$0xf]
    %v96 = vld [vmem:[#allocation2 + $0x58] sm:$0xf]
    %v97 = vld [vmem:[#allocation2 + $0x5c] sm:$0xf]
    %v98 = vld [vmem:[#allocation2 + $0x60] sm:$0xf]
    %v99 = vld [vmem:[#allocation2 + $0x64] sm:$0xf]
    %v100 = vld [vmem:[#allocation2 + $0x68] sm:$0xf]
    %v101 = vld [vmem:[#allocation2 + $0x6c] sm:$0xf]
    %v102 = vld [vmem:[#allocation2 + $0x70] sm:$0xf]
    %v103 = vld [vmem:[#allocation2 + $0x74] sm:$0xf]
    %v104 = vld [vmem:[#allocation2 + $0x78] sm:$0xf]
    %v105 = vld [vmem:[#allocation2 + $0x7c] sm:$0xf]
    %v106 = vld [vmem:[#allocation2 + $0x80] sm:$0xf]
    %v107 = vld [vmem:[#allocation2 + $0x84] sm:$0xf]
    %v108 = vld [vmem:[#allocation2 + $0x88] sm:$0xf]
    %v109 = vld [vmem:[#allocation2 + $0x8c] sm:$0xf]
    %v110 = vld [vmem:[#allocation2 + $0x90] sm:$0xf]
    %v111 = vld [vmem:[#allocation2 + $0x94] sm:$0xf]
    %v112 = vld [vmem:[#allocation2 + $0x98] sm:$0xf]
    %v113 = vld [vmem:[#allocation2 + $0x9c] sm:$0xf]
    %v114 = vld [vmem:[#allocation2 + $0xa0] sm:$0xf]
    %v115 = vld [vmem:[#allocation2 + $0xa4] sm:$0xf]
    %v116 = vld [vmem:[#allocation2 + $0xa8] sm:$0xf]
    %v117 = vld [vmem:[#allocation2 + $0xac] sm:$0xf]
    %v118 = vld [vmem:[#allocation2 + $0xb0] sm:$0xf]
    %v119 = vld [vmem:[#allocation2 + $0xb4] sm:$0xf]
    %v120 = vld [vmem:[#allocation2 + $0xb8] sm:$0xf]
    %v121 = vld [vmem:[#allocation2 + $0xbc] sm:$0xf]
    %v122 = vld [vmem:[#allocation2 + $0xc0] sm:$0xf]
    %v123 = vld [vmem:[#allocation2 + $0xc4] sm:$0xf]
    %v124 = vld [vmem:[#allocation2 + $0xc8] sm:$0xf]
    %v125 = vld [vmem:[#allocation2 + $0xcc] sm:$0xf]
    %v126 = vld [vmem:[#allocation2 + $0xd0] sm:$0xf]
    %v127 = vld [vmem:[#allocation2 + $0xd4] sm:$0xf]
    %v128 = vld [vmem:[#allocation2 + $0xd8] sm:$0xf]
    %v129 = vld [vmem:[#allocation2 + $0xdc] sm:$0xf]
    %v130 = vld [vmem:[#allocation2 + $0xe0] sm:$0xf]
    %v131 = vld [vmem:[#allocation2 + $0xe4] sm:$0xf]
    %v132 = vld [vmem:[#allocation2 + $0xe8] sm:$0xf]
    %v133 = vld [vmem:[#allocation2 + $0xec] sm:$0xf]
    %v134 = vld [vmem:[#allocation2 + $0xf0] sm:$0xf]
    %v135 = vld [vmem:[#allocation2 + $0xf4] sm:$0xf]
    %v136 = vld [vmem:[#allocation2 + $0xf8] sm:$0xf]
    %v137 = vld [vmem:[#allocation2 + $0xfc] sm:$0xf]
    %v138 = vld [vmem:[%s4] sm:$0xff]
    %v139 = vld [vmem:[%s4 + $0x8] sm:$0xff]
    %v140 = vld [vmem:[%s4 + $0x10] sm:$0xff]
    %v141 = vld [vmem:[%s4 + $0x18] sm:$0xff]
    %v142 = vld [vmem:[%s4 + $0x20] sm:$0xf]
    %v143 = vld [vmem:[%s4 + $0x24] sm:$0xff]
    %v144 = vld [vmem:[%s4 + $0x2c] sm:$0xff]
    %v145 = vld [vmem:[%s4 + $0x34] sm:$0xff]
    %v146 = vld [vmem:[%s4 + $0x3c] sm:$0xff]
    %v147 = vld [vmem:[%s4 + $0x44] sm:$0xf]
    %v148 = vld [vmem:[%s4 + $0x48] sm:$0xff]
    %v149 = vld [vmem:[%s4 + $0x50] sm:$0xff]
    %v150 = vld [vmem:[%s4 + $0x58] sm:$0xff]
    %v151 = vld [vmem:[%s4 + $0x60] sm:$0xff]
    %v152 = vld [vmem:[%s4 + $0x68] sm:$0xf]
    %v153 = vld [vmem:[%s4 + $0x6c] sm:$0xff]
    %v154 = vld [vmem:[%s4 + $0x74] sm:$0xff]
    %v155 = vld [vmem:[%s4 + $0x7c] sm:$0xff]
    %v156 = vld [vmem:[%s4 + $0x84] sm:$0xff]
    %v157 = vld [vmem:[%s4 + $0x8c] sm:$0xf]
    %v158 = vld [vmem:[%s4 + $0x90] sm:$0xff]
    %v159 = vld [vmem:[%s4 + $0x98] sm:$0xff]
    %v160 = vld [vmem:[%s4 + $0xa0] sm:$0xff]
    %v161 = vld [vmem:[%s4 + $0xa8] sm:$0xff]
    %v162 = vld [vmem:[%s4 + $0xb0] sm:$0xf]
    %v163 = vld [vmem:[%s4 + $0xb4] sm:$0xff]
    %v164 = vld [vmem:[%s4 + $0xbc] sm:$0xff]
    %v165 = vld [vmem:[%s4 + $0xc4] sm:$0xff]
    %v166 = vld [vmem:[%s4 + $0xcc] sm:$0xff]
    %v167 = vld [vmem:[%s4 + $0xd4] sm:$0xf]
    %v168 = vld [vmem:[%s4 + $0xd8] sm:$0xff]
    %v169 = vld [vmem:[%s4 + $0xe0] sm:$0xff]
    %v170 = vld [vmem:[%s4 + $0xe8] sm:$0xff]
    %v171 = vld [vmem:[%s4 + $0xf0] sm:$0xff]
    %v172 = vld [vmem:[%s4 + $0xf8] sm:$0xf]
    %v173 = vld [vmem:[%s4 + $0xfc] sm:$0xff]
    %v174 = vld [vmem:[%s4 + $0x104] sm:$0xff]
    %v175 = vld [vmem:[%s4 + $0x10c] sm:$0xff]
    %v176 = vld [vmem:[%s4 + $0x114] sm:$0xff]
    %v177 = vld [vmem:[%s4 + $0x11c] sm:$0xf]
    %v178 = vld [vmem:[%s4 + $0x120] sm:$0xff]
    %v179 = vld [vmem:[%s4 + $0x128] sm:$0xff]
    %v180 = vld [vmem:[%s4 + $0x130] sm:$0xff]
    %v181 = vld [vmem:[%s4 + $0x138] sm:$0xff]
    %v182 = vld [vmem:[%s4 + $0x140] sm:$0xf]
    %v183 = vld [vmem:[%s4 + $0x144] sm:$0xff]
    %v184 = vld [vmem:[%s4 + $0x14c] sm:$0xff]
    %v185 = vld [vmem:[%s4 + $0x154] sm:$0xff]
    %v186 = vld [vmem:[%s4 + $0x15c] sm:$0xff]
    %v187 = vld [vmem:[%s4 + $0x164] sm:$0xf]
    %v188 = vld [vmem:[%s4 + $0x168] sm:$0xff]
    %v189 = vld [vmem:[%s4 + $0x170] sm:$0xff]
    %v190 = vld [vmem:[%s4 + $0x178] sm:$0xff]
    %v191 = vld [vmem:[%s4 + $0x180] sm:$0xff]
    %v192 = vld [vmem:[%s4 + $0x188] sm:$0xf]
    %v193 = vld [vmem:[%s4 + $0x18c] sm:$0xff]
    %v194 = vld [vmem:[%s4 + $0x194] sm:$0xff]
    %v195 = vld [vmem:[%s4 + $0x19c] sm:$0xff]
    %v196 = vld [vmem:[%s4 + $0x1a4] sm:$0xff]
    %v197 = vld [vmem:[%s4 + $0x1ac] sm:$0xf]
    %v198 = vld [vmem:[%s4 + $0x1b0] sm:$0xff]
    %v199 = vld [vmem:[%s4 + $0x1b8] sm:$0xff]
    %v200 = vld [vmem:[%s4 + $0x1c0] sm:$0xff]
    %v201 = vld [vmem:[%s4 + $0x1c8] sm:$0xff]
    %v202 = vld [vmem:[%s4 + $0x1d0] sm:$0xf]
    %v203 = vld [vmem:[%s4 + $0x1d4] sm:$0xff]
    %v204 = vld [vmem:[%s4 + $0x1dc] sm:$0xff]
    %v205 = vld [vmem:[%s4 + $0x1e4] sm:$0xff]
    %v206 = vld [vmem:[%s4 + $0x1ec] sm:$0xff]
    %v207 = vld [vmem:[%s4 + $0x1f4] sm:$0xf]
    %v208 = vld [vmem:[%s4 + $0x1f8] sm:$0xff]
    %v209 = vld [vmem:[%s4 + $0x200] sm:$0xff]
    %v210 = vld [vmem:[%s4 + $0x208] sm:$0xff]
    %v211 = vld [vmem:[%s4 + $0x210] sm:$0xff]
    %v212 = vld [vmem:[%s4 + $0x218] sm:$0xf]
    %v213 = vld [vmem:[%s4 + $0x21c] sm:$0xff]
    %v214 = vld [vmem:[%s4 + $0x224] sm:$0xff]
    %v215 = vld [vmem:[%s4 + $0x22c] sm:$0xff]
    %v216 = vld [vmem:[%s4 + $0x234] sm:$0xff]
    %v217 = vld [vmem:[%s4 + $0x23c] sm:$0xf]
    %v282 = vunpack.c.l.b16 %v74
    %v283 = vunpack.c.l.b16 %v75
    %v284 = vunpack.c.l.b16 %v76
    %v285 = vunpack.c.l.b16 %v77
    %v286 = vunpack.c.l.b16 %v78
    %v287 = vunpack.c.l.b16 %v79
    %v288 = vunpack.c.l.b16 %v80
    %v289 = vunpack.c.l.b16 %v81
    %v290 = vunpack.c.l.b16 %v82
    %v291 = vunpack.c.l.b16 %v83
    %v292 = vunpack.c.l.b16 %v84
    %v293 = vunpack.c.l.b16 %v85
    %v294 = vunpack.c.l.b16 %v86
    %v295 = vunpack.c.l.b16 %v87
    %v296 = vunpack.c.l.b16 %v88
    %v297 = vunpack.c.l.b16 %v89
    %v298 = vunpack.c.l.b16 %v90
    %v299 = vunpack.c.l.b16 %v91
    %v300 = vunpack.c.l.b16 %v92
    %v301 = vunpack.c.l.b16 %v93
    %v302 = vunpack.c.l.b16 %v94
    %v303 = vunpack.c.l.b16 %v95
    %v304 = vunpack.c.l.b16 %v96
    %v305 = vunpack.c.l.b16 %v97
    %v306 = vunpack.c.l.b16 %v98
    %v307 = vunpack.c.l.b16 %v99
    %v308 = vunpack.c.l.b16 %v100
    %v309 = vunpack.c.l.b16 %v101
    %v310 = vunpack.c.l.b16 %v102
    %v311 = vunpack.c.l.b16 %v103
    %v312 = vunpack.c.l.b16 %v104
    %v313 = vunpack.c.l.b16 %v105
    %v314 = vunpack.c.l.b16 %v106
    %v315 = vunpack.c.l.b16 %v107
    %v316 = vunpack.c.l.b16 %v108
    %v317 = vunpack.c.l.b16 %v109
    %v318 = vunpack.c.l.b16 %v110
    %v319 = vunpack.c.l.b16 %v111
    %v320 = vunpack.c.l.b16 %v112
    %v321 = vunpack.c.l.b16 %v113
    %v322 = vunpack.c.l.b16 %v114
    %v323 = vunpack.c.l.b16 %v115
    %v324 = vunpack.c.l.b16 %v116
    %v325 = vunpack.c.l.b16 %v117
    %v326 = vunpack.c.l.b16 %v118
    %v327 = vunpack.c.l.b16 %v119
    %v328 = vunpack.c.l.b16 %v120
    %v329 = vunpack.c.l.b16 %v121
    %v330 = vunpack.c.l.b16 %v122
    %v331 = vunpack.c.l.b16 %v123
    %v332 = vunpack.c.l.b16 %v124
    %v333 = vunpack.c.l.b16 %v125
    %v334 = vunpack.c.l.b16 %v126
    %v335 = vunpack.c.l.b16 %v127
    %v336 = vunpack.c.l.b16 %v128
    %v337 = vunpack.c.l.b16 %v129
    %v338 = vunpack.c.l.b16 %v130
    %v339 = vunpack.c.l.b16 %v131
    %v340 = vunpack.c.l.b16 %v132
    %v341 = vunpack.c.l.b16 %v133
    %v342 = vunpack.c.l.b16 %v134
    %v343 = vunpack.c.l.b16 %v135
    %v344 = vunpack.c.l.b16 %v136
    %v345 = vunpack.c.l.b16 %v137
    %v346 = vpack.c.b16 %v283, %v282
    %v347 = vpack.c.b16 %v285, %v284
    %v348 = vpack.c.b16 %v287, %v286
    %v349 = vpack.c.b16 %v289, %v288
    %v350 = vpack.c.b16 %v291, %v290
    %v351 = vpack.c.b16 %v293, %v292
    %v352 = vpack.c.b16 %v295, %v294
    %v353 = vpack.c.b16 %v297, %v296
    %v354 = vpack.c.b16 %v299, %v298
    %v355 = vpack.c.b16 %v301, %v300
    %v356 = vpack.c.b16 %v303, %v302
    %v357 = vpack.c.b16 %v305, %v304
    %v358 = vpack.c.b16 %v307, %v306
    %v359 = vpack.c.b16 %v309, %v308
    %v360 = vpack.c.b16 %v311, %v310
    %v361 = vpack.c.b16 %v313, %v312
    %v362 = vpack.c.b16 %v315, %v314
    %v363 = vpack.c.b16 %v317, %v316
    %v364 = vpack.c.b16 %v319, %v318
    %v365 = vpack.c.b16 %v321, %v320
    %v366 = vpack.c.b16 %v323, %v322
    %v367 = vpack.c.b16 %v325, %v324
    %v368 = vpack.c.b16 %v327, %v326
    %v369 = vpack.c.b16 %v329, %v328
    %v370 = vpack.c.b16 %v331, %v330
    %v371 = vpack.c.b16 %v333, %v332
    %v372 = vpack.c.b16 %v335, %v334
    %v373 = vpack.c.b16 %v337, %v336
    %v374 = vpack.c.b16 %v339, %v338
    %v375 = vpack.c.b16 %v341, %v340
    %v376 = vpack.c.b16 %v343, %v342
    %v377 = vpack.c.b16 %v345, %v344
    %v490 = vunpack.c.l.b16 %v138
    %v491 = vunpack.c.h.b16 %v138
    %v492 = vunpack.c.l.b16 %v139
    %v493 = vunpack.c.h.b16 %v139
    %v494 = vunpack.c.l.b16 %v140
    %v495 = vunpack.c.h.b16 %v140
    %v496 = vunpack.c.l.b16 %v141
    %v497 = vunpack.c.h.b16 %v141
    %v498 = vunpack.c.l.b16 %v142
    %v499 = vunpack.c.l.b16 %v143
    %v500 = vunpack.c.h.b16 %v143
    %v501 = vunpack.c.l.b16 %v144
    %v502 = vunpack.c.h.b16 %v144
    %v503 = vunpack.c.l.b16 %v145
    %v504 = vunpack.c.h.b16 %v145
    %v505 = vunpack.c.l.b16 %v146
    %v506 = vunpack.c.h.b16 %v146
    %v507 = vunpack.c.l.b16 %v147
    %v508 = vunpack.c.l.b16 %v148
    %v509 = vunpack.c.h.b16 %v148
    %v510 = vunpack.c.l.b16 %v149
    %v511 = vunpack.c.h.b16 %v149
    %v512 = vunpack.c.l.b16 %v150
    %v513 = vunpack.c.h.b16 %v150
    %v514 = vunpack.c.l.b16 %v151
    %v515 = vunpack.c.h.b16 %v151
    %v516 = vunpack.c.l.b16 %v152
    %v517 = vunpack.c.l.b16 %v153
    %v518 = vunpack.c.h.b16 %v153
    %v519 = vunpack.c.l.b16 %v154
    %v520 = vunpack.c.h.b16 %v154
    %v521 = vunpack.c.l.b16 %v155
    %v522 = vunpack.c.h.b16 %v155
    %v523 = vunpack.c.l.b16 %v156
    %v524 = vunpack.c.h.b16 %v156
    %v525 = vunpack.c.l.b16 %v157
    %v526 = vunpack.c.l.b16 %v158
    %v527 = vunpack.c.h.b16 %v158
    %v528 = vunpack.c.l.b16 %v159
    %v529 = vunpack.c.h.b16 %v159
    %v530 = vunpack.c.l.b16 %v160
    %v531 = vunpack.c.h.b16 %v160
    %v532 = vunpack.c.l.b16 %v161
    %v533 = vunpack.c.h.b16 %v161
    %v534 = vunpack.c.l.b16 %v162
    %v535 = vunpack.c.l.b16 %v163
    %v536 = vunpack.c.h.b16 %v163
    %v537 = vunpack.c.l.b16 %v164
    %v538 = vunpack.c.h.b16 %v164
    %v539 = vunpack.c.l.b16 %v165
    %v540 = vunpack.c.h.b16 %v165
    %v541 = vunpack.c.l.b16 %v166
    %v542 = vunpack.c.h.b16 %v166
    %v543 = vunpack.c.l.b16 %v167
    %v544 = vunpack.c.l.b16 %v168
    %v545 = vunpack.c.h.b16 %v168
    %v546 = vunpack.c.l.b16 %v169
    %v547 = vunpack.c.h.b16 %v169
    %v548 = vunpack.c.l.b16 %v170
    %v549 = vunpack.c.h.b16 %v170
    %v550 = vunpack.c.l.b16 %v171
    %v551 = vunpack.c.h.b16 %v171
    %v552 = vunpack.c.l.b16 %v172
    %v553 = vunpack.c.l.b16 %v173
    %v554 = vunpack.c.h.b16 %v173
    %v555 = vunpack.c.l.b16 %v174
    %v556 = vunpack.c.h.b16 %v174
    %v557 = vunpack.c.l.b16 %v175
    %v558 = vunpack.c.h.b16 %v175
    %v559 = vunpack.c.l.b16 %v176
    %v560 = vunpack.c.h.b16 %v176
    %v561 = vunpack.c.l.b16 %v177
    %v562 = vunpack.c.l.b16 %v178
    %v563 = vunpack.c.h.b16 %v178
    %v564 = vunpack.c.l.b16 %v179
    %v565 = vunpack.c.h.b16 %v179
    %v566 = vunpack.c.l.b16 %v180
    %v567 = vunpack.c.h.b16 %v180
    %v568 = vunpack.c.l.b16 %v181
    %v569 = vunpack.c.h.b16 %v181
    %v570 = vunpack.c.l.b16 %v182
    %v571 = vunpack.c.l.b16 %v183
    %v572 = vunpack.c.h.b16 %v183
    %v573 = vunpack.c.l.b16 %v184
    %v574 = vunpack.c.h.b16 %v184
    %v575 = vunpack.c.l.b16 %v185
    %v576 = vunpack.c.h.b16 %v185
    %v577 = vunpack.c.l.b16 %v186
    %v578 = vunpack.c.h.b16 %v186
    %v579 = vunpack.c.l.b16 %v187
    %v580 = vunpack.c.l.b16 %v188
    %v581 = vunpack.c.h.b16 %v188
    %v582 = vunpack.c.l.b16 %v189
    %v583 = vunpack.c.h.b16 %v189
    %v584 = vunpack.c.l.b16 %v190
    %v585 = vunpack.c.h.b16 %v190
    %v586 = vunpack.c.l.b16 %v191
    %v587 = vunpack.c.h.b16 %v191
    %v588 = vunpack.c.l.b16 %v192
    %v589 = vunpack.c.l.b16 %v193
    %v590 = vunpack.c.h.b16 %v193
    %v591 = vunpack.c.l.b16 %v194
    %v592 = vunpack.c.h.b16 %v194
    %v593 = vunpack.c.l.b16 %v195
    %v594 = vunpack.c.h.b16 %v195
    %v595 = vunpack.c.l.b16 %v196
    %v596 = vunpack.c.h.b16 %v196
    %v597 = vunpack.c.l.b16 %v197
    %v598 = vunpack.c.l.b16 %v198
    %v599 = vunpack.c.h.b16 %v198
    %v600 = vunpack.c.l.b16 %v199
    %v601 = vunpack.c.h.b16 %v199
    %v602 = vunpack.c.l.b16 %v200
    %v603 = vunpack.c.h.b16 %v200
    %v604 = vunpack.c.l.b16 %v201
    %v605 = vunpack.c.h.b16 %v201
    %v606 = vunpack.c.l.b16 %v202
    %v607 = vunpack.c.l.b16 %v203
    %v608 = vunpack.c.h.b16 %v203
    %v609 = vunpack.c.l.b16 %v204
    %v610 = vunpack.c.h.b16 %v204
    %v611 = vunpack.c.l.b16 %v205
    %v612 = vunpack.c.h.b16 %v205
    %v613 = vunpack.c.l.b16 %v206
    %v614 = vunpack.c.h.b16 %v206
    %v615 = vunpack.c.l.b16 %v207
    %v616 = vunpack.c.l.b16 %v208
    %v617 = vunpack.c.h.b16 %v208
    %v618 = vunpack.c.l.b16 %v209
    %v619 = vunpack.c.h.b16 %v209
    %v620 = vunpack.c.l.b16 %v210
    %v621 = vunpack.c.h.b16 %v210
    %v622 = vunpack.c.l.b16 %v211
    %v623 = vunpack.c.h.b16 %v211
    %v624 = vunpack.c.l.b16 %v212
    %v625 = vunpack.c.l.b16 %v213
    %v626 = vunpack.c.h.b16 %v213
    %v627 = vunpack.c.l.b16 %v214
    %v628 = vunpack.c.h.b16 %v214
    %v629 = vunpack.c.l.b16 %v215
    %v630 = vunpack.c.h.b16 %v215
    %v631 = vunpack.c.l.b16 %v216
    %v632 = vunpack.c.h.b16 %v216
    %v633 = vunpack.c.l.b16 %v217
    %v634 = vpack.c.b16 %v499, %v490
    %v635 = vpack.c.b16 %v500, %v491
    %v636 = vpack.c.b16 %v501, %v492
    %v637 = vpack.c.b16 %v502, %v493
    %v638 = vpack.c.b16 %v503, %v494
    %v639 = vpack.c.b16 %v504, %v495
    %v640 = vpack.c.b16 %v505, %v496
    %v641 = vpack.c.b16 %v506, %v497
    %v642 = vpack.c.b16 %v507, %v498
    %v643 = vpack.c.b16 %v517, %v508
    %v644 = vpack.c.b16 %v518, %v509
    %v645 = vpack.c.b16 %v519, %v510
    %v646 = vpack.c.b16 %v520, %v511
    %v647 = vpack.c.b16 %v521, %v512
    %v648 = vpack.c.b16 %v522, %v513
    %v649 = vpack.c.b16 %v523, %v514
    %v650 = vpack.c.b16 %v524, %v515
    %v651 = vpack.c.b16 %v525, %v516
    %v652 = vpack.c.b16 %v535, %v526
    %v653 = vpack.c.b16 %v536, %v527
    %v654 = vpack.c.b16 %v537, %v528
    %v655 = vpack.c.b16 %v538, %v529
    %v656 = vpack.c.b16 %v539, %v530
    %v657 = vpack.c.b16 %v540, %v531
    %v658 = vpack.c.b16 %v541, %v532
    %v659 = vpack.c.b16 %v542, %v533
    %v660 = vpack.c.b16 %v543, %v534
    %v661 = vpack.c.b16 %v553, %v544
    %v662 = vpack.c.b16 %v554, %v545
    %v663 = vpack.c.b16 %v555, %v546
    %v664 = vpack.c.b16 %v556, %v547
    %v665 = vpack.c.b16 %v557, %v548
    %v666 = vpack.c.b16 %v558, %v549
    %v667 = vpack.c.b16 %v559, %v550
    %v668 = vpack.c.b16 %v560, %v551
    %v669 = vpack.c.b16 %v561, %v552
    %v670 = vpack.c.b16 %v571, %v562
    %v671 = vpack.c.b16 %v572, %v563
    %v672 = vpack.c.b16 %v573, %v564
    %v673 = vpack.c.b16 %v574, %v565
    %v674 = vpack.c.b16 %v575, %v566
    %v675 = vpack.c.b16 %v576, %v567
    %v676 = vpack.c.b16 %v577, %v568
    %v677 = vpack.c.b16 %v578, %v569
    %v678 = vpack.c.b16 %v579, %v570
    %v679 = vpack.c.b16 %v589, %v580
    %v680 = vpack.c.b16 %v590, %v581
    %v681 = vpack.c.b16 %v591, %v582
    %v682 = vpack.c.b16 %v592, %v583
    %v683 = vpack.c.b16 %v593, %v584
    %v684 = vpack.c.b16 %v594, %v585
    %v685 = vpack.c.b16 %v595, %v586
    %v686 = vpack.c.b16 %v596, %v587
    %v687 = vpack.c.b16 %v597, %v588
    %v688 = vpack.c.b16 %v607, %v598
    %v689 = vpack.c.b16 %v608, %v599
    %v690 = vpack.c.b16 %v609, %v600
    %v691 = vpack.c.b16 %v610, %v601
    %v692 = vpack.c.b16 %v611, %v602
    %v693 = vpack.c.b16 %v612, %v603
    %v694 = vpack.c.b16 %v613, %v604
    %v695 = vpack.c.b16 %v614, %v605
    %v696 = vpack.c.b16 %v615, %v606
    %v697 = vpack.c.b16 %v625, %v616
    %v698 = vpack.c.b16 %v626, %v617
    %v699 = vpack.c.b16 %v627, %v618
    %v700 = vpack.c.b16 %v628, %v619
    %v701 = vpack.c.b16 %v629, %v620
    %v702 = vpack.c.b16 %v630, %v621
    %v703 = vpack.c.b16 %v631, %v622
    %v704 = vpack.c.b16 %v632, %v623
    %v705 = vpack.c.b16 %v633, %v624
    %778 = vmatprep.subr.bf16.mxu0 %v635
    %779 = vmatpush1.bf16.msra.mxu0 %v634
    %780 = vmatprep.subr.bf16.mxu0 %v644
    %781 = vmatpush1.bf16.msra.mxu0 %v643
    %782 = vmatprep.subr.bf16.mxu0 %v653
    %783 = vmatpush1.bf16.msra.mxu0 %v652
    %784 = vmatprep.subr.bf16.mxu0 %v662
    %785 = vmatpush1.bf16.msra.mxu0 %v661
    %786 = vmatprep.subr.bf16.mxu0 %v671
    %787 = vmatpush1.bf16.msra.mxu0 %v670
    %788 = vmatprep.subr.bf16.mxu0 %v680
    %789 = vmatpush1.bf16.msra.mxu0 %v679
    %790 = vmatprep.subr.bf16.mxu0 %v689
    %791 = vmatpush1.bf16.msra.mxu0 %v688
    %792 = vmatprep.subr.bf16.mxu0 %v698
    %793 = vmatpush1.bf16.msra.mxu0 %v697
    %794 = vmatprep.subr.bf16.mxu0 0
    %795 = vmatpush1.bf16.msra.mxu0 0
    %796 = vmatprep.subr.bf16.mxu0 0
    %797 = vmatpush1.bf16.msra.mxu0 0
    %798 = vmatprep.subr.bf16.mxu0 0
    %799 = vmatpush1.bf16.msra.mxu0 0
    %800 = vmatprep.subr.bf16.mxu0 0
    %801 = vmatpush1.bf16.msra.mxu0 0
    %802 = vmatprep.subr.bf16.mxu0 0
    %803 = vmatpush1.bf16.msra.mxu0 0
    %804 = vmatprep.subr.bf16.mxu0 0
    %805 = vmatpush1.bf16.msra.mxu0 0
    %806 = vmatprep.subr.bf16.mxu0 0
    %807 = vmatpush1.bf16.msra.mxu0 0
    %808 = vmatprep.subr.bf16.mxu0 0
    %809 = vmatpush1.bf16.msra.mxu0 0
    %810 = vmatprep.mubr.bf16.mxu0 0
    %811 = vmatmul.mubr.bf16.gmra.mrb[0].mxu0 %v346
    %v812 = vpop.f32.mrb[0].mxu0
    %v813 = vadd.f32 0.0, %v812
    %v814 = vpop.f32.mrb[0].mxu0
    %v815 = vadd.f32 0.0, %v814
    %v816 = vpop.f32.mrb[0].mxu0
    %v817 = vadd.f32 0.0, %v816
    %v818 = vpop.f32.mrb[0].mxu0
    %v819 = vadd.f32 0.0, %v818
    %820 = vmatprep.mubr.bf16.mxu0 0
    %821 = vmatmul.mubr.bf16.gmra.mrb[0].mxu0 %v347
    %v822 = vpop.f32.mrb[0].mxu0
    %v823 = vadd.f32 0.0, %v822
    %v824 = vpop.f32.mrb[0].mxu0
    %v825 = vadd.f32 0.0, %v824
    %v826 = vpop.f32.mrb[0].mxu0
    %v827 = vadd.f32 0.0, %v826
    %v828 = vpop.f32.mrb[0].mxu0
    %v829 = vadd.f32 0.0, %v828
    %830 = vmatprep.mubr.bf16.mxu0 0
    %831 = vmatmul.mubr.bf16.gmra.mrb[0].mxu0 %v348
    %v832 = vpop.f32.mrb[0].mxu0
    %v833 = vadd.f32 0.0, %v832
    %v834 = vpop.f32.mrb[0].mxu0
    %v835 = vadd.f32 0.0, %v834
    %v836 = vpop.f32.mrb[0].mxu0
    %v837 = vadd.f32 0.0, %v836
    %v838 = vpop.f32.mrb[0].mxu0
    %v839 = vadd.f32 0.0, %v838
    %840 = vmatprep.mubr.bf16.mxu0 0
    %841 = vmatmul.mubr.bf16.gmra.mrb[0].mxu0 %v349
    %v842 = vpop.f32.mrb[0].mxu0
    %v843 = vadd.f32 0.0, %v842
    %v844 = vpop.f32.mrb[0].mxu0
    %v845 = vadd.f32 0.0, %v844
    %v846 = vpop.f32.mrb[0].mxu0
    %v847 = vadd.f32 0.0, %v846
    %v848 = vpop.f32.mrb[0].mxu0
    %v849 = vadd.f32 0.0, %v848
    %850 = vmatprep.mubr.bf16.mxu0 0
    %851 = vmatmul.mubr.bf16.gmra.mrb[0].mxu0 %v350
    %v852 = vpop.f32.mrb[0].mxu0
    %v853 = vadd.f32 0.0, %v852
    %v854 = vpop.f32.mrb[0].mxu0
    %v855 = vadd.f32 0.0, %v854
    %v856 = vpop.f32.mrb[0].mxu0
    %v857 = vadd.f32 0.0, %v856
    %v858 = vpop.f32.mrb[0].mxu0
    %v859 = vadd.f32 0.0, %v858
    %860 = vmatprep.mubr.bf16.mxu0 0
    %861 = vmatmul.mubr.bf16.gmra.mrb[0].mxu0 %v351
    %v862 = vpop.f32.mrb[0].mxu0
    %v863 = vadd.f32 0.0, %v862
    %v864 = vpop.f32.mrb[0].mxu0
    %v865 = vadd.f32 0.0, %v864
    %v866 = vpop.f32.mrb[0].mxu0
    %v867 = vadd.f32 0.0, %v866
    %v868 = vpop.f32.mrb[0].mxu0
    %v869 = vadd.f32 0.0, %v868
    %870 = vmatprep.mubr.bf16.mxu0 0
    %871 = vmatmul.mubr.bf16.gmra.mrb[0].mxu0 %v352
    %v872 = vpop.f32.mrb[0].mxu0
    %v873 = vadd.f32 0.0, %v872
    %v874 = vpop.f32.mrb[0].mxu0
    %v875 = vadd.f32 0.0, %v874
    %v876 = vpop.f32.mrb[0].mxu0
    %v877 = vadd.f32 0.0, %v876
    %v878 = vpop.f32.mrb[0].mxu0
    %v879 = vadd.f32 0.0, %v878
    %880 = vmatprep.mubr.bf16.mxu0 0
    %881 = vmatmul.mubr.bf16.gmra.mrb[0].mxu0 %v353
    %v882 = vpop.f32.mrb[0].mxu0
    %v883 = vadd.f32 0.0, %v882
    %v884 = vpop.f32.mrb[0].mxu0
    %v885 = vadd.f32 0.0, %v884
    %v886 = vpop.f32.mrb[0].mxu0
    %v887 = vadd.f32 0.0, %v886
    %v888 = vpop.f32.mrb[0].mxu0
    %v889 = vadd.f32 0.0, %v888
    %890 = vmatprep.mubr.bf16.mxu0 0
    %891 = vmatmul.mubr.bf16.gmra.mrb[0].mxu0 %v354
    %v892 = vpop.f32.mrb[0].mxu0
    %v893 = vadd.f32 0.0, %v892
    %v894 = vpop.f32.mrb[0].mxu0
    %v895 = vadd.f32 0.0, %v894
    %v896 = vpop.f32.mrb[0].mxu0
    %v897 = vadd.f32 0.0, %v896
    %v898 = vpop.f32.mrb[0].mxu0
    %v899 = vadd.f32 0.0, %v898
    %900 = vmatprep.mubr.bf16.mxu0 0
    %901 = vmatmul.mubr.bf16.gmra.mrb[0].mxu0 %v355
    %v902 = vpop.f32.mrb[0].mxu0
    %v903 = vadd.f32 0.0, %v902
    %v904 = vpop.f32.mrb[0].mxu0
    %v905 = vadd.f32 0.0, %v904
    %v906 = vpop.f32.mrb[0].mxu0
    %v907 = vadd.f32 0.0, %v906
    %v908 = vpop.f32.mrb[0].mxu0
    %v909 = vadd.f32 0.0, %v908
    %910 = vmatprep.mubr.bf16.mxu0 0
    %911 = vmatmul.mubr.bf16.gmra.mrb[0].mxu0 %v356
    %v912 = vpop.f32.mrb[0].mxu0
    %v913 = vadd.f32 0.0, %v912
    %v914 = vpop.f32.mrb[0].mxu0
    %v915 = vadd.f32 0.0, %v914
    %v916 = vpop.f32.mrb[0].mxu0
    %v917 = vadd.f32 0.0, %v916
    %v918 = vpop.f32.mrb[0].mxu0
    %v919 = vadd.f32 0.0, %v918
    %920 = vmatprep.mubr.bf16.mxu0 0
    %921 = vmatmul.mubr.bf16.gmra.mrb[0].mxu0 %v357
    %v922 = vpop.f32.mrb[0].mxu0
    %v923 = vadd.f32 0.0, %v922
    %v924 = vpop.f32.mrb[0].mxu0
    %v925 = vadd.f32 0.0, %v924
    %v926 = vpop.f32.mrb[0].mxu0
    %v927 = vadd.f32 0.0, %v926
    %v928 = vpop.f32.mrb[0].mxu0
    %v929 = vadd.f32 0.0, %v928
    %930 = vmatprep.mubr.bf16.mxu0 0
    %931 = vmatmul.mubr.bf16.gmra.mrb[0].mxu0 %v358
    %v932 = vpop.f32.mrb[0].mxu0
    %v933 = vadd.f32 0.0, %v932
    %v934 = vpop.f32.mrb[0].mxu0
    %v935 = vadd.f32 0.0, %v934
    %v936 = vpop.f32.mrb[0].mxu0
    %v937 = vadd.f32 0.0, %v936
    %v938 = vpop.f32.mrb[0].mxu0
    %v939 = vadd.f32 0.0, %v938
    %940 = vmatprep.mubr.bf16.mxu0 0
    %941 = vmatmul.mubr.bf16.gmra.mrb[0].mxu0 %v359
    %v942 = vpop.f32.mrb[0].mxu0
    %v943 = vadd.f32 0.0, %v942
    %v944 = vpop.f32.mrb[0].mxu0
    %v945 = vadd.f32 0.0, %v944
    %v946 = vpop.f32.mrb[0].mxu0
    %v947 = vadd.f32 0.0, %v946
    %v948 = vpop.f32.mrb[0].mxu0
    %v949 = vadd.f32 0.0, %v948
    %950 = vmatprep.mubr.bf16.mxu0 0
    %951 = vmatmul.mubr.bf16.gmra.mrb[0].mxu0 %v360
    %v952 = vpop.f32.mrb[0].mxu0
    %v953 = vadd.f32 0.0, %v952
    %v954 = vpop.f32.mrb[0].mxu0
    %v955 = vadd.f32 0.0, %v954
    %v956 = vpop.f32.mrb[0].mxu0
    %v957 = vadd.f32 0.0, %v956
    %v958 = vpop.f32.mrb[0].mxu0
    %v959 = vadd.f32 0.0, %v958
    %960 = vmatprep.mubr.bf16.mxu0 0
    %961 = vmatmul.mubr.bf16.gmra.mrb[0].mxu0 %v361
    %v962 = vpop.f32.mrb[0].mxu0
    %v963 = vadd.f32 0.0, %v962
    %v964 = vpop.f32.mrb[0].mxu0
    %v965 = vadd.f32 0.0, %v964
    %v966 = vpop.f32.mrb[0].mxu0
    %v967 = vadd.f32 0.0, %v966
    %v968 = vpop.f32.mrb[0].mxu0
    %v969 = vadd.f32 0.0, %v968
    %970 = vmatprep.mubr.bf16.mxu0 0
    %971 = vmatmul.mubr.bf16.gmra.mrb[0].mxu0 %v362
    %v972 = vpop.f32.mrb[0].mxu0
    %v973 = vadd.f32 0.0, %v972
    %v974 = vpop.f32.mrb[0].mxu0
    %v975 = vadd.f32 0.0, %v974
    %v976 = vpop.f32.mrb[0].mxu0
    %v977 = vadd.f32 0.0, %v976
    %v978 = vpop.f32.mrb[0].mxu0
    %v979 = vadd.f32 0.0, %v978
    %980 = vmatprep.mubr.bf16.mxu0 0
    %981 = vmatmul.mubr.bf16.gmra.mrb[0].mxu0 %v363
    %v982 = vpop.f32.mrb[0].mxu0
    %v983 = vadd.f32 0.0, %v982
    %v984 = vpop.f32.mrb[0].mxu0
    %v985 = vadd.f32 0.0, %v984
    %v986 = vpop.f32.mrb[0].mxu0
    %v987 = vadd.f32 0.0, %v986
    %v988 = vpop.f32.mrb[0].mxu0
    %v989 = vadd.f32 0.0, %v988
    %990 = vmatprep.mubr.bf16.mxu0 0
    %991 = vmatmul.mubr.bf16.gmra.mrb[0].mxu0 %v364
    %v992 = vpop.f32.mrb[0].mxu0
    %v993 = vadd.f32 0.0, %v992
    %v994 = vpop.f32.mrb[0].mxu0
    %v995 = vadd.f32 0.0, %v994
    %v996 = vpop.f32.mrb[0].mxu0
    %v997 = vadd.f32 0.0, %v996
    %v998 = vpop.f32.mrb[0].mxu0
    %v999 = vadd.f32 0.0, %v998
    %1000 = vmatprep.mubr.bf16.mxu0 0
    %1001 = vmatmul.mubr.bf16.gmra.mrb[0].mxu0 %v365
    %v1002 = vpop.f32.mrb[0].mxu0
    %v1003 = vadd.f32 0.0, %v1002
    %v1004 = vpop.f32.mrb[0].mxu0
    %v1005 = vadd.f32 0.0, %v1004
    %v1006 = vpop.f32.mrb[0].mxu0
    %v1007 = vadd.f32 0.0, %v1006
    %v1008 = vpop.f32.mrb[0].mxu0
    %v1009 = vadd.f32 0.0, %v1008
    %1010 = vmatprep.mubr.bf16.mxu0 0
    %1011 = vmatmul.mubr.bf16.gmra.mrb[0].mxu0 %v366
    %v1012 = vpop.f32.mrb[0].mxu0
    %v1013 = vadd.f32 0.0, %v1012
    %v1014 = vpop.f32.mrb[0].mxu0
    %v1015 = vadd.f32 0.0, %v1014
    %v1016 = vpop.f32.mrb[0].mxu0
    %v1017 = vadd.f32 0.0, %v1016
    %v1018 = vpop.f32.mrb[0].mxu0
    %v1019 = vadd.f32 0.0, %v1018
    %1020 = vmatprep.mubr.bf16.mxu0 0
    %1021 = vmatmul.mubr.bf16.gmra.mrb[0].mxu0 %v367
    %v1022 = vpop.f32.mrb[0].mxu0
    %v1023 = vadd.f32 0.0, %v1022
    %v1024 = vpop.f32.mrb[0].mxu0
    %v1025 = vadd.f32 0.0, %v1024
    %v1026 = vpop.f32.mrb[0].mxu0
    %v1027 = vadd.f32 0.0, %v1026
    %v1028 = vpop.f32.mrb[0].mxu0
    %v1029 = vadd.f32 0.0, %v1028
    %1030 = vmatprep.mubr.bf16.mxu0 0
    %1031 = vmatmul.mubr.bf16.gmra.mrb[0].mxu0 %v368
    %v1032 = vpop.f32.mrb[0].mxu0
    %v1033 = vadd.f32 0.0, %v1032
    %v1034 = vpop.f32.mrb[0].mxu0
    %v1035 = vadd.f32 0.0, %v1034
    %v1036 = vpop.f32.mrb[0].mxu0
    %v1037 = vadd.f32 0.0, %v1036
    %v1038 = vpop.f32.mrb[0].mxu0
    %v1039 = vadd.f32 0.0, %v1038
    %1040 = vmatprep.mubr.bf16.mxu0 0
    %1041 = vmatmul.mubr.bf16.gmra.mrb[0].mxu0 %v369
    %v1042 = vpop.f32.mrb[0].mxu0
    %v1043 = vadd.f32 0.0, %v1042
    %v1044 = vpop.f32.mrb[0].mxu0
    %v1045 = vadd.f32 0.0, %v1044
    %v1046 = vpop.f32.mrb[0].mxu0
    %v1047 = vadd.f32 0.0, %v1046
    %v1048 = vpop.f32.mrb[0].mxu0
    %v1049 = vadd.f32 0.0, %v1048
    %1050 = vmatprep.mubr.bf16.mxu0 0
    %1051 = vmatmul.mubr.bf16.gmra.mrb[0].mxu0 %v370
    %v1052 = vpop.f32.mrb[0].mxu0
    %v1053 = vadd.f32 0.0, %v1052
    %v1054 = vpop.f32.mrb[0].mxu0
    %v1055 = vadd.f32 0.0, %v1054
    %v1056 = vpop.f32.mrb[0].mxu0
    %v1057 = vadd.f32 0.0, %v1056
    %v1058 = vpop.f32.mrb[0].mxu0
    %v1059 = vadd.f32 0.0, %v1058
    %1060 = vmatprep.mubr.bf16.mxu0 0
    %1061 = vmatmul.mubr.bf16.gmra.mrb[0].mxu0 %v371
    %v1062 = vpop.f32.mrb[0].mxu0
    %v1063 = vadd.f32 0.0, %v1062
    %v1064 = vpop.f32.mrb[0].mxu0
    %v1065 = vadd.f32 0.0, %v1064
    %v1066 = vpop.f32.mrb[0].mxu0
    %v1067 = vadd.f32 0.0, %v1066
    %v1068 = vpop.f32.mrb[0].mxu0
    %v1069 = vadd.f32 0.0, %v1068
    %1070 = vmatprep.mubr.bf16.mxu0 0
    %1071 = vmatmul.mubr.bf16.gmra.mrb[0].mxu0 %v372
    %v1072 = vpop.f32.mrb[0].mxu0
    %v1073 = vadd.f32 0.0, %v1072
    %v1074 = vpop.f32.mrb[0].mxu0
    %v1075 = vadd.f32 0.0, %v1074
    %v1076 = vpop.f32.mrb[0].mxu0
    %v1077 = vadd.f32 0.0, %v1076
    %v1078 = vpop.f32.mrb[0].mxu0
    %v1079 = vadd.f32 0.0, %v1078
    %1080 = vmatprep.mubr.bf16.mxu0 0
    %1081 = vmatmul.mubr.bf16.gmra.mrb[0].mxu0 %v373
    %v1082 = vpop.f32.mrb[0].mxu0
    %v1083 = vadd.f32 0.0, %v1082
    %v1084 = vpop.f32.mrb[0].mxu0
    %v1085 = vadd.f32 0.0, %v1084
    %v1086 = vpop.f32.mrb[0].mxu0
    %v1087 = vadd.f32 0.0, %v1086
    %v1088 = vpop.f32.mrb[0].mxu0
    %v1089 = vadd.f32 0.0, %v1088
    %1090 = vmatprep.mubr.bf16.mxu0 0
    %1091 = vmatmul.mubr.bf16.gmra.mrb[0].mxu0 %v374
    %v1092 = vpop.f32.mrb[0].mxu0
    %v1093 = vadd.f32 0.0, %v1092
    %v1094 = vpop.f32.mrb[0].mxu0
    %v1095 = vadd.f32 0.0, %v1094
    %v1096 = vpop.f32.mrb[0].mxu0
    %v1097 = vadd.f32 0.0, %v1096
    %v1098 = vpop.f32.mrb[0].mxu0
    %v1099 = vadd.f32 0.0, %v1098
    %1100 = vmatprep.mubr.bf16.mxu0 0
    %1101 = vmatmul.mubr.bf16.gmra.mrb[0].mxu0 %v375
    %v1102 = vpop.f32.mrb[0].mxu0
    %v1103 = vadd.f32 0.0, %v1102
    %v1104 = vpop.f32.mrb[0].mxu0
    %v1105 = vadd.f32 0.0, %v1104
    %v1106 = vpop.f32.mrb[0].mxu0
    %v1107 = vadd.f32 0.0, %v1106
    %v1108 = vpop.f32.mrb[0].mxu0
    %v1109 = vadd.f32 0.0, %v1108
    %1110 = vmatprep.mubr.bf16.mxu0 0
    %1111 = vmatmul.mubr.bf16.gmra.mrb[0].mxu0 %v376
    %v1112 = vpop.f32.mrb[0].mxu0
    %v1113 = vadd.f32 0.0, %v1112
    %v1114 = vpop.f32.mrb[0].mxu0
    %v1115 = vadd.f32 0.0, %v1114
    %v1116 = vpop.f32.mrb[0].mxu0
    %v1117 = vadd.f32 0.0, %v1116
    %v1118 = vpop.f32.mrb[0].mxu0
    %v1119 = vadd.f32 0.0, %v1118
    %1120 = vmatprep.mubr.bf16.mxu0 0
    %1121 = vmatmul.mubr.bf16.gmra.mrb[0].mxu0 %v377
    %v1122 = vpop.f32.mrb[0].mxu0
    %v1123 = vadd.f32 0.0, %v1122
    %v1124 = vpop.f32.mrb[0].mxu0
    %v1125 = vadd.f32 0.0, %v1124
    %v1126 = vpop.f32.mrb[0].mxu0
    %v1127 = vadd.f32 0.0, %v1126
    %v1128 = vpop.f32.mrb[0].mxu0
    %v1129 = vadd.f32 0.0, %v1128
    %1130 = vdwg.mxu0
    %1131 = vmatprep.subr.bf16.mxu0 %v637
    %1132 = vmatpush1.bf16.msra.mxu0 %v636
    %1133 = vmatprep.subr.bf16.mxu0 %v646
    %1134 = vmatpush1.bf16.msra.mxu0 %v645
    %1135 = vmatprep.subr.bf16.mxu0 %v655
    %1136 = vmatpush1.bf16.msra.mxu0 %v654
    %1137 = vmatprep.subr.bf16.mxu0 %v664
    %1138 = vmatpush1.bf16.msra.mxu0 %v663
    %1139 = vmatprep.subr.bf16.mxu0 %v673
    %1140 = vmatpush1.bf16.msra.mxu0 %v672
    %1141 = vmatprep.subr.bf16.mxu0 %v682
    %1142 = vmatpush1.bf16.msra.mxu0 %v681
    %1143 = vmatprep.subr.bf16.mxu0 %v691
    %1144 = vmatpush1.bf16.msra.mxu0 %v690
    %1145 = vmatprep.subr.bf16.mxu0 %v700
    %1146 = vmatpush1.bf16.msra.mxu0 %v699
    %1147 = vmatprep.subr.bf16.mxu0 0
    %1148 = vmatpush1.bf16.msra.mxu0 0
    %1149 = vmatprep.subr.bf16.mxu0 0
    %1150 = vmatpush1.bf16.msra.mxu0 0
    %1151 = vmatprep.subr.bf16.mxu0 0
    %1152 = vmatpush1.bf16.msra.mxu0 0
    %1153 = vmatprep.subr.bf16.mxu0 0
    %1154 = vmatpush1.bf16.msra.mxu0 0
    %1155 = vmatprep.subr.bf16.mxu0 0
    %1156 = vmatpush1.bf16.msra.mxu0 0
    %1157 = vmatprep.subr.bf16.mxu0 0
    %1158 = vmatpush1.bf16.msra.mxu0 0
    %1159 = vmatprep.subr.bf16.mxu0 0
    %1160 = vmatpush1.bf16.msra.mxu0 0
    %1161 = vmatprep.subr.bf16.mxu0 0
    %1162 = vmatpush1.bf16.msra.mxu0 0
    %1163 = vmatprep.mubr.bf16.mxu0 0
    %1164 = vmatmul.mubr.bf16.gmra.mrb[0].mxu0 %v346
    %v1165 = vpop.f32.mrb[0].mxu0
    %v1166 = vadd.f32 0.0, %v1165
    %v1167 = vpop.f32.mrb[0].mxu0
    %v1168 = vadd.f32 0.0, %v1167
    %v1169 = vpop.f32.mrb[0].mxu0
    %v1170 = vadd.f32 0.0, %v1169
    %v1171 = vpop.f32.mrb[0].mxu0
    %v1172 = vadd.f32 0.0, %v1171
    %1173 = vmatprep.mubr.bf16.mxu0 0
    %1174 = vmatmul.mubr.bf16.gmra.mrb[0].mxu0 %v347
    %v1175 = vpop.f32.mrb[0].mxu0
    %v1176 = vadd.f32 0.0, %v1175
    %v1177 = vpop.f32.mrb[0].mxu0
    %v1178 = vadd.f32 0.0, %v1177
    %v1179 = vpop.f32.mrb[0].mxu0
    %v1180 = vadd.f32 0.0, %v1179
    %v1181 = vpop.f32.mrb[0].mxu0
    %v1182 = vadd.f32 0.0, %v1181
    %1183 = vmatprep.mubr.bf16.mxu0 0
    %1184 = vmatmul.mubr.bf16.gmra.mrb[0].mxu0 %v348
    %v1185 = vpop.f32.mrb[0].mxu0
    %v1186 = vadd.f32 0.0, %v1185
    %v1187 = vpop.f32.mrb[0].mxu0
    %v1188 = vadd.f32 0.0, %v1187
    %v1189 = vpop.f32.mrb[0].mxu0
    %v1190 = vadd.f32 0.0, %v1189
    %v1191 = vpop.f32.mrb[0].mxu0
    %v1192 = vadd.f32 0.0, %v1191
    %1193 = vmatprep.mubr.bf16.mxu0 0
    %1194 = vmatmul.mubr.bf16.gmra.mrb[0].mxu0 %v349
    %v1195 = vpop.f32.mrb[0].mxu0
    %v1196 = vadd.f32 0.0, %v1195
    %v1197 = vpop.f32.mrb[0].mxu0
    %v1198 = vadd.f32 0.0, %v1197
    %v1199 = vpop.f32.mrb[0].mxu0
    %v1200 = vadd.f32 0.0, %v1199
    %v1201 = vpop.f32.mrb[0].mxu0
    %v1202 = vadd.f32 0.0, %v1201
    %1203 = vmatprep.mubr.bf16.mxu0 0
    %1204 = vmatmul.mubr.bf16.gmra.mrb[0].mxu0 %v350
    %v1205 = vpop.f32.mrb[0].mxu0
    %v1206 = vadd.f32 0.0, %v1205
    %v1207 = vpop.f32.mrb[0].mxu0
    %v1208 = vadd.f32 0.0, %v1207
    %v1209 = vpop.f32.mrb[0].mxu0
    %v1210 = vadd.f32 0.0, %v1209
    %v1211 = vpop.f32.mrb[0].mxu0
    %v1212 = vadd.f32 0.0, %v1211
    %1213 = vmatprep.mubr.bf16.mxu0 0
    %1214 = vmatmul.mubr.bf16.gmra.mrb[0].mxu0 %v351
    %v1215 = vpop.f32.mrb[0].mxu0
    %v1216 = vadd.f32 0.0, %v1215
    %v1217 = vpop.f32.mrb[0].mxu0
    %v1218 = vadd.f32 0.0, %v1217
    %v1219 = vpop.f32.mrb[0].mxu0
    %v1220 = vadd.f32 0.0, %v1219
    %v1221 = vpop.f32.mrb[0].mxu0
    %v1222 = vadd.f32 0.0, %v1221
    %1223 = vmatprep.mubr.bf16.mxu0 0
    %1224 = vmatmul.mubr.bf16.gmra.mrb[0].mxu0 %v352
    %v1225 = vpop.f32.mrb[0].mxu0
    %v1226 = vadd.f32 0.0, %v1225
    %v1227 = vpop.f32.mrb[0].mxu0
    %v1228 = vadd.f32 0.0, %v1227
    %v1229 = vpop.f32.mrb[0].mxu0
    %v1230 = vadd.f32 0.0, %v1229
    %v1231 = vpop.f32.mrb[0].mxu0
    %v1232 = vadd.f32 0.0, %v1231
    %1233 = vmatprep.mubr.bf16.mxu0 0
    %1234 = vmatmul.mubr.bf16.gmra.mrb[0].mxu0 %v353
    %v1235 = vpop.f32.mrb[0].mxu0
    %v1236 = vadd.f32 0.0, %v1235
    %v1237 = vpop.f32.mrb[0].mxu0
    %v1238 = vadd.f32 0.0, %v1237
    %v1239 = vpop.f32.mrb[0].mxu0
    %v1240 = vadd.f32 0.0, %v1239
    %v1241 = vpop.f32.mrb[0].mxu0
    %v1242 = vadd.f32 0.0, %v1241
    %1243 = vmatprep.mubr.bf16.mxu0 0
    %1244 = vmatmul.mubr.bf16.gmra.mrb[0].mxu0 %v354
    %v1245 = vpop.f32.mrb[0].mxu0
    %v1246 = vadd.f32 0.0, %v1245
    %v1247 = vpop.f32.mrb[0].mxu0
    %v1248 = vadd.f32 0.0, %v1247
    %v1249 = vpop.f32.mrb[0].mxu0
    %v1250 = vadd.f32 0.0, %v1249
    %v1251 = vpop.f32.mrb[0].mxu0
    %v1252 = vadd.f32 0.0, %v1251
    %1253 = vmatprep.mubr.bf16.mxu0 0
    %1254 = vmatmul.mubr.bf16.gmra.mrb[0].mxu0 %v355
    %v1255 = vpop.f32.mrb[0].mxu0
    %v1256 = vadd.f32 0.0, %v1255
    %v1257 = vpop.f32.mrb[0].mxu0
    %v1258 = vadd.f32 0.0, %v1257
    %v1259 = vpop.f32.mrb[0].mxu0
    %v1260 = vadd.f32 0.0, %v1259
    %v1261 = vpop.f32.mrb[0].mxu0
    %v1262 = vadd.f32 0.0, %v1261
    %1263 = vmatprep.mubr.bf16.mxu0 0
    %1264 = vmatmul.mubr.bf16.gmra.mrb[0].mxu0 %v356
    %v1265 = vpop.f32.mrb[0].mxu0
    %v1266 = vadd.f32 0.0, %v1265
    %v1267 = vpop.f32.mrb[0].mxu0
    %v1268 = vadd.f32 0.0, %v1267
    %v1269 = vpop.f32.mrb[0].mxu0
    %v1270 = vadd.f32 0.0, %v1269
    %v1271 = vpop.f32.mrb[0].mxu0
    %v1272 = vadd.f32 0.0, %v1271
    %1273 = vmatprep.mubr.bf16.mxu0 0
    %1274 = vmatmul.mubr.bf16.gmra.mrb[0].mxu0 %v357
    %v1275 = vpop.f32.mrb[0].mxu0
    %v1276 = vadd.f32 0.0, %v1275
    %v1277 = vpop.f32.mrb[0].mxu0
    %v1278 = vadd.f32 0.0, %v1277
    %v1279 = vpop.f32.mrb[0].mxu0
    %v1280 = vadd.f32 0.0, %v1279
    %v1281 = vpop.f32.mrb[0].mxu0
    %v1282 = vadd.f32 0.0, %v1281
    %1283 = vmatprep.mubr.bf16.mxu0 0
    %1284 = vmatmul.mubr.bf16.gmra.mrb[0].mxu0 %v358
    %v1285 = vpop.f32.mrb[0].mxu0
    %v1286 = vadd.f32 0.0, %v1285
    %v1287 = vpop.f32.mrb[0].mxu0
    %v1288 = vadd.f32 0.0, %v1287
    %v1289 = vpop.f32.mrb[0].mxu0
    %v1290 = vadd.f32 0.0, %v1289
    %v1291 = vpop.f32.mrb[0].mxu0
    %v1292 = vadd.f32 0.0, %v1291
    %1293 = vmatprep.mubr.bf16.mxu0 0
    %1294 = vmatmul.mubr.bf16.gmra.mrb[0].mxu0 %v359
    %v1295 = vpop.f32.mrb[0].mxu0
    %v1296 = vadd.f32 0.0, %v1295
    %v1297 = vpop.f32.mrb[0].mxu0
    %v1298 = vadd.f32 0.0, %v1297
    %v1299 = vpop.f32.mrb[0].mxu0
    %v1300 = vadd.f32 0.0, %v1299
    %v1301 = vpop.f32.mrb[0].mxu0
    %v1302 = vadd.f32 0.0, %v1301
    %1303 = vmatprep.mubr.bf16.mxu0 0
    %1304 = vmatmul.mubr.bf16.gmra.mrb[0].mxu0 %v360
    %v1305 = vpop.f32.mrb[0].mxu0
    %v1306 = vadd.f32 0.0, %v1305
    %v1307 = vpop.f32.mrb[0].mxu0
    %v1308 = vadd.f32 0.0, %v1307
    %v1309 = vpop.f32.mrb[0].mxu0
    %v1310 = vadd.f32 0.0, %v1309
    %v1311 = vpop.f32.mrb[0].mxu0
    %v1312 = vadd.f32 0.0, %v1311
    %1313 = vmatprep.mubr.bf16.mxu0 0
    %1314 = vmatmul.mubr.bf16.gmra.mrb[0].mxu0 %v361
    %v1315 = vpop.f32.mrb[0].mxu0
    %v1316 = vadd.f32 0.0, %v1315
    %v1317 = vpop.f32.mrb[0].mxu0
    %v1318 = vadd.f32 0.0, %v1317
    %v1319 = vpop.f32.mrb[0].mxu0
    %v1320 = vadd.f32 0.0, %v1319
    %v1321 = vpop.f32.mrb[0].mxu0
    %v1322 = vadd.f32 0.0, %v1321
    %1323 = vmatprep.mubr.bf16.mxu0 0
    %1324 = vmatmul.mubr.bf16.gmra.mrb[0].mxu0 %v362
    %v1325 = vpop.f32.mrb[0].mxu0
    %v1326 = vadd.f32 0.0, %v1325
    %v1327 = vpop.f32.mrb[0].mxu0
    %v1328 = vadd.f32 0.0, %v1327
    %v1329 = vpop.f32.mrb[0].mxu0
    %v1330 = vadd.f32 0.0, %v1329
    %v1331 = vpop.f32.mrb[0].mxu0
    %v1332 = vadd.f32 0.0, %v1331
    %1333 = vmatprep.mubr.bf16.mxu0 0
    %1334 = vmatmul.mubr.bf16.gmra.mrb[0].mxu0 %v363
    %v1335 = vpop.f32.mrb[0].mxu0
    %v1336 = vadd.f32 0.0, %v1335
    %v1337 = vpop.f32.mrb[0].mxu0
    %v1338 = vadd.f32 0.0, %v1337
    %v1339 = vpop.f32.mrb[0].mxu0
    %v1340 = vadd.f32 0.0, %v1339
    %v1341 = vpop.f32.mrb[0].mxu0
    %v1342 = vadd.f32 0.0, %v1341
    %1343 = vmatprep.mubr.bf16.mxu0 0
    %1344 = vmatmul.mubr.bf16.gmra.mrb[0].mxu0 %v364
    %v1345 = vpop.f32.mrb[0].mxu0
    %v1346 = vadd.f32 0.0, %v1345
    %v1347 = vpop.f32.mrb[0].mxu0
    %v1348 = vadd.f32 0.0, %v1347
    %v1349 = vpop.f32.mrb[0].mxu0
    %v1350 = vadd.f32 0.0, %v1349
    %v1351 = vpop.f32.mrb[0].mxu0
    %v1352 = vadd.f32 0.0, %v1351
    %1353 = vmatprep.mubr.bf16.mxu0 0
    %1354 = vmatmul.mubr.bf16.gmra.mrb[0].mxu0 %v365
    %v1355 = vpop.f32.mrb[0].mxu0
    %v1356 = vadd.f32 0.0, %v1355
    %v1357 = vpop.f32.mrb[0].mxu0
    %v1358 = vadd.f32 0.0, %v1357
    %v1359 = vpop.f32.mrb[0].mxu0
    %v1360 = vadd.f32 0.0, %v1359
    %v1361 = vpop.f32.mrb[0].mxu0
    %v1362 = vadd.f32 0.0, %v1361
    %1363 = vmatprep.mubr.bf16.mxu0 0
    %1364 = vmatmul.mubr.bf16.gmra.mrb[0].mxu0 %v366
    %v1365 = vpop.f32.mrb[0].mxu0
    %v1366 = vadd.f32 0.0, %v1365
    %v1367 = vpop.f32.mrb[0].mxu0
    %v1368 = vadd.f32 0.0, %v1367
    %v1369 = vpop.f32.mrb[0].mxu0
    %v1370 = vadd.f32 0.0, %v1369
    %v1371 = vpop.f32.mrb[0].mxu0
    %v1372 = vadd.f32 0.0, %v1371
    %1373 = vmatprep.mubr.bf16.mxu0 0
    %1374 = vmatmul.mubr.bf16.gmra.mrb[0].mxu0 %v367
    %v1375 = vpop.f32.mrb[0].mxu0
    %v1376 = vadd.f32 0.0, %v1375
    %v1377 = vpop.f32.mrb[0].mxu0
    %v1378 = vadd.f32 0.0, %v1377
    %v1379 = vpop.f32.mrb[0].mxu0
    %v1380 = vadd.f32 0.0, %v1379
    %v1381 = vpop.f32.mrb[0].mxu0
    %v1382 = vadd.f32 0.0, %v1381
    %1383 = vmatprep.mubr.bf16.mxu0 0
    %1384 = vmatmul.mubr.bf16.gmra.mrb[0].mxu0 %v368
    %v1385 = vpop.f32.mrb[0].mxu0
    %v1386 = vadd.f32 0.0, %v1385
    %v1387 = vpop.f32.mrb[0].mxu0
    %v1388 = vadd.f32 0.0, %v1387
    %v1389 = vpop.f32.mrb[0].mxu0
    %v1390 = vadd.f32 0.0, %v1389
    %v1391 = vpop.f32.mrb[0].mxu0
    %v1392 = vadd.f32 0.0, %v1391
    %1393 = vmatprep.mubr.bf16.mxu0 0
    %1394 = vmatmul.mubr.bf16.gmra.mrb[0].mxu0 %v369
    %v1395 = vpop.f32.mrb[0].mxu0
    %v1396 = vadd.f32 0.0, %v1395
    %v1397 = vpop.f32.mrb[0].mxu0
    %v1398 = vadd.f32 0.0, %v1397
    %v1399 = vpop.f32.mrb[0].mxu0
    %v1400 = vadd.f32 0.0, %v1399
    %v1401 = vpop.f32.mrb[0].mxu0
    %v1402 = vadd.f32 0.0, %v1401
    %1403 = vmatprep.mubr.bf16.mxu0 0
    %1404 = vmatmul.mubr.bf16.gmra.mrb[0].mxu0 %v370
    %v1405 = vpop.f32.mrb[0].mxu0
    %v1406 = vadd.f32 0.0, %v1405
    %v1407 = vpop.f32.mrb[0].mxu0
    %v1408 = vadd.f32 0.0, %v1407
    %v1409 = vpop.f32.mrb[0].mxu0
    %v1410 = vadd.f32 0.0, %v1409
    %v1411 = vpop.f32.mrb[0].mxu0
    %v1412 = vadd.f32 0.0, %v1411
    %1413 = vmatprep.mubr.bf16.mxu0 0
    %1414 = vmatmul.mubr.bf16.gmra.mrb[0].mxu0 %v371
    %v1415 = vpop.f32.mrb[0].mxu0
    %v1416 = vadd.f32 0.0, %v1415
    %v1417 = vpop.f32.mrb[0].mxu0
    %v1418 = vadd.f32 0.0, %v1417
    %v1419 = vpop.f32.mrb[0].mxu0
    %v1420 = vadd.f32 0.0, %v1419
    %v1421 = vpop.f32.mrb[0].mxu0
    %v1422 = vadd.f32 0.0, %v1421
    %1423 = vmatprep.mubr.bf16.mxu0 0
    %1424 = vmatmul.mubr.bf16.gmra.mrb[0].mxu0 %v372
    %v1425 = vpop.f32.mrb[0].mxu0
    %v1426 = vadd.f32 0.0, %v1425
    %v1427 = vpop.f32.mrb[0].mxu0
    %v1428 = vadd.f32 0.0, %v1427
    %v1429 = vpop.f32.mrb[0].mxu0
    %v1430 = vadd.f32 0.0, %v1429
    %v1431 = vpop.f32.mrb[0].mxu0
    %v1432 = vadd.f32 0.0, %v1431
    %1433 = vmatprep.mubr.bf16.mxu0 0
    %1434 = vmatmul.mubr.bf16.gmra.mrb[0].mxu0 %v373
    %v1435 = vpop.f32.mrb[0].mxu0
    %v1436 = vadd.f32 0.0, %v1435
    %v1437 = vpop.f32.mrb[0].mxu0
    %v1438 = vadd.f32 0.0, %v1437
    %v1439 = vpop.f32.mrb[0].mxu0
    %v1440 = vadd.f32 0.0, %v1439
    %v1441 = vpop.f32.mrb[0].mxu0
    %v1442 = vadd.f32 0.0, %v1441
    %1443 = vmatprep.mubr.bf16.mxu0 0
    %1444 = vmatmul.mubr.bf16.gmra.mrb[0].mxu0 %v374
    %v1445 = vpop.f32.mrb[0].mxu0
    %v1446 = vadd.f32 0.0, %v1445
    %v1447 = vpop.f32.mrb[0].mxu0
    %v1448 = vadd.f32 0.0, %v1447
    %v1449 = vpop.f32.mrb[0].mxu0
    %v1450 = vadd.f32 0.0, %v1449
    %v1451 = vpop.f32.mrb[0].mxu0
    %v1452 = vadd.f32 0.0, %v1451
    %1453 = vmatprep.mubr.bf16.mxu0 0
    %1454 = vmatmul.mubr.bf16.gmra.mrb[0].mxu0 %v375
    %v1455 = vpop.f32.mrb[0].mxu0
    %v1456 = vadd.f32 0.0, %v1455
    %v1457 = vpop.f32.mrb[0].mxu0
    %v1458 = vadd.f32 0.0, %v1457
    %v1459 = vpop.f32.mrb[0].mxu0
    %v1460 = vadd.f32 0.0, %v1459
    %v1461 = vpop.f32.mrb[0].mxu0
    %v1462 = vadd.f32 0.0, %v1461
    %1463 = vmatprep.mubr.bf16.mxu0 0
    %1464 = vmatmul.mubr.bf16.gmra.mrb[0].mxu0 %v376
    %v1465 = vpop.f32.mrb[0].mxu0
    %v1466 = vadd.f32 0.0, %v1465
    %v1467 = vpop.f32.mrb[0].mxu0
    %v1468 = vadd.f32 0.0, %v1467
    %v1469 = vpop.f32.mrb[0].mxu0
    %v1470 = vadd.f32 0.0, %v1469
    %v1471 = vpop.f32.mrb[0].mxu0
    %v1472 = vadd.f32 0.0, %v1471
    %1473 = vmatprep.mubr.bf16.mxu0 0
    %1474 = vmatmul.mubr.bf16.gmra.mrb[0].mxu0 %v377
    %v1475 = vpop.f32.mrb[0].mxu0
    %v1476 = vadd.f32 0.0, %v1475
    %v1477 = vpop.f32.mrb[0].mxu0
    %v1478 = vadd.f32 0.0, %v1477
    %v1479 = vpop.f32.mrb[0].mxu0
    %v1480 = vadd.f32 0.0, %v1479
    %v1481 = vpop.f32.mrb[0].mxu0
    %v1482 = vadd.f32 0.0, %v1481
    %1483 = vdwg.mxu0
    %1484 = vmatprep.subr.bf16.mxu0 %v639
    %1485 = vmatpush1.bf16.msra.mxu0 %v638
    %1486 = vmatprep.subr.bf16.mxu0 %v648
    %1487 = vmatpush1.bf16.msra.mxu0 %v647
    %1488 = vmatprep.subr.bf16.mxu0 %v657
    %1489 = vmatpush1.bf16.msra.mxu0 %v656
    %1490 = vmatprep.subr.bf16.mxu0 %v666
    %1491 = vmatpush1.bf16.msra.mxu0 %v665
    %1492 = vmatprep.subr.bf16.mxu0 %v675
    %1493 = vmatpush1.bf16.msra.mxu0 %v674
    %1494 = vmatprep.subr.bf16.mxu0 %v684
    %1495 = vmatpush1.bf16.msra.mxu0 %v683
    %1496 = vmatprep.subr.bf16.mxu0 %v693
    %1497 = vmatpush1.bf16.msra.mxu0 %v692
    %1498 = vmatprep.subr.bf16.mxu0 %v702
    %1499 = vmatpush1.bf16.msra.mxu0 %v701
    %1500 = vmatprep.subr.bf16.mxu0 0
    %1501 = vmatpush1.bf16.msra.mxu0 0
    %1502 = vmatprep.subr.bf16.mxu0 0
    %1503 = vmatpush1.bf16.msra.mxu0 0
    %1504 = vmatprep.subr.bf16.mxu0 0
    %1505 = vmatpush1.bf16.msra.mxu0 0
    %1506 = vmatprep.subr.bf16.mxu0 0
    %1507 = vmatpush1.bf16.msra.mxu0 0
    %1508 = vmatprep.subr.bf16.mxu0 0
    %1509 = vmatpush1.bf16.msra.mxu0 0
    %1510 = vmatprep.subr.bf16.mxu0 0
    %1511 = vmatpush1.bf16.msra.mxu0 0
    %1512 = vmatprep.subr.bf16.mxu0 0
    %1513 = vmatpush1.bf16.msra.mxu0 0
    %1514 = vmatprep.subr.bf16.mxu0 0
    %1515 = vmatpush1.bf16.msra.mxu0 0
    %1516 = vmatprep.mubr.bf16.mxu0 0
    %1517 = vmatmul.mubr.bf16.gmra.mrb[0].mxu0 %v346
    %v1518 = vpop.f32.mrb[0].mxu0
    %v1519 = vadd.f32 0.0, %v1518
    %v1520 = vpop.f32.mrb[0].mxu0
    %v1521 = vadd.f32 0.0, %v1520
    %v1522 = vpop.f32.mrb[0].mxu0
    %v1523 = vadd.f32 0.0, %v1522
    %v1524 = vpop.f32.mrb[0].mxu0
    %v1525 = vadd.f32 0.0, %v1524
    %1526 = vmatprep.mubr.bf16.mxu0 0
    %1527 = vmatmul.mubr.bf16.gmra.mrb[0].mxu0 %v347
    %v1528 = vpop.f32.mrb[0].mxu0
    %v1529 = vadd.f32 0.0, %v1528
    %v1530 = vpop.f32.mrb[0].mxu0
    %v1531 = vadd.f32 0.0, %v1530
    %v1532 = vpop.f32.mrb[0].mxu0
    %v1533 = vadd.f32 0.0, %v1532
    %v1534 = vpop.f32.mrb[0].mxu0
    %v1535 = vadd.f32 0.0, %v1534
    %1536 = vmatprep.mubr.bf16.mxu0 0
    %1537 = vmatmul.mubr.bf16.gmra.mrb[0].mxu0 %v348
    %v1538 = vpop.f32.mrb[0].mxu0
    %v1539 = vadd.f32 0.0, %v1538
    %v1540 = vpop.f32.mrb[0].mxu0
    %v1541 = vadd.f32 0.0, %v1540
    %v1542 = vpop.f32.mrb[0].mxu0
    %v1543 = vadd.f32 0.0, %v1542
    %v1544 = vpop.f32.mrb[0].mxu0
    %v1545 = vadd.f32 0.0, %v1544
    %1546 = vmatprep.mubr.bf16.mxu0 0
    %1547 = vmatmul.mubr.bf16.gmra.mrb[0].mxu0 %v349
    %v1548 = vpop.f32.mrb[0].mxu0
    %v1549 = vadd.f32 0.0, %v1548
    %v1550 = vpop.f32.mrb[0].mxu0
    %v1551 = vadd.f32 0.0, %v1550
    %v1552 = vpop.f32.mrb[0].mxu0
    %v1553 = vadd.f32 0.0, %v1552
    %v1554 = vpop.f32.mrb[0].mxu0
    %v1555 = vadd.f32 0.0, %v1554
    %1556 = vmatprep.mubr.bf16.mxu0 0
    %1557 = vmatmul.mubr.bf16.gmra.mrb[0].mxu0 %v350
    %v1558 = vpop.f32.mrb[0].mxu0
    %v1559 = vadd.f32 0.0, %v1558
    %v1560 = vpop.f32.mrb[0].mxu0
    %v1561 = vadd.f32 0.0, %v1560
    %v1562 = vpop.f32.mrb[0].mxu0
    %v1563 = vadd.f32 0.0, %v1562
    %v1564 = vpop.f32.mrb[0].mxu0
    %v1565 = vadd.f32 0.0, %v1564
    %1566 = vmatprep.mubr.bf16.mxu0 0
    %1567 = vmatmul.mubr.bf16.gmra.mrb[0].mxu0 %v351
    %v1568 = vpop.f32.mrb[0].mxu0
    %v1569 = vadd.f32 0.0, %v1568
    %v1570 = vpop.f32.mrb[0].mxu0
    %v1571 = vadd.f32 0.0, %v1570
    %v1572 = vpop.f32.mrb[0].mxu0
    %v1573 = vadd.f32 0.0, %v1572
    %v1574 = vpop.f32.mrb[0].mxu0
    %v1575 = vadd.f32 0.0, %v1574
    %1576 = vmatprep.mubr.bf16.mxu0 0
    %1577 = vmatmul.mubr.bf16.gmra.mrb[0].mxu0 %v352
    %v1578 = vpop.f32.mrb[0].mxu0
    %v1579 = vadd.f32 0.0, %v1578
    %v1580 = vpop.f32.mrb[0].mxu0
    %v1581 = vadd.f32 0.0, %v1580
    %v1582 = vpop.f32.mrb[0].mxu0
    %v1583 = vadd.f32 0.0, %v1582
    %v1584 = vpop.f32.mrb[0].mxu0
    %v1585 = vadd.f32 0.0, %v1584
    %1586 = vmatprep.mubr.bf16.mxu0 0
    %1587 = vmatmul.mubr.bf16.gmra.mrb[0].mxu0 %v353
    %v1588 = vpop.f32.mrb[0].mxu0
    %v1589 = vadd.f32 0.0, %v1588
    %v1590 = vpop.f32.mrb[0].mxu0
    %v1591 = vadd.f32 0.0, %v1590
    %v1592 = vpop.f32.mrb[0].mxu0
    %v1593 = vadd.f32 0.0, %v1592
    %v1594 = vpop.f32.mrb[0].mxu0
    %v1595 = vadd.f32 0.0, %v1594
    %1596 = vmatprep.mubr.bf16.mxu0 0
    %1597 = vmatmul.mubr.bf16.gmra.mrb[0].mxu0 %v354
    %v1598 = vpop.f32.mrb[0].mxu0
    %v1599 = vadd.f32 0.0, %v1598
    %v1600 = vpop.f32.mrb[0].mxu0
    %v1601 = vadd.f32 0.0, %v1600
    %v1602 = vpop.f32.mrb[0].mxu0
    %v1603 = vadd.f32 0.0, %v1602
    %v1604 = vpop.f32.mrb[0].mxu0
    %v1605 = vadd.f32 0.0, %v1604
    %1606 = vmatprep.mubr.bf16.mxu0 0
    %1607 = vmatmul.mubr.bf16.gmra.mrb[0].mxu0 %v355
    %v1608 = vpop.f32.mrb[0].mxu0
    %v1609 = vadd.f32 0.0, %v1608
    %v1610 = vpop.f32.mrb[0].mxu0
    %v1611 = vadd.f32 0.0, %v1610
    %v1612 = vpop.f32.mrb[0].mxu0
    %v1613 = vadd.f32 0.0, %v1612
    %v1614 = vpop.f32.mrb[0].mxu0
    %v1615 = vadd.f32 0.0, %v1614
    %1616 = vmatprep.mubr.bf16.mxu0 0
    %1617 = vmatmul.mubr.bf16.gmra.mrb[0].mxu0 %v356
    %v1618 = vpop.f32.mrb[0].mxu0
    %v1619 = vadd.f32 0.0, %v1618
    %v1620 = vpop.f32.mrb[0].mxu0
    %v1621 = vadd.f32 0.0, %v1620
    %v1622 = vpop.f32.mrb[0].mxu0
    %v1623 = vadd.f32 0.0, %v1622
    %v1624 = vpop.f32.mrb[0].mxu0
    %v1625 = vadd.f32 0.0, %v1624
    %1626 = vmatprep.mubr.bf16.mxu0 0
    %1627 = vmatmul.mubr.bf16.gmra.mrb[0].mxu0 %v357
    %v1628 = vpop.f32.mrb[0].mxu0
    %v1629 = vadd.f32 0.0, %v1628
    %v1630 = vpop.f32.mrb[0].mxu0
    %v1631 = vadd.f32 0.0, %v1630
    %v1632 = vpop.f32.mrb[0].mxu0
    %v1633 = vadd.f32 0.0, %v1632
    %v1634 = vpop.f32.mrb[0].mxu0
    %v1635 = vadd.f32 0.0, %v1634
    %1636 = vmatprep.mubr.bf16.mxu0 0
    %1637 = vmatmul.mubr.bf16.gmra.mrb[0].mxu0 %v358
    %v1638 = vpop.f32.mrb[0].mxu0
    %v1639 = vadd.f32 0.0, %v1638
    %v1640 = vpop.f32.mrb[0].mxu0
    %v1641 = vadd.f32 0.0, %v1640
    %v1642 = vpop.f32.mrb[0].mxu0
    %v1643 = vadd.f32 0.0, %v1642
    %v1644 = vpop.f32.mrb[0].mxu0
    %v1645 = vadd.f32 0.0, %v1644
    %1646 = vmatprep.mubr.bf16.mxu0 0
    %1647 = vmatmul.mubr.bf16.gmra.mrb[0].mxu0 %v359
    %v1648 = vpop.f32.mrb[0].mxu0
    %v1649 = vadd.f32 0.0, %v1648
    %v1650 = vpop.f32.mrb[0].mxu0
    %v1651 = vadd.f32 0.0, %v1650
    %v1652 = vpop.f32.mrb[0].mxu0
    %v1653 = vadd.f32 0.0, %v1652
    %v1654 = vpop.f32.mrb[0].mxu0
    %v1655 = vadd.f32 0.0, %v1654
    %1656 = vmatprep.mubr.bf16.mxu0 0
    %1657 = vmatmul.mubr.bf16.gmra.mrb[0].mxu0 %v360
    %v1658 = vpop.f32.mrb[0].mxu0
    %v1659 = vadd.f32 0.0, %v1658
    %v1660 = vpop.f32.mrb[0].mxu0
    %v1661 = vadd.f32 0.0, %v1660
    %v1662 = vpop.f32.mrb[0].mxu0
    %v1663 = vadd.f32 0.0, %v1662
    %v1664 = vpop.f32.mrb[0].mxu0
    %v1665 = vadd.f32 0.0, %v1664
    %1666 = vmatprep.mubr.bf16.mxu0 0
    %1667 = vmatmul.mubr.bf16.gmra.mrb[0].mxu0 %v361
    %v1668 = vpop.f32.mrb[0].mxu0
    %v1669 = vadd.f32 0.0, %v1668
    %v1670 = vpop.f32.mrb[0].mxu0
    %v1671 = vadd.f32 0.0, %v1670
    %v1672 = vpop.f32.mrb[0].mxu0
    %v1673 = vadd.f32 0.0, %v1672
    %v1674 = vpop.f32.mrb[0].mxu0
    %v1675 = vadd.f32 0.0, %v1674
    %1676 = vmatprep.mubr.bf16.mxu0 0
    %1677 = vmatmul.mubr.bf16.gmra.mrb[0].mxu0 %v362
    %v1678 = vpop.f32.mrb[0].mxu0
    %v1679 = vadd.f32 0.0, %v1678
    %v1680 = vpop.f32.mrb[0].mxu0
    %v1681 = vadd.f32 0.0, %v1680
    %v1682 = vpop.f32.mrb[0].mxu0
    %v1683 = vadd.f32 0.0, %v1682
    %v1684 = vpop.f32.mrb[0].mxu0
    %v1685 = vadd.f32 0.0, %v1684
    %1686 = vmatprep.mubr.bf16.mxu0 0
    %1687 = vmatmul.mubr.bf16.gmra.mrb[0].mxu0 %v363
    %v1688 = vpop.f32.mrb[0].mxu0
    %v1689 = vadd.f32 0.0, %v1688
    %v1690 = vpop.f32.mrb[0].mxu0
    %v1691 = vadd.f32 0.0, %v1690
    %v1692 = vpop.f32.mrb[0].mxu0
    %v1693 = vadd.f32 0.0, %v1692
    %v1694 = vpop.f32.mrb[0].mxu0
    %v1695 = vadd.f32 0.0, %v1694
    %1696 = vmatprep.mubr.bf16.mxu0 0
    %1697 = vmatmul.mubr.bf16.gmra.mrb[0].mxu0 %v364
    %v1698 = vpop.f32.mrb[0].mxu0
    %v1699 = vadd.f32 0.0, %v1698
    %v1700 = vpop.f32.mrb[0].mxu0
    %v1701 = vadd.f32 0.0, %v1700
    %v1702 = vpop.f32.mrb[0].mxu0
    %v1703 = vadd.f32 0.0, %v1702
    %v1704 = vpop.f32.mrb[0].mxu0
    %v1705 = vadd.f32 0.0, %v1704
    %1706 = vmatprep.mubr.bf16.mxu0 0
    %1707 = vmatmul.mubr.bf16.gmra.mrb[0].mxu0 %v365
    %v1708 = vpop.f32.mrb[0].mxu0
    %v1709 = vadd.f32 0.0, %v1708
    %v1710 = vpop.f32.mrb[0].mxu0
    %v1711 = vadd.f32 0.0, %v1710
    %v1712 = vpop.f32.mrb[0].mxu0
    %v1713 = vadd.f32 0.0, %v1712
    %v1714 = vpop.f32.mrb[0].mxu0
    %v1715 = vadd.f32 0.0, %v1714
    %1716 = vmatprep.mubr.bf16.mxu0 0
    %1717 = vmatmul.mubr.bf16.gmra.mrb[0].mxu0 %v366
    %v1718 = vpop.f32.mrb[0].mxu0
    %v1719 = vadd.f32 0.0, %v1718
    %v1720 = vpop.f32.mrb[0].mxu0
    %v1721 = vadd.f32 0.0, %v1720
    %v1722 = vpop.f32.mrb[0].mxu0
    %v1723 = vadd.f32 0.0, %v1722
    %v1724 = vpop.f32.mrb[0].mxu0
    %v1725 = vadd.f32 0.0, %v1724
    %1726 = vmatprep.mubr.bf16.mxu0 0
    %1727 = vmatmul.mubr.bf16.gmra.mrb[0].mxu0 %v367
    %v1728 = vpop.f32.mrb[0].mxu0
    %v1729 = vadd.f32 0.0, %v1728
    %v1730 = vpop.f32.mrb[0].mxu0
    %v1731 = vadd.f32 0.0, %v1730
    %v1732 = vpop.f32.mrb[0].mxu0
    %v1733 = vadd.f32 0.0, %v1732
    %v1734 = vpop.f32.mrb[0].mxu0
    %v1735 = vadd.f32 0.0, %v1734
    %1736 = vmatprep.mubr.bf16.mxu0 0
    %1737 = vmatmul.mubr.bf16.gmra.mrb[0].mxu0 %v368
    %v1738 = vpop.f32.mrb[0].mxu0
    %v1739 = vadd.f32 0.0, %v1738
    %v1740 = vpop.f32.mrb[0].mxu0
    %v1741 = vadd.f32 0.0, %v1740
    %v1742 = vpop.f32.mrb[0].mxu0
    %v1743 = vadd.f32 0.0, %v1742
    %v1744 = vpop.f32.mrb[0].mxu0
    %v1745 = vadd.f32 0.0, %v1744
    %1746 = vmatprep.mubr.bf16.mxu0 0
    %1747 = vmatmul.mubr.bf16.gmra.mrb[0].mxu0 %v369
    %v1748 = vpop.f32.mrb[0].mxu0
    %v1749 = vadd.f32 0.0, %v1748
    %v1750 = vpop.f32.mrb[0].mxu0
    %v1751 = vadd.f32 0.0, %v1750
    %v1752 = vpop.f32.mrb[0].mxu0
    %v1753 = vadd.f32 0.0, %v1752
    %v1754 = vpop.f32.mrb[0].mxu0
    %v1755 = vadd.f32 0.0, %v1754
    %1756 = vmatprep.mubr.bf16.mxu0 0
    %1757 = vmatmul.mubr.bf16.gmra.mrb[0].mxu0 %v370
    %v1758 = vpop.f32.mrb[0].mxu0
    %v1759 = vadd.f32 0.0, %v1758
    %v1760 = vpop.f32.mrb[0].mxu0
    %v1761 = vadd.f32 0.0, %v1760
    %v1762 = vpop.f32.mrb[0].mxu0
    %v1763 = vadd.f32 0.0, %v1762
    %v1764 = vpop.f32.mrb[0].mxu0
    %v1765 = vadd.f32 0.0, %v1764
    %1766 = vmatprep.mubr.bf16.mxu0 0
    %1767 = vmatmul.mubr.bf16.gmra.mrb[0].mxu0 %v371
    %v1768 = vpop.f32.mrb[0].mxu0
    %v1769 = vadd.f32 0.0, %v1768
    %v1770 = vpop.f32.mrb[0].mxu0
    %v1771 = vadd.f32 0.0, %v1770
    %v1772 = vpop.f32.mrb[0].mxu0
    %v1773 = vadd.f32 0.0, %v1772
    %v1774 = vpop.f32.mrb[0].mxu0
    %v1775 = vadd.f32 0.0, %v1774
    %1776 = vmatprep.mubr.bf16.mxu0 0
    %1777 = vmatmul.mubr.bf16.gmra.mrb[0].mxu0 %v372
    %v1778 = vpop.f32.mrb[0].mxu0
    %v1779 = vadd.f32 0.0, %v1778
    %v1780 = vpop.f32.mrb[0].mxu0
    %v1781 = vadd.f32 0.0, %v1780
    %v1782 = vpop.f32.mrb[0].mxu0
    %v1783 = vadd.f32 0.0, %v1782
    %v1784 = vpop.f32.mrb[0].mxu0
    %v1785 = vadd.f32 0.0, %v1784
    %1786 = vmatprep.mubr.bf16.mxu0 0
    %1787 = vmatmul.mubr.bf16.gmra.mrb[0].mxu0 %v373
    %v1788 = vpop.f32.mrb[0].mxu0
    %v1789 = vadd.f32 0.0, %v1788
    %v1790 = vpop.f32.mrb[0].mxu0
    %v1791 = vadd.f32 0.0, %v1790
    %v1792 = vpop.f32.mrb[0].mxu0
    %v1793 = vadd.f32 0.0, %v1792
    %v1794 = vpop.f32.mrb[0].mxu0
    %v1795 = vadd.f32 0.0, %v1794
    %1796 = vmatprep.mubr.bf16.mxu0 0
    %1797 = vmatmul.mubr.bf16.gmra.mrb[0].mxu0 %v374
    %v1798 = vpop.f32.mrb[0].mxu0
    %v1799 = vadd.f32 0.0, %v1798
    %v1800 = vpop.f32.mrb[0].mxu0
    %v1801 = vadd.f32 0.0, %v1800
    %v1802 = vpop.f32.mrb[0].mxu0
    %v1803 = vadd.f32 0.0, %v1802
    %v1804 = vpop.f32.mrb[0].mxu0
    %v1805 = vadd.f32 0.0, %v1804
    %1806 = vmatprep.mubr.bf16.mxu0 0
    %1807 = vmatmul.mubr.bf16.gmra.mrb[0].mxu0 %v375
    %v1808 = vpop.f32.mrb[0].mxu0
    %v1809 = vadd.f32 0.0, %v1808
    %v1810 = vpop.f32.mrb[0].mxu0
    %v1811 = vadd.f32 0.0, %v1810
    %v1812 = vpop.f32.mrb[0].mxu0
    %v1813 = vadd.f32 0.0, %v1812
    %v1814 = vpop.f32.mrb[0].mxu0
    %v1815 = vadd.f32 0.0, %v1814
    %1816 = vmatprep.mubr.bf16.mxu0 0
    %1817 = vmatmul.mubr.bf16.gmra.mrb[0].mxu0 %v376
    %v1818 = vpop.f32.mrb[0].mxu0
    %v1819 = vadd.f32 0.0, %v1818
    %v1820 = vpop.f32.mrb[0].mxu0
    %v1821 = vadd.f32 0.0, %v1820
    %v1822 = vpop.f32.mrb[0].mxu0
    %v1823 = vadd.f32 0.0, %v1822
    %v1824 = vpop.f32.mrb[0].mxu0
    %v1825 = vadd.f32 0.0, %v1824
    %1826 = vmatprep.mubr.bf16.mxu0 0
    %1827 = vmatmul.mubr.bf16.gmra.mrb[0].mxu0 %v377
    %v1828 = vpop.f32.mrb[0].mxu0
    %v1829 = vadd.f32 0.0, %v1828
    %v1830 = vpop.f32.mrb[0].mxu0
    %v1831 = vadd.f32 0.0, %v1830
    %v1832 = vpop.f32.mrb[0].mxu0
    %v1833 = vadd.f32 0.0, %v1832
    %v1834 = vpop.f32.mrb[0].mxu0
    %v1835 = vadd.f32 0.0, %v1834
    %1836 = vdwg.mxu0
    %1837 = vmatprep.subr.bf16.mxu0 %v641
    %1838 = vmatpush1.bf16.msra.mxu0 %v640
    %1839 = vmatprep.subr.bf16.mxu0 %v650
    %1840 = vmatpush1.bf16.msra.mxu0 %v649
    %1841 = vmatprep.subr.bf16.mxu0 %v659
    %1842 = vmatpush1.bf16.msra.mxu0 %v658
    %1843 = vmatprep.subr.bf16.mxu0 %v668
    %1844 = vmatpush1.bf16.msra.mxu0 %v667
    %1845 = vmatprep.subr.bf16.mxu0 %v677
    %1846 = vmatpush1.bf16.msra.mxu0 %v676
    %1847 = vmatprep.subr.bf16.mxu0 %v686
    %1848 = vmatpush1.bf16.msra.mxu0 %v685
    %1849 = vmatprep.subr.bf16.mxu0 %v695
    %1850 = vmatpush1.bf16.msra.mxu0 %v694
    %1851 = vmatprep.subr.bf16.mxu0 %v704
    %1852 = vmatpush1.bf16.msra.mxu0 %v703
    %1853 = vmatprep.subr.bf16.mxu0 0
    %1854 = vmatpush1.bf16.msra.mxu0 0
    %1855 = vmatprep.subr.bf16.mxu0 0
    %1856 = vmatpush1.bf16.msra.mxu0 0
    %1857 = vmatprep.subr.bf16.mxu0 0
    %1858 = vmatpush1.bf16.msra.mxu0 0
    %1859 = vmatprep.subr.bf16.mxu0 0
    %1860 = vmatpush1.bf16.msra.mxu0 0
    %1861 = vmatprep.subr.bf16.mxu0 0
    %1862 = vmatpush1.bf16.msra.mxu0 0
    %1863 = vmatprep.subr.bf16.mxu0 0
    %1864 = vmatpush1.bf16.msra.mxu0 0
    %1865 = vmatprep.subr.bf16.mxu0 0
    %1866 = vmatpush1.bf16.msra.mxu0 0
    %1867 = vmatprep.subr.bf16.mxu0 0
    %1868 = vmatpush1.bf16.msra.mxu0 0
    %1869 = vmatprep.mubr.bf16.mxu0 0
    %1870 = vmatmul.mubr.bf16.gmra.mrb[0].mxu0 %v346
    %v1871 = vpop.f32.mrb[0].mxu0
    %v1872 = vadd.f32 0.0, %v1871
    %v1873 = vpop.f32.mrb[0].mxu0
    %v1874 = vadd.f32 0.0, %v1873
    %v1875 = vpop.f32.mrb[0].mxu0
    %v1876 = vadd.f32 0.0, %v1875
    %v1877 = vpop.f32.mrb[0].mxu0
    %v1878 = vadd.f32 0.0, %v1877
    %1879 = vmatprep.mubr.bf16.mxu0 0
    %1880 = vmatmul.mubr.bf16.gmra.mrb[0].mxu0 %v347
    %v1881 = vpop.f32.mrb[0].mxu0
    %v1882 = vadd.f32 0.0, %v1881
    %v1883 = vpop.f32.mrb[0].mxu0
    %v1884 = vadd.f32 0.0, %v1883
    %v1885 = vpop.f32.mrb[0].mxu0
    %v1886 = vadd.f32 0.0, %v1885
    %v1887 = vpop.f32.mrb[0].mxu0
    %v1888 = vadd.f32 0.0, %v1887
    %1889 = vmatprep.mubr.bf16.mxu0 0
    %1890 = vmatmul.mubr.bf16.gmra.mrb[0].mxu0 %v348
    %v1891 = vpop.f32.mrb[0].mxu0
    %v1892 = vadd.f32 0.0, %v1891
    %v1893 = vpop.f32.mrb[0].mxu0
    %v1894 = vadd.f32 0.0, %v1893
    %v1895 = vpop.f32.mrb[0].mxu0
    %v1896 = vadd.f32 0.0, %v1895
    %v1897 = vpop.f32.mrb[0].mxu0
    %v1898 = vadd.f32 0.0, %v1897
    %1899 = vmatprep.mubr.bf16.mxu0 0
    %1900 = vmatmul.mubr.bf16.gmra.mrb[0].mxu0 %v349
    %v1901 = vpop.f32.mrb[0].mxu0
    %v1902 = vadd.f32 0.0, %v1901
    %v1903 = vpop.f32.mrb[0].mxu0
    %v1904 = vadd.f32 0.0, %v1903
    %v1905 = vpop.f32.mrb[0].mxu0
    %v1906 = vadd.f32 0.0, %v1905
    %v1907 = vpop.f32.mrb[0].mxu0
    %v1908 = vadd.f32 0.0, %v1907
    %1909 = vmatprep.mubr.bf16.mxu0 0
    %1910 = vmatmul.mubr.bf16.gmra.mrb[0].mxu0 %v350
    %v1911 = vpop.f32.mrb[0].mxu0
    %v1912 = vadd.f32 0.0, %v1911
    %v1913 = vpop.f32.mrb[0].mxu0
    %v1914 = vadd.f32 0.0, %v1913
    %v1915 = vpop.f32.mrb[0].mxu0
    %v1916 = vadd.f32 0.0, %v1915
    %v1917 = vpop.f32.mrb[0].mxu0
    %v1918 = vadd.f32 0.0, %v1917
    %1919 = vmatprep.mubr.bf16.mxu0 0
    %1920 = vmatmul.mubr.bf16.gmra.mrb[0].mxu0 %v351
    %v1921 = vpop.f32.mrb[0].mxu0
    %v1922 = vadd.f32 0.0, %v1921
    %v1923 = vpop.f32.mrb[0].mxu0
    %v1924 = vadd.f32 0.0, %v1923
    %v1925 = vpop.f32.mrb[0].mxu0
    %v1926 = vadd.f32 0.0, %v1925
    %v1927 = vpop.f32.mrb[0].mxu0
    %v1928 = vadd.f32 0.0, %v1927
    %1929 = vmatprep.mubr.bf16.mxu0 0
    %1930 = vmatmul.mubr.bf16.gmra.mrb[0].mxu0 %v352
    %v1931 = vpop.f32.mrb[0].mxu0
    %v1932 = vadd.f32 0.0, %v1931
    %v1933 = vpop.f32.mrb[0].mxu0
    %v1934 = vadd.f32 0.0, %v1933
    %v1935 = vpop.f32.mrb[0].mxu0
    %v1936 = vadd.f32 0.0, %v1935
    %v1937 = vpop.f32.mrb[0].mxu0
    %v1938 = vadd.f32 0.0, %v1937
    %1939 = vmatprep.mubr.bf16.mxu0 0
    %1940 = vmatmul.mubr.bf16.gmra.mrb[0].mxu0 %v353
    %v1941 = vpop.f32.mrb[0].mxu0
    %v1942 = vadd.f32 0.0, %v1941
    %v1943 = vpop.f32.mrb[0].mxu0
    %v1944 = vadd.f32 0.0, %v1943
    %v1945 = vpop.f32.mrb[0].mxu0
    %v1946 = vadd.f32 0.0, %v1945
    %v1947 = vpop.f32.mrb[0].mxu0
    %v1948 = vadd.f32 0.0, %v1947
    %1949 = vmatprep.mubr.bf16.mxu0 0
    %1950 = vmatmul.mubr.bf16.gmra.mrb[0].mxu0 %v354
    %v1951 = vpop.f32.mrb[0].mxu0
    %v1952 = vadd.f32 0.0, %v1951
    %v1953 = vpop.f32.mrb[0].mxu0
    %v1954 = vadd.f32 0.0, %v1953
    %v1955 = vpop.f32.mrb[0].mxu0
    %v1956 = vadd.f32 0.0, %v1955
    %v1957 = vpop.f32.mrb[0].mxu0
    %v1958 = vadd.f32 0.0, %v1957
    %1959 = vmatprep.mubr.bf16.mxu0 0
    %1960 = vmatmul.mubr.bf16.gmra.mrb[0].mxu0 %v355
    %v1961 = vpop.f32.mrb[0].mxu0
    %v1962 = vadd.f32 0.0, %v1961
    %v1963 = vpop.f32.mrb[0].mxu0
    %v1964 = vadd.f32 0.0, %v1963
    %v1965 = vpop.f32.mrb[0].mxu0
    %v1966 = vadd.f32 0.0, %v1965
    %v1967 = vpop.f32.mrb[0].mxu0
    %v1968 = vadd.f32 0.0, %v1967
    %1969 = vmatprep.mubr.bf16.mxu0 0
    %1970 = vmatmul.mubr.bf16.gmra.mrb[0].mxu0 %v356
    %v1971 = vpop.f32.mrb[0].mxu0
    %v1972 = vadd.f32 0.0, %v1971
    %v1973 = vpop.f32.mrb[0].mxu0
    %v1974 = vadd.f32 0.0, %v1973
    %v1975 = vpop.f32.mrb[0].mxu0
    %v1976 = vadd.f32 0.0, %v1975
    %v1977 = vpop.f32.mrb[0].mxu0
    %v1978 = vadd.f32 0.0, %v1977
    %1979 = vmatprep.mubr.bf16.mxu0 0
    %1980 = vmatmul.mubr.bf16.gmra.mrb[0].mxu0 %v357
    %v1981 = vpop.f32.mrb[0].mxu0
    %v1982 = vadd.f32 0.0, %v1981
    %v1983 = vpop.f32.mrb[0].mxu0
    %v1984 = vadd.f32 0.0, %v1983
    %v1985 = vpop.f32.mrb[0].mxu0
    %v1986 = vadd.f32 0.0, %v1985
    %v1987 = vpop.f32.mrb[0].mxu0
    %v1988 = vadd.f32 0.0, %v1987
    %1989 = vmatprep.mubr.bf16.mxu0 0
    %1990 = vmatmul.mubr.bf16.gmra.mrb[0].mxu0 %v358
    %v1991 = vpop.f32.mrb[0].mxu0
    %v1992 = vadd.f32 0.0, %v1991
    %v1993 = vpop.f32.mrb[0].mxu0
    %v1994 = vadd.f32 0.0, %v1993
    %v1995 = vpop.f32.mrb[0].mxu0
    %v1996 = vadd.f32 0.0, %v1995
    %v1997 = vpop.f32.mrb[0].mxu0
    %v1998 = vadd.f32 0.0, %v1997
    %1999 = vmatprep.mubr.bf16.mxu0 0
    %2000 = vmatmul.mubr.bf16.gmra.mrb[0].mxu0 %v359
    %v2001 = vpop.f32.mrb[0].mxu0
    %v2002 = vadd.f32 0.0, %v2001
    %v2003 = vpop.f32.mrb[0].mxu0
    %v2004 = vadd.f32 0.0, %v2003
    %v2005 = vpop.f32.mrb[0].mxu0
    %v2006 = vadd.f32 0.0, %v2005
    %v2007 = vpop.f32.mrb[0].mxu0
    %v2008 = vadd.f32 0.0, %v2007
    %2009 = vmatprep.mubr.bf16.mxu0 0
    %2010 = vmatmul.mubr.bf16.gmra.mrb[0].mxu0 %v360
    %v2011 = vpop.f32.mrb[0].mxu0
    %v2012 = vadd.f32 0.0, %v2011
    %v2013 = vpop.f32.mrb[0].mxu0
    %v2014 = vadd.f32 0.0, %v2013
    %v2015 = vpop.f32.mrb[0].mxu0
    %v2016 = vadd.f32 0.0, %v2015
    %v2017 = vpop.f32.mrb[0].mxu0
    %v2018 = vadd.f32 0.0, %v2017
    %2019 = vmatprep.mubr.bf16.mxu0 0
    %2020 = vmatmul.mubr.bf16.gmra.mrb[0].mxu0 %v361
    %v2021 = vpop.f32.mrb[0].mxu0
    %v2022 = vadd.f32 0.0, %v2021
    %v2023 = vpop.f32.mrb[0].mxu0
    %v2024 = vadd.f32 0.0, %v2023
    %v2025 = vpop.f32.mrb[0].mxu0
    %v2026 = vadd.f32 0.0, %v2025
    %v2027 = vpop.f32.mrb[0].mxu0
    %v2028 = vadd.f32 0.0, %v2027
    %2029 = vmatprep.mubr.bf16.mxu0 0
    %2030 = vmatmul.mubr.bf16.gmra.mrb[0].mxu0 %v362
    %v2031 = vpop.f32.mrb[0].mxu0
    %v2032 = vadd.f32 0.0, %v2031
    %v2033 = vpop.f32.mrb[0].mxu0
    %v2034 = vadd.f32 0.0, %v2033
    %v2035 = vpop.f32.mrb[0].mxu0
    %v2036 = vadd.f32 0.0, %v2035
    %v2037 = vpop.f32.mrb[0].mxu0
    %v2038 = vadd.f32 0.0, %v2037
    %2039 = vmatprep.mubr.bf16.mxu0 0
    %2040 = vmatmul.mubr.bf16.gmra.mrb[0].mxu0 %v363
    %v2041 = vpop.f32.mrb[0].mxu0
    %v2042 = vadd.f32 0.0, %v2041
    %v2043 = vpop.f32.mrb[0].mxu0
    %v2044 = vadd.f32 0.0, %v2043
    %v2045 = vpop.f32.mrb[0].mxu0
    %v2046 = vadd.f32 0.0, %v2045
    %v2047 = vpop.f32.mrb[0].mxu0
    %v2048 = vadd.f32 0.0, %v2047
    %2049 = vmatprep.mubr.bf16.mxu0 0
    %2050 = vmatmul.mubr.bf16.gmra.mrb[0].mxu0 %v364
    %v2051 = vpop.f32.mrb[0].mxu0
    %v2052 = vadd.f32 0.0, %v2051
    %v2053 = vpop.f32.mrb[0].mxu0
    %v2054 = vadd.f32 0.0, %v2053
    %v2055 = vpop.f32.mrb[0].mxu0
    %v2056 = vadd.f32 0.0, %v2055
    %v2057 = vpop.f32.mrb[0].mxu0
    %v2058 = vadd.f32 0.0, %v2057
    %2059 = vmatprep.mubr.bf16.mxu0 0
    %2060 = vmatmul.mubr.bf16.gmra.mrb[0].mxu0 %v365
    %v2061 = vpop.f32.mrb[0].mxu0
    %v2062 = vadd.f32 0.0, %v2061
    %v2063 = vpop.f32.mrb[0].mxu0
    %v2064 = vadd.f32 0.0, %v2063
    %v2065 = vpop.f32.mrb[0].mxu0
    %v2066 = vadd.f32 0.0, %v2065
    %v2067 = vpop.f32.mrb[0].mxu0
    %v2068 = vadd.f32 0.0, %v2067
    %2069 = vmatprep.mubr.bf16.mxu0 0
    %2070 = vmatmul.mubr.bf16.gmra.mrb[0].mxu0 %v366
    %v2071 = vpop.f32.mrb[0].mxu0
    %v2072 = vadd.f32 0.0, %v2071
    %v2073 = vpop.f32.mrb[0].mxu0
    %v2074 = vadd.f32 0.0, %v2073
    %v2075 = vpop.f32.mrb[0].mxu0
    %v2076 = vadd.f32 0.0, %v2075
    %v2077 = vpop.f32.mrb[0].mxu0
    %v2078 = vadd.f32 0.0, %v2077
    %2079 = vmatprep.mubr.bf16.mxu0 0
    %2080 = vmatmul.mubr.bf16.gmra.mrb[0].mxu0 %v367
    %v2081 = vpop.f32.mrb[0].mxu0
    %v2082 = vadd.f32 0.0, %v2081
    %v2083 = vpop.f32.mrb[0].mxu0
    %v2084 = vadd.f32 0.0, %v2083
    %v2085 = vpop.f32.mrb[0].mxu0
    %v2086 = vadd.f32 0.0, %v2085
    %v2087 = vpop.f32.mrb[0].mxu0
    %v2088 = vadd.f32 0.0, %v2087
    %2089 = vmatprep.mubr.bf16.mxu0 0
    %2090 = vmatmul.mubr.bf16.gmra.mrb[0].mxu0 %v368
    %v2091 = vpop.f32.mrb[0].mxu0
    %v2092 = vadd.f32 0.0, %v2091
    %v2093 = vpop.f32.mrb[0].mxu0
    %v2094 = vadd.f32 0.0, %v2093
    %v2095 = vpop.f32.mrb[0].mxu0
    %v2096 = vadd.f32 0.0, %v2095
    %v2097 = vpop.f32.mrb[0].mxu0
    %v2098 = vadd.f32 0.0, %v2097
    %2099 = vmatprep.mubr.bf16.mxu0 0
    %2100 = vmatmul.mubr.bf16.gmra.mrb[0].mxu0 %v369
    %v2101 = vpop.f32.mrb[0].mxu0
    %v2102 = vadd.f32 0.0, %v2101
    %v2103 = vpop.f32.mrb[0].mxu0
    %v2104 = vadd.f32 0.0, %v2103
    %v2105 = vpop.f32.mrb[0].mxu0
    %v2106 = vadd.f32 0.0, %v2105
    %v2107 = vpop.f32.mrb[0].mxu0
    %v2108 = vadd.f32 0.0, %v2107
    %2109 = vmatprep.mubr.bf16.mxu0 0
    %2110 = vmatmul.mubr.bf16.gmra.mrb[0].mxu0 %v370
    %v2111 = vpop.f32.mrb[0].mxu0
    %v2112 = vadd.f32 0.0, %v2111
    %v2113 = vpop.f32.mrb[0].mxu0
    %v2114 = vadd.f32 0.0, %v2113
    %v2115 = vpop.f32.mrb[0].mxu0
    %v2116 = vadd.f32 0.0, %v2115
    %v2117 = vpop.f32.mrb[0].mxu0
    %v2118 = vadd.f32 0.0, %v2117
    %2119 = vmatprep.mubr.bf16.mxu0 0
    %2120 = vmatmul.mubr.bf16.gmra.mrb[0].mxu0 %v371
    %v2121 = vpop.f32.mrb[0].mxu0
    %v2122 = vadd.f32 0.0, %v2121
    %v2123 = vpop.f32.mrb[0].mxu0
    %v2124 = vadd.f32 0.0, %v2123
    %v2125 = vpop.f32.mrb[0].mxu0
    %v2126 = vadd.f32 0.0, %v2125
    %v2127 = vpop.f32.mrb[0].mxu0
    %v2128 = vadd.f32 0.0, %v2127
    %2129 = vmatprep.mubr.bf16.mxu0 0
    %2130 = vmatmul.mubr.bf16.gmra.mrb[0].mxu0 %v372
    %v2131 = vpop.f32.mrb[0].mxu0
    %v2132 = vadd.f32 0.0, %v2131
    %v2133 = vpop.f32.mrb[0].mxu0
    %v2134 = vadd.f32 0.0, %v2133
    %v2135 = vpop.f32.mrb[0].mxu0
    %v2136 = vadd.f32 0.0, %v2135
    %v2137 = vpop.f32.mrb[0].mxu0
    %v2138 = vadd.f32 0.0, %v2137
    %2139 = vmatprep.mubr.bf16.mxu0 0
    %2140 = vmatmul.mubr.bf16.gmra.mrb[0].mxu0 %v373
    %v2141 = vpop.f32.mrb[0].mxu0
    %v2142 = vadd.f32 0.0, %v2141
    %v2143 = vpop.f32.mrb[0].mxu0
    %v2144 = vadd.f32 0.0, %v2143
    %v2145 = vpop.f32.mrb[0].mxu0
    %v2146 = vadd.f32 0.0, %v2145
    %v2147 = vpop.f32.mrb[0].mxu0
    %v2148 = vadd.f32 0.0, %v2147
    %2149 = vmatprep.mubr.bf16.mxu0 0
    %2150 = vmatmul.mubr.bf16.gmra.mrb[0].mxu0 %v374
    %v2151 = vpop.f32.mrb[0].mxu0
    %v2152 = vadd.f32 0.0, %v2151
    %v2153 = vpop.f32.mrb[0].mxu0
    %v2154 = vadd.f32 0.0, %v2153
    %v2155 = vpop.f32.mrb[0].mxu0
    %v2156 = vadd.f32 0.0, %v2155
    %v2157 = vpop.f32.mrb[0].mxu0
    %v2158 = vadd.f32 0.0, %v2157
    %2159 = vmatprep.mubr.bf16.mxu0 0
    %2160 = vmatmul.mubr.bf16.gmra.mrb[0].mxu0 %v375
    %v2161 = vpop.f32.mrb[0].mxu0
    %v2162 = vadd.f32 0.0, %v2161
    %v2163 = vpop.f32.mrb[0].mxu0
    %v2164 = vadd.f32 0.0, %v2163
    %v2165 = vpop.f32.mrb[0].mxu0
    %v2166 = vadd.f32 0.0, %v2165
    %v2167 = vpop.f32.mrb[0].mxu0
    %v2168 = vadd.f32 0.0, %v2167
    %2169 = vmatprep.mubr.bf16.mxu0 0
    %2170 = vmatmul.mubr.bf16.gmra.mrb[0].mxu0 %v376
    %v2171 = vpop.f32.mrb[0].mxu0
    %v2172 = vadd.f32 0.0, %v2171
    %v2173 = vpop.f32.mrb[0].mxu0
    %v2174 = vadd.f32 0.0, %v2173
    %v2175 = vpop.f32.mrb[0].mxu0
    %v2176 = vadd.f32 0.0, %v2175
    %v2177 = vpop.f32.mrb[0].mxu0
    %v2178 = vadd.f32 0.0, %v2177
    %2179 = vmatprep.mubr.bf16.mxu0 0
    %2180 = vmatmul.mubr.bf16.gmra.mrb[0].mxu0 %v377
    %v2181 = vpop.f32.mrb[0].mxu0
    %v2182 = vadd.f32 0.0, %v2181
    %v2183 = vpop.f32.mrb[0].mxu0
    %v2184 = vadd.f32 0.0, %v2183
    %v2185 = vpop.f32.mrb[0].mxu0
    %v2186 = vadd.f32 0.0, %v2185
    %v2187 = vpop.f32.mrb[0].mxu0
    %v2188 = vadd.f32 0.0, %v2187
    %2189 = vdwg.mxu0
    %2190 = vmatprep.subr.bf16.mxu0 0
    %2191 = vmatpush1.bf16.msra.mxu0 %v642
    %2192 = vmatprep.subr.bf16.mxu0 0
    %2193 = vmatpush1.bf16.msra.mxu0 %v651
    %2194 = vmatprep.subr.bf16.mxu0 0
    %2195 = vmatpush1.bf16.msra.mxu0 %v660
    %2196 = vmatprep.subr.bf16.mxu0 0
    %2197 = vmatpush1.bf16.msra.mxu0 %v669
    %2198 = vmatprep.subr.bf16.mxu0 0
    %2199 = vmatpush1.bf16.msra.mxu0 %v678
    %2200 = vmatprep.subr.bf16.mxu0 0
    %2201 = vmatpush1.bf16.msra.mxu0 %v687
    %2202 = vmatprep.subr.bf16.mxu0 0
    %2203 = vmatpush1.bf16.msra.mxu0 %v696
    %2204 = vmatprep.subr.bf16.mxu0 0
    %2205 = vmatpush1.bf16.msra.mxu0 %v705
    %2206 = vmatprep.subr.bf16.mxu0 0
    %2207 = vmatpush1.bf16.msra.mxu0 0
    %2208 = vmatprep.subr.bf16.mxu0 0
    %2209 = vmatpush1.bf16.msra.mxu0 0
    %2210 = vmatprep.subr.bf16.mxu0 0
    %2211 = vmatpush1.bf16.msra.mxu0 0
    %2212 = vmatprep.subr.bf16.mxu0 0
    %2213 = vmatpush1.bf16.msra.mxu0 0
    %2214 = vmatprep.subr.bf16.mxu0 0
    %2215 = vmatpush1.bf16.msra.mxu0 0
    %2216 = vmatprep.subr.bf16.mxu0 0
    %2217 = vmatpush1.bf16.msra.mxu0 0
    %2218 = vmatprep.subr.bf16.mxu0 0
    %2219 = vmatpush1.bf16.msra.mxu0 0
    %2220 = vmatprep.subr.bf16.mxu0 0
    %2221 = vmatpush1.bf16.msra.mxu0 0
    %2222 = vmatprep.mubr.bf16.mxu0 0
    %2223 = vmatmul.mubr.bf16.gmra.mrb[0].mxu0 %v346
    %v2224 = vpop.f32.mrb[0].mxu0
    %v2225 = vadd.f32 0.0, %v2224
    %v2226 = vpop.f32.mrb[0].mxu0
    %v2227 = vpop.f32.mrb[0].mxu0
    %v2228 = vadd.f32 0.0, %v2227
    %v2229 = vpop.f32.mrb[0].mxu0
    %2230 = vmatprep.mubr.bf16.mxu0 0
    %2231 = vmatmul.mubr.bf16.gmra.mrb[0].mxu0 %v347
    %v2232 = vpop.f32.mrb[0].mxu0
    %v2233 = vadd.f32 0.0, %v2232
    %v2234 = vpop.f32.mrb[0].mxu0
    %v2235 = vpop.f32.mrb[0].mxu0
    %v2236 = vadd.f32 0.0, %v2235
    %v2237 = vpop.f32.mrb[0].mxu0
    %2238 = vmatprep.mubr.bf16.mxu0 0
    %2239 = vmatmul.mubr.bf16.gmra.mrb[0].mxu0 %v348
    %v2240 = vpop.f32.mrb[0].mxu0
    %v2241 = vadd.f32 0.0, %v2240
    %v2242 = vpop.f32.mrb[0].mxu0
    %v2243 = vpop.f32.mrb[0].mxu0
    %v2244 = vadd.f32 0.0, %v2243
    %v2245 = vpop.f32.mrb[0].mxu0
    %2246 = vmatprep.mubr.bf16.mxu0 0
    %2247 = vmatmul.mubr.bf16.gmra.mrb[0].mxu0 %v349
    %v2248 = vpop.f32.mrb[0].mxu0
    %v2249 = vadd.f32 0.0, %v2248
    %v2250 = vpop.f32.mrb[0].mxu0
    %v2251 = vpop.f32.mrb[0].mxu0
    %v2252 = vadd.f32 0.0, %v2251
    %v2253 = vpop.f32.mrb[0].mxu0
    %2254 = vmatprep.mubr.bf16.mxu0 0
    %2255 = vmatmul.mubr.bf16.gmra.mrb[0].mxu0 %v350
    %v2256 = vpop.f32.mrb[0].mxu0
    %v2257 = vadd.f32 0.0, %v2256
    %v2258 = vpop.f32.mrb[0].mxu0
    %v2259 = vpop.f32.mrb[0].mxu0
    %v2260 = vadd.f32 0.0, %v2259
    %v2261 = vpop.f32.mrb[0].mxu0
    %2262 = vmatprep.mubr.bf16.mxu0 0
    %2263 = vmatmul.mubr.bf16.gmra.mrb[0].mxu0 %v351
    %v2264 = vpop.f32.mrb[0].mxu0
    %v2265 = vadd.f32 0.0, %v2264
    %v2266 = vpop.f32.mrb[0].mxu0
    %v2267 = vpop.f32.mrb[0].mxu0
    %v2268 = vadd.f32 0.0, %v2267
    %v2269 = vpop.f32.mrb[0].mxu0
    %2270 = vmatprep.mubr.bf16.mxu0 0
    %2271 = vmatmul.mubr.bf16.gmra.mrb[0].mxu0 %v352
    %v2272 = vpop.f32.mrb[0].mxu0
    %v2273 = vadd.f32 0.0, %v2272
    %v2274 = vpop.f32.mrb[0].mxu0
    %v2275 = vpop.f32.mrb[0].mxu0
    %v2276 = vadd.f32 0.0, %v2275
    %v2277 = vpop.f32.mrb[0].mxu0
    %2278 = vmatprep.mubr.bf16.mxu0 0
    %2279 = vmatmul.mubr.bf16.gmra.mrb[0].mxu0 %v353
    %v2280 = vpop.f32.mrb[0].mxu0
    %v2281 = vadd.f32 0.0, %v2280
    %v2282 = vpop.f32.mrb[0].mxu0
    %v2283 = vpop.f32.mrb[0].mxu0
    %v2284 = vadd.f32 0.0, %v2283
    %v2285 = vpop.f32.mrb[0].mxu0
    %2286 = vmatprep.mubr.bf16.mxu0 0
    %2287 = vmatmul.mubr.bf16.gmra.mrb[0].mxu0 %v354
    %v2288 = vpop.f32.mrb[0].mxu0
    %v2289 = vadd.f32 0.0, %v2288
    %v2290 = vpop.f32.mrb[0].mxu0
    %v2291 = vpop.f32.mrb[0].mxu0
    %v2292 = vadd.f32 0.0, %v2291
    %v2293 = vpop.f32.mrb[0].mxu0
    %2294 = vmatprep.mubr.bf16.mxu0 0
    %2295 = vmatmul.mubr.bf16.gmra.mrb[0].mxu0 %v355
    %v2296 = vpop.f32.mrb[0].mxu0
    %v2297 = vadd.f32 0.0, %v2296
    %v2298 = vpop.f32.mrb[0].mxu0
    %v2299 = vpop.f32.mrb[0].mxu0
    %v2300 = vadd.f32 0.0, %v2299
    %v2301 = vpop.f32.mrb[0].mxu0
    %2302 = vmatprep.mubr.bf16.mxu0 0
    %2303 = vmatmul.mubr.bf16.gmra.mrb[0].mxu0 %v356
    %v2304 = vpop.f32.mrb[0].mxu0
    %v2305 = vadd.f32 0.0, %v2304
    %v2306 = vpop.f32.mrb[0].mxu0
    %v2307 = vpop.f32.mrb[0].mxu0
    %v2308 = vadd.f32 0.0, %v2307
    %v2309 = vpop.f32.mrb[0].mxu0
    %2310 = vmatprep.mubr.bf16.mxu0 0
    %2311 = vmatmul.mubr.bf16.gmra.mrb[0].mxu0 %v357
    %v2312 = vpop.f32.mrb[0].mxu0
    %v2313 = vadd.f32 0.0, %v2312
    %v2314 = vpop.f32.mrb[0].mxu0
    %v2315 = vpop.f32.mrb[0].mxu0
    %v2316 = vadd.f32 0.0, %v2315
    %v2317 = vpop.f32.mrb[0].mxu0
    %2318 = vmatprep.mubr.bf16.mxu0 0
    %2319 = vmatmul.mubr.bf16.gmra.mrb[0].mxu0 %v358
    %v2320 = vpop.f32.mrb[0].mxu0
    %v2321 = vadd.f32 0.0, %v2320
    %v2322 = vpop.f32.mrb[0].mxu0
    %v2323 = vpop.f32.mrb[0].mxu0
    %v2324 = vadd.f32 0.0, %v2323
    %v2325 = vpop.f32.mrb[0].mxu0
    %2326 = vmatprep.mubr.bf16.mxu0 0
    %2327 = vmatmul.mubr.bf16.gmra.mrb[0].mxu0 %v359
    %v2328 = vpop.f32.mrb[0].mxu0
    %v2329 = vadd.f32 0.0, %v2328
    %v2330 = vpop.f32.mrb[0].mxu0
    %v2331 = vpop.f32.mrb[0].mxu0
    %v2332 = vadd.f32 0.0, %v2331
    %v2333 = vpop.f32.mrb[0].mxu0
    %2334 = vmatprep.mubr.bf16.mxu0 0
    %2335 = vmatmul.mubr.bf16.gmra.mrb[0].mxu0 %v360
    %v2336 = vpop.f32.mrb[0].mxu0
    %v2337 = vadd.f32 0.0, %v2336
    %v2338 = vpop.f32.mrb[0].mxu0
    %v2339 = vpop.f32.mrb[0].mxu0
    %v2340 = vadd.f32 0.0, %v2339
    %v2341 = vpop.f32.mrb[0].mxu0
    %2342 = vmatprep.mubr.bf16.mxu0 0
    %2343 = vmatmul.mubr.bf16.gmra.mrb[0].mxu0 %v361
    %v2344 = vpop.f32.mrb[0].mxu0
    %v2345 = vadd.f32 0.0, %v2344
    %v2346 = vpop.f32.mrb[0].mxu0
    %v2347 = vpop.f32.mrb[0].mxu0
    %v2348 = vadd.f32 0.0, %v2347
    %v2349 = vpop.f32.mrb[0].mxu0
    %2350 = vmatprep.mubr.bf16.mxu0 0
    %2351 = vmatmul.mubr.bf16.gmra.mrb[0].mxu0 %v362
    %v2352 = vpop.f32.mrb[0].mxu0
    %v2353 = vadd.f32 0.0, %v2352
    %v2354 = vpop.f32.mrb[0].mxu0
    %v2355 = vpop.f32.mrb[0].mxu0
    %v2356 = vadd.f32 0.0, %v2355
    %v2357 = vpop.f32.mrb[0].mxu0
    %2358 = vmatprep.mubr.bf16.mxu0 0
    %2359 = vmatmul.mubr.bf16.gmra.mrb[0].mxu0 %v363
    %v2360 = vpop.f32.mrb[0].mxu0
    %v2361 = vadd.f32 0.0, %v2360
    %v2362 = vpop.f32.mrb[0].mxu0
    %v2363 = vpop.f32.mrb[0].mxu0
    %v2364 = vadd.f32 0.0, %v2363
    %v2365 = vpop.f32.mrb[0].mxu0
    %2366 = vmatprep.mubr.bf16.mxu0 0
    %2367 = vmatmul.mubr.bf16.gmra.mrb[0].mxu0 %v364
    %v2368 = vpop.f32.mrb[0].mxu0
    %v2369 = vadd.f32 0.0, %v2368
    %v2370 = vpop.f32.mrb[0].mxu0
    %v2371 = vpop.f32.mrb[0].mxu0
    %v2372 = vadd.f32 0.0, %v2371
    %v2373 = vpop.f32.mrb[0].mxu0
    %2374 = vmatprep.mubr.bf16.mxu0 0
    %2375 = vmatmul.mubr.bf16.gmra.mrb[0].mxu0 %v365
    %v2376 = vpop.f32.mrb[0].mxu0
    %v2377 = vadd.f32 0.0, %v2376
    %v2378 = vpop.f32.mrb[0].mxu0
    %v2379 = vpop.f32.mrb[0].mxu0
    %v2380 = vadd.f32 0.0, %v2379
    %v2381 = vpop.f32.mrb[0].mxu0
    %2382 = vmatprep.mubr.bf16.mxu0 0
    %2383 = vmatmul.mubr.bf16.gmra.mrb[0].mxu0 %v366
    %v2384 = vpop.f32.mrb[0].mxu0
    %v2385 = vadd.f32 0.0, %v2384
    %v2386 = vpop.f32.mrb[0].mxu0
    %v2387 = vpop.f32.mrb[0].mxu0
    %v2388 = vadd.f32 0.0, %v2387
    %v2389 = vpop.f32.mrb[0].mxu0
    %2390 = vmatprep.mubr.bf16.mxu0 0
    %2391 = vmatmul.mubr.bf16.gmra.mrb[0].mxu0 %v367
    %v2392 = vpop.f32.mrb[0].mxu0
    %v2393 = vadd.f32 0.0, %v2392
    %v2394 = vpop.f32.mrb[0].mxu0
    %v2395 = vpop.f32.mrb[0].mxu0
    %v2396 = vadd.f32 0.0, %v2395
    %v2397 = vpop.f32.mrb[0].mxu0
    %2398 = vmatprep.mubr.bf16.mxu0 0
    %2399 = vmatmul.mubr.bf16.gmra.mrb[0].mxu0 %v368
    %v2400 = vpop.f32.mrb[0].mxu0
    %v2401 = vadd.f32 0.0, %v2400
    %v2402 = vpop.f32.mrb[0].mxu0
    %v2403 = vpop.f32.mrb[0].mxu0
    %v2404 = vadd.f32 0.0, %v2403
    %v2405 = vpop.f32.mrb[0].mxu0
    %2406 = vmatprep.mubr.bf16.mxu0 0
    %2407 = vmatmul.mubr.bf16.gmra.mrb[0].mxu0 %v369
    %v2408 = vpop.f32.mrb[0].mxu0
    %v2409 = vadd.f32 0.0, %v2408
    %v2410 = vpop.f32.mrb[0].mxu0
    %v2411 = vpop.f32.mrb[0].mxu0
    %v2412 = vadd.f32 0.0, %v2411
    %v2413 = vpop.f32.mrb[0].mxu0
    %2414 = vmatprep.mubr.bf16.mxu0 0
    %2415 = vmatmul.mubr.bf16.gmra.mrb[0].mxu0 %v370
    %v2416 = vpop.f32.mrb[0].mxu0
    %v2417 = vadd.f32 0.0, %v2416
    %v2418 = vpop.f32.mrb[0].mxu0
    %v2419 = vpop.f32.mrb[0].mxu0
    %v2420 = vadd.f32 0.0, %v2419
    %v2421 = vpop.f32.mrb[0].mxu0
    %2422 = vmatprep.mubr.bf16.mxu0 0
    %2423 = vmatmul.mubr.bf16.gmra.mrb[0].mxu0 %v371
    %v2424 = vpop.f32.mrb[0].mxu0
    %v2425 = vadd.f32 0.0, %v2424
    %v2426 = vpop.f32.mrb[0].mxu0
    %v2427 = vpop.f32.mrb[0].mxu0
    %v2428 = vadd.f32 0.0, %v2427
    %v2429 = vpop.f32.mrb[0].mxu0
    %2430 = vmatprep.mubr.bf16.mxu0 0
    %2431 = vmatmul.mubr.bf16.gmra.mrb[0].mxu0 %v372
    %v2432 = vpop.f32.mrb[0].mxu0
    %v2433 = vadd.f32 0.0, %v2432
    %v2434 = vpop.f32.mrb[0].mxu0
    %v2435 = vpop.f32.mrb[0].mxu0
    %v2436 = vadd.f32 0.0, %v2435
    %v2437 = vpop.f32.mrb[0].mxu0
    %2438 = vmatprep.mubr.bf16.mxu0 0
    %2439 = vmatmul.mubr.bf16.gmra.mrb[0].mxu0 %v373
    %v2440 = vpop.f32.mrb[0].mxu0
    %v2441 = vadd.f32 0.0, %v2440
    %v2442 = vpop.f32.mrb[0].mxu0
    %v2443 = vpop.f32.mrb[0].mxu0
    %v2444 = vadd.f32 0.0, %v2443
    %v2445 = vpop.f32.mrb[0].mxu0
    %2446 = vmatprep.mubr.bf16.mxu0 0
    %2447 = vmatmul.mubr.bf16.gmra.mrb[0].mxu0 %v374
    %v2448 = vpop.f32.mrb[0].mxu0
    %v2449 = vadd.f32 0.0, %v2448
    %v2450 = vpop.f32.mrb[0].mxu0
    %v2451 = vpop.f32.mrb[0].mxu0
    %v2452 = vadd.f32 0.0, %v2451
    %v2453 = vpop.f32.mrb[0].mxu0
    %2454 = vmatprep.mubr.bf16.mxu0 0
    %2455 = vmatmul.mubr.bf16.gmra.mrb[0].mxu0 %v375
    %v2456 = vpop.f32.mrb[0].mxu0
    %v2457 = vadd.f32 0.0, %v2456
    %v2458 = vpop.f32.mrb[0].mxu0
    %v2459 = vpop.f32.mrb[0].mxu0
    %v2460 = vadd.f32 0.0, %v2459
    %v2461 = vpop.f32.mrb[0].mxu0
    %2462 = vmatprep.mubr.bf16.mxu0 0
    %2463 = vmatmul.mubr.bf16.gmra.mrb[0].mxu0 %v376
    %v2464 = vpop.f32.mrb[0].mxu0
    %v2465 = vadd.f32 0.0, %v2464
    %v2466 = vpop.f32.mrb[0].mxu0
    %v2467 = vpop.f32.mrb[0].mxu0
    %v2468 = vadd.f32 0.0, %v2467
    %v2469 = vpop.f32.mrb[0].mxu0
    %2470 = vmatprep.mubr.bf16.mxu0 0
    %2471 = vmatmul.mubr.bf16.gmra.mrb[0].mxu0 %v377
    %v2472 = vpop.f32.mrb[0].mxu0
    %v2473 = vadd.f32 0.0, %v2472
    %v2474 = vpop.f32.mrb[0].mxu0
    %v2475 = vpop.f32.mrb[0].mxu0
    %v2476 = vadd.f32 0.0, %v2475
    %v2477 = vpop.f32.mrb[0].mxu0
    %2478 = vdwg.mxu0
    %v2479 = vld [vmem:[%s1] sm:$0xff]
    %v2480 = vld [vmem:[%s1 + $0x8] sm:$0xff]
    %v2481 = vld [vmem:[%s1 + $0x10] sm:$0xff]
    %v2482 = vld [vmem:[%s1 + $0x18] sm:$0xff]
    %v2483 = vld [vmem:[%s1 + $0x20] sm:$0xff]
    %v2484 = vld [vmem:[%s1 + $0x28] sm:$0xff]
    %v2485 = vld [vmem:[%s1 + $0x30] sm:$0xff]
    %v2486 = vld [vmem:[%s1 + $0x38] sm:$0xff]
    %v2487 = vld [vmem:[%s1 + $0x40] sm:$0xff]
    %v2488 = vld [vmem:[%s1 + $0x48] sm:$0xff]
    %v2489 = vld [vmem:[%s1 + $0x50] sm:$0xff]
    %v2490 = vld [vmem:[%s1 + $0x58] sm:$0xff]
    %v2491 = vld [vmem:[%s1 + $0x60] sm:$0xff]
    %v2492 = vld [vmem:[%s1 + $0x68] sm:$0xff]
    %v2493 = vld [vmem:[%s1 + $0x70] sm:$0xff]
    %v2494 = vld [vmem:[%s1 + $0x78] sm:$0xff]
    %v2495 = vld [vmem:[%s1 + $0x80] sm:$0xff]
    %v2496 = vld [vmem:[%s1 + $0x88] sm:$0xff]
    %v2497 = vld [vmem:[%s1 + $0x90] sm:$0xff]
    %v2498 = vld [vmem:[%s1 + $0x98] sm:$0xff]
    %v2499 = vld [vmem:[%s1 + $0xa0] sm:$0xff]
    %v2500 = vld [vmem:[%s1 + $0xa8] sm:$0xff]
    %v2501 = vld [vmem:[%s1 + $0xb0] sm:$0xff]
    %v2502 = vld [vmem:[%s1 + $0xb8] sm:$0xff]
    %v2503 = vld [vmem:[%s1 + $0xc0] sm:$0xff]
    %v2504 = vld [vmem:[%s1 + $0xc8] sm:$0xff]
    %v2505 = vld [vmem:[%s1 + $0xd0] sm:$0xff]
    %v2506 = vld [vmem:[%s1 + $0xd8] sm:$0xff]
    %v2507 = vld [vmem:[%s1 + $0xe0] sm:$0xff]
    %v2508 = vld [vmem:[%s1 + $0xe8] sm:$0xff]
    %v2509 = vld [vmem:[%s1 + $0xf0] sm:$0xff]
    %v2510 = vld [vmem:[%s1 + $0xf8] sm:$0xff]
    %v2511 = vld [vmem:[%s1 + $0x100] sm:$0xff]
    %v2512 = vld [vmem:[%s1 + $0x108] sm:$0xff]
    %v2513 = vld [vmem:[%s1 + $0x110] sm:$0xff]
    %v2514 = vld [vmem:[%s1 + $0x118] sm:$0xff]
    %v2515 = vld [vmem:[%s1 + $0x120] sm:$0xff]
    %v2516 = vld [vmem:[%s1 + $0x128] sm:$0xff]
    %v2517 = vld [vmem:[%s1 + $0x130] sm:$0xff]
    %v2518 = vld [vmem:[%s1 + $0x138] sm:$0xff]
    %v2519 = vld [vmem:[%s1 + $0x140] sm:$0xff]
    %v2520 = vld [vmem:[%s1 + $0x148] sm:$0xff]
    %v2521 = vld [vmem:[%s1 + $0x150] sm:$0xff]
    %v2522 = vld [vmem:[%s1 + $0x158] sm:$0xff]
    %v2523 = vld [vmem:[%s1 + $0x160] sm:$0xff]
    %v2524 = vld [vmem:[%s1 + $0x168] sm:$0xff]
    %v2525 = vld [vmem:[%s1 + $0x170] sm:$0xff]
    %v2526 = vld [vmem:[%s1 + $0x178] sm:$0xff]
    %v2527 = vld [vmem:[%s1 + $0x180] sm:$0xff]
    %v2528 = vld [vmem:[%s1 + $0x188] sm:$0xff]
    %v2529 = vld [vmem:[%s1 + $0x190] sm:$0xff]
    %v2530 = vld [vmem:[%s1 + $0x198] sm:$0xff]
    %v2531 = vld [vmem:[%s1 + $0x1a0] sm:$0xff]
    %v2532 = vld [vmem:[%s1 + $0x1a8] sm:$0xff]
    %v2533 = vld [vmem:[%s1 + $0x1b0] sm:$0xff]
    %v2534 = vld [vmem:[%s1 + $0x1b8] sm:$0xff]
    %v2535 = vld [vmem:[%s1 + $0x1c0] sm:$0xff]
    %v2536 = vld [vmem:[%s1 + $0x1c8] sm:$0xff]
    %v2537 = vld [vmem:[%s1 + $0x1d0] sm:$0xff]
    %v2538 = vld [vmem:[%s1 + $0x1d8] sm:$0xff]
    %v2539 = vld [vmem:[%s1 + $0x1e0] sm:$0xff]
    %v2540 = vld [vmem:[%s1 + $0x1e8] sm:$0xff]
    %v2541 = vld [vmem:[%s1 + $0x1f0] sm:$0xff]
    %v2542 = vld [vmem:[%s1 + $0x1f8] sm:$0xff]
    %2544 = vset.pattern.permute.xlu0 0
    %2545 = vperm.xlu0 %2544, %v2479
    %v2546 = vpop.permute.xlu0 %2545
    %2549 = vset.pattern.permute.xlu0 0
    %2550 = vperm.xlu0 %2549, %v2480
    %v2551 = vpop.permute.xlu0 %2550
    %2554 = vset.pattern.permute.xlu0 0
    %2555 = vperm.xlu0 %2554, %v2481
    %v2556 = vpop.permute.xlu0 %2555
    %2559 = vset.pattern.permute.xlu0 0
    %2560 = vperm.xlu0 %2559, %v2482
    %v2561 = vpop.permute.xlu0 %2560
    %2564 = vset.pattern.permute.xlu0 0
    %2565 = vperm.xlu0 %2564, %v2483
    %v2566 = vpop.permute.xlu0 %2565
    %2569 = vset.pattern.permute.xlu0 0
    %2570 = vperm.xlu0 %2569, %v2484
    %v2571 = vpop.permute.xlu0 %2570
    %2574 = vset.pattern.permute.xlu0 0
    %2575 = vperm.xlu0 %2574, %v2485
    %v2576 = vpop.permute.xlu0 %2575
    %2579 = vset.pattern.permute.xlu0 0
    %2580 = vperm.xlu0 %2579, %v2486
    %v2581 = vpop.permute.xlu0 %2580
    %2584 = vset.pattern.permute.xlu0 0
    %2585 = vperm.xlu0 %2584, %v2487
    %v2586 = vpop.permute.xlu0 %2585
    %2589 = vset.pattern.permute.xlu0 0
    %2590 = vperm.xlu0 %2589, %v2488
    %v2591 = vpop.permute.xlu0 %2590
    %2594 = vset.pattern.permute.xlu0 0
    %2595 = vperm.xlu0 %2594, %v2489
    %v2596 = vpop.permute.xlu0 %2595
    %2599 = vset.pattern.permute.xlu0 0
    %2600 = vperm.xlu0 %2599, %v2490
    %v2601 = vpop.permute.xlu0 %2600
    %2604 = vset.pattern.permute.xlu0 0
    %2605 = vperm.xlu0 %2604, %v2491
    %v2606 = vpop.permute.xlu0 %2605
    %2609 = vset.pattern.permute.xlu0 0
    %2610 = vperm.xlu0 %2609, %v2492
    %v2611 = vpop.permute.xlu0 %2610
    %2614 = vset.pattern.permute.xlu0 0
    %2615 = vperm.xlu0 %2614, %v2493
    %v2616 = vpop.permute.xlu0 %2615
    %2619 = vset.pattern.permute.xlu0 0
    %2620 = vperm.xlu0 %2619, %v2494
    %v2621 = vpop.permute.xlu0 %2620
    %2624 = vset.pattern.permute.xlu0 0
    %2625 = vperm.xlu0 %2624, %v2495
    %v2626 = vpop.permute.xlu0 %2625
    %2629 = vset.pattern.permute.xlu0 0
    %2630 = vperm.xlu0 %2629, %v2496
    %v2631 = vpop.permute.xlu0 %2630
    %2634 = vset.pattern.permute.xlu0 0
    %2635 = vperm.xlu0 %2634, %v2497
    %v2636 = vpop.permute.xlu0 %2635
    %2639 = vset.pattern.permute.xlu0 0
    %2640 = vperm.xlu0 %2639, %v2498
    %v2641 = vpop.permute.xlu0 %2640
    %2644 = vset.pattern.permute.xlu0 0
    %2645 = vperm.xlu0 %2644, %v2499
    %v2646 = vpop.permute.xlu0 %2645
    %2649 = vset.pattern.permute.xlu0 0
    %2650 = vperm.xlu0 %2649, %v2500
    %v2651 = vpop.permute.xlu0 %2650
    %2654 = vset.pattern.permute.xlu0 0
    %2655 = vperm.xlu0 %2654, %v2501
    %v2656 = vpop.permute.xlu0 %2655
    %2659 = vset.pattern.permute.xlu0 0
    %2660 = vperm.xlu0 %2659, %v2502
    %v2661 = vpop.permute.xlu0 %2660
    %2664 = vset.pattern.permute.xlu0 0
    %2665 = vperm.xlu0 %2664, %v2503
    %v2666 = vpop.permute.xlu0 %2665
    %2669 = vset.pattern.permute.xlu0 0
    %2670 = vperm.xlu0 %2669, %v2504
    %v2671 = vpop.permute.xlu0 %2670
    %2674 = vset.pattern.permute.xlu0 0
    %2675 = vperm.xlu0 %2674, %v2505
    %v2676 = vpop.permute.xlu0 %2675
    %2679 = vset.pattern.permute.xlu0 0
    %2680 = vperm.xlu0 %2679, %v2506
    %v2681 = vpop.permute.xlu0 %2680
    %2684 = vset.pattern.permute.xlu0 0
    %2685 = vperm.xlu0 %2684, %v2507
    %v2686 = vpop.permute.xlu0 %2685
    %2689 = vset.pattern.permute.xlu0 0
    %2690 = vperm.xlu0 %2689, %v2508
    %v2691 = vpop.permute.xlu0 %2690
    %2694 = vset.pattern.permute.xlu0 0
    %2695 = vperm.xlu0 %2694, %v2509
    %v2696 = vpop.permute.xlu0 %2695
    %2699 = vset.pattern.permute.xlu0 0
    %2700 = vperm.xlu0 %2699, %v2510
    %v2701 = vpop.permute.xlu0 %2700
    %2704 = vset.pattern.permute.xlu0 0
    %2705 = vperm.xlu0 %2704, %v2511
    %v2706 = vpop.permute.xlu0 %2705
    %2709 = vset.pattern.permute.xlu0 0
    %2710 = vperm.xlu0 %2709, %v2512
    %v2711 = vpop.permute.xlu0 %2710
    %2714 = vset.pattern.permute.xlu0 0
    %2715 = vperm.xlu0 %2714, %v2513
    %v2716 = vpop.permute.xlu0 %2715
    %2719 = vset.pattern.permute.xlu0 0
    %2720 = vperm.xlu0 %2719, %v2514
    %v2721 = vpop.permute.xlu0 %2720
    %2724 = vset.pattern.permute.xlu0 0
    %2725 = vperm.xlu0 %2724, %v2515
    %v2726 = vpop.permute.xlu0 %2725
    %2729 = vset.pattern.permute.xlu0 0
    %2730 = vperm.xlu0 %2729, %v2516
    %v2731 = vpop.permute.xlu0 %2730
    %2734 = vset.pattern.permute.xlu0 0
    %2735 = vperm.xlu0 %2734, %v2517
    %v2736 = vpop.permute.xlu0 %2735
    %2739 = vset.pattern.permute.xlu0 0
    %2740 = vperm.xlu0 %2739, %v2518
    %v2741 = vpop.permute.xlu0 %2740
    %2744 = vset.pattern.permute.xlu0 0
    %2745 = vperm.xlu0 %2744, %v2519
    %v2746 = vpop.permute.xlu0 %2745
    %2749 = vset.pattern.permute.xlu0 0
    %2750 = vperm.xlu0 %2749, %v2520
    %v2751 = vpop.permute.xlu0 %2750
    %2754 = vset.pattern.permute.xlu0 0
    %2755 = vperm.xlu0 %2754, %v2521
    %v2756 = vpop.permute.xlu0 %2755
    %2759 = vset.pattern.permute.xlu0 0
    %2760 = vperm.xlu0 %2759, %v2522
    %v2761 = vpop.permute.xlu0 %2760
    %2764 = vset.pattern.permute.xlu0 0
    %2765 = vperm.xlu0 %2764, %v2523
    %v2766 = vpop.permute.xlu0 %2765
    %2769 = vset.pattern.permute.xlu0 0
    %2770 = vperm.xlu0 %2769, %v2524
    %v2771 = vpop.permute.xlu0 %2770
    %2774 = vset.pattern.permute.xlu0 0
    %2775 = vperm.xlu0 %2774, %v2525
    %v2776 = vpop.permute.xlu0 %2775
    %2779 = vset.pattern.permute.xlu0 0
    %2780 = vperm.xlu0 %2779, %v2526
    %v2781 = vpop.permute.xlu0 %2780
    %2784 = vset.pattern.permute.xlu0 0
    %2785 = vperm.xlu0 %2784, %v2527
    %v2786 = vpop.permute.xlu0 %2785
    %2789 = vset.pattern.permute.xlu0 0
    %2790 = vperm.xlu0 %2789, %v2528
    %v2791 = vpop.permute.xlu0 %2790
    %2794 = vset.pattern.permute.xlu0 0
    %2795 = vperm.xlu0 %2794, %v2529
    %v2796 = vpop.permute.xlu0 %2795
    %2799 = vset.pattern.permute.xlu0 0
    %2800 = vperm.xlu0 %2799, %v2530
    %v2801 = vpop.permute.xlu0 %2800
    %2804 = vset.pattern.permute.xlu0 0
    %2805 = vperm.xlu0 %2804, %v2531
    %v2806 = vpop.permute.xlu0 %2805
    %2809 = vset.pattern.permute.xlu0 0
    %2810 = vperm.xlu0 %2809, %v2532
    %v2811 = vpop.permute.xlu0 %2810
    %2814 = vset.pattern.permute.xlu0 0
    %2815 = vperm.xlu0 %2814, %v2533
    %v2816 = vpop.permute.xlu0 %2815
    %2819 = vset.pattern.permute.xlu0 0
    %2820 = vperm.xlu0 %2819, %v2534
    %v2821 = vpop.permute.xlu0 %2820
    %2824 = vset.pattern.permute.xlu0 0
    %2825 = vperm.xlu0 %2824, %v2535
    %v2826 = vpop.permute.xlu0 %2825
    %2829 = vset.pattern.permute.xlu0 0
    %2830 = vperm.xlu0 %2829, %v2536
    %v2831 = vpop.permute.xlu0 %2830
    %2834 = vset.pattern.permute.xlu0 0
    %2835 = vperm.xlu0 %2834, %v2537
    %v2836 = vpop.permute.xlu0 %2835
    %2839 = vset.pattern.permute.xlu0 0
    %2840 = vperm.xlu0 %2839, %v2538
    %v2841 = vpop.permute.xlu0 %2840
    %2844 = vset.pattern.permute.xlu0 0
    %2845 = vperm.xlu0 %2844, %v2539
    %v2846 = vpop.permute.xlu0 %2845
    %2849 = vset.pattern.permute.xlu0 0
    %2850 = vperm.xlu0 %2849, %v2540
    %v2851 = vpop.permute.xlu0 %2850
    %2854 = vset.pattern.permute.xlu0 0
    %2855 = vperm.xlu0 %2854, %v2541
    %v2856 = vpop.permute.xlu0 %2855
    %2859 = vset.pattern.permute.xlu0 0
    %2860 = vperm.xlu0 %2859, %v2542
    %v2861 = vpop.permute.xlu0 %2860
    %v2863 = vmul.f32 %v2546, %v813
    %v2864 = vmul.f32 %v2551, %v817
    %v2865 = vmul.f32 %v2556, %v823
    %v2866 = vmul.f32 %v2561, %v827
    %v2867 = vmul.f32 %v2566, %v833
    %v2868 = vmul.f32 %v2571, %v837
    %v2869 = vmul.f32 %v2576, %v843
    %v2870 = vmul.f32 %v2581, %v847
    %v2871 = vmul.f32 %v2586, %v853
    %v2872 = vmul.f32 %v2591, %v857
    %v2873 = vmul.f32 %v2596, %v863
    %v2874 = vmul.f32 %v2601, %v867
    %v2875 = vmul.f32 %v2606, %v873
    %v2876 = vmul.f32 %v2611, %v877
    %v2877 = vmul.f32 %v2616, %v883
    %v2878 = vmul.f32 %v2621, %v887
    %v2879 = vmul.f32 %v2626, %v893
    %v2880 = vmul.f32 %v2631, %v897
    %v2881 = vmul.f32 %v2636, %v903
    %v2882 = vmul.f32 %v2641, %v907
    %v2883 = vmul.f32 %v2646, %v913
    %v2884 = vmul.f32 %v2651, %v917
    %v2885 = vmul.f32 %v2656, %v923
    %v2886 = vmul.f32 %v2661, %v927
    %v2887 = vmul.f32 %v2666, %v933
    %v2888 = vmul.f32 %v2671, %v937
    %v2889 = vmul.f32 %v2676, %v943
    %v2890 = vmul.f32 %v2681, %v947
    %v2891 = vmul.f32 %v2686, %v953
    %v2892 = vmul.f32 %v2691, %v957
    %v2893 = vmul.f32 %v2696, %v963
    %v2894 = vmul.f32 %v2701, %v967
    %v2895 = vmul.f32 %v2706, %v973
    %v2896 = vmul.f32 %v2711, %v977
    %v2897 = vmul.f32 %v2716, %v983
    %v2898 = vmul.f32 %v2721, %v987
    %v2899 = vmul.f32 %v2726, %v993
    %v2900 = vmul.f32 %v2731, %v997
    %v2901 = vmul.f32 %v2736, %v1003
    %v2902 = vmul.f32 %v2741, %v1007
    %v2903 = vmul.f32 %v2746, %v1013
    %v2904 = vmul.f32 %v2751, %v1017
    %v2905 = vmul.f32 %v2756, %v1023
    %v2906 = vmul.f32 %v2761, %v1027
    %v2907 = vmul.f32 %v2766, %v1033
    %v2908 = vmul.f32 %v2771, %v1037
    %v2909 = vmul.f32 %v2776, %v1043
    %v2910 = vmul.f32 %v2781, %v1047
    %v2911 = vmul.f32 %v2786, %v1053
    %v2912 = vmul.f32 %v2791, %v1057
    %v2913 = vmul.f32 %v2796, %v1063
    %v2914 = vmul.f32 %v2801, %v1067
    %v2915 = vmul.f32 %v2806, %v1073
    %v2916 = vmul.f32 %v2811, %v1077
    %v2917 = vmul.f32 %v2816, %v1083
    %v2918 = vmul.f32 %v2821, %v1087
    %v2919 = vmul.f32 %v2826, %v1093
    %v2920 = vmul.f32 %v2831, %v1097
    %v2921 = vmul.f32 %v2836, %v1103
    %v2922 = vmul.f32 %v2841, %v1107
    %v2923 = vmul.f32 %v2846, %v1113
    %v2924 = vmul.f32 %v2851, %v1117
    %v2925 = vmul.f32 %v2856, %v1123
    %v2926 = vmul.f32 %v2861, %v1127
    %2927 = vset.pattern.permute.xlu0 1
    %2928 = vperm.xlu0 %2927, %v2479
    %v2929 = vpop.permute.xlu0 %2928
    %2931 = vset.pattern.permute.xlu0 1
    %2932 = vperm.xlu0 %2931, %v2480
    %v2933 = vpop.permute.xlu0 %2932
    %2935 = vset.pattern.permute.xlu0 1
    %2936 = vperm.xlu0 %2935, %v2481
    %v2937 = vpop.permute.xlu0 %2936
    %2939 = vset.pattern.permute.xlu0 1
    %2940 = vperm.xlu0 %2939, %v2482
    %v2941 = vpop.permute.xlu0 %2940
    %2943 = vset.pattern.permute.xlu0 1
    %2944 = vperm.xlu0 %2943, %v2483
    %v2945 = vpop.permute.xlu0 %2944
    %2947 = vset.pattern.permute.xlu0 1
    %2948 = vperm.xlu0 %2947, %v2484
    %v2949 = vpop.permute.xlu0 %2948
    %2951 = vset.pattern.permute.xlu0 1
    %2952 = vperm.xlu0 %2951, %v2485
    %v2953 = vpop.permute.xlu0 %2952
    %2955 = vset.pattern.permute.xlu0 1
    %2956 = vperm.xlu0 %2955, %v2486
    %v2957 = vpop.permute.xlu0 %2956
    %2959 = vset.pattern.permute.xlu0 1
    %2960 = vperm.xlu0 %2959, %v2487
    %v2961 = vpop.permute.xlu0 %2960
    %2963 = vset.pattern.permute.xlu0 1
    %2964 = vperm.xlu0 %2963, %v2488
    %v2965 = vpop.permute.xlu0 %2964
    %2967 = vset.pattern.permute.xlu0 1
    %2968 = vperm.xlu0 %2967, %v2489
    %v2969 = vpop.permute.xlu0 %2968
    %2971 = vset.pattern.permute.xlu0 1
    %2972 = vperm.xlu0 %2971, %v2490
    %v2973 = vpop.permute.xlu0 %2972
    %2975 = vset.pattern.permute.xlu0 1
    %2976 = vperm.xlu0 %2975, %v2491
    %v2977 = vpop.permute.xlu0 %2976
    %2979 = vset.pattern.permute.xlu0 1
    %2980 = vperm.xlu0 %2979, %v2492
    %v2981 = vpop.permute.xlu0 %2980
    %2983 = vset.pattern.permute.xlu0 1
    %2984 = vperm.xlu0 %2983, %v2493
    %v2985 = vpop.permute.xlu0 %2984
    %2987 = vset.pattern.permute.xlu0 1
    %2988 = vperm.xlu0 %2987, %v2494
    %v2989 = vpop.permute.xlu0 %2988
    %2991 = vset.pattern.permute.xlu0 1
    %2992 = vperm.xlu0 %2991, %v2495
    %v2993 = vpop.permute.xlu0 %2992
    %2995 = vset.pattern.permute.xlu0 1
    %2996 = vperm.xlu0 %2995, %v2496
    %v2997 = vpop.permute.xlu0 %2996
    %2999 = vset.pattern.permute.xlu0 1
    %3000 = vperm.xlu0 %2999, %v2497
    %v3001 = vpop.permute.xlu0 %3000
    %3003 = vset.pattern.permute.xlu0 1
    %3004 = vperm.xlu0 %3003, %v2498
    %v3005 = vpop.permute.xlu0 %3004
    %3007 = vset.pattern.permute.xlu0 1
    %3008 = vperm.xlu0 %3007, %v2499
    %v3009 = vpop.permute.xlu0 %3008
    %3011 = vset.pattern.permute.xlu0 1
    %3012 = vperm.xlu0 %3011, %v2500
    %v3013 = vpop.permute.xlu0 %3012
    %3015 = vset.pattern.permute.xlu0 1
    %3016 = vperm.xlu0 %3015, %v2501
    %v3017 = vpop.permute.xlu0 %3016
    %3019 = vset.pattern.permute.xlu0 1
    %3020 = vperm.xlu0 %3019, %v2502
    %v3021 = vpop.permute.xlu0 %3020
    %3023 = vset.pattern.permute.xlu0 1
    %3024 = vperm.xlu0 %3023, %v2503
    %v3025 = vpop.permute.xlu0 %3024
    %3027 = vset.pattern.permute.xlu0 1
    %3028 = vperm.xlu0 %3027, %v2504
    %v3029 = vpop.permute.xlu0 %3028
    %3031 = vset.pattern.permute.xlu0 1
    %3032 = vperm.xlu0 %3031, %v2505
    %v3033 = vpop.permute.xlu0 %3032
    %3035 = vset.pattern.permute.xlu0 1
    %3036 = vperm.xlu0 %3035, %v2506
    %v3037 = vpop.permute.xlu0 %3036
    %3039 = vset.pattern.permute.xlu0 1
    %3040 = vperm.xlu0 %3039, %v2507
    %v3041 = vpop.permute.xlu0 %3040
    %3043 = vset.pattern.permute.xlu0 1
    %3044 = vperm.xlu0 %3043, %v2508
    %v3045 = vpop.permute.xlu0 %3044
    %3047 = vset.pattern.permute.xlu0 1
    %3048 = vperm.xlu0 %3047, %v2509
    %v3049 = vpop.permute.xlu0 %3048
    %3051 = vset.pattern.permute.xlu0 1
    %3052 = vperm.xlu0 %3051, %v2510
    %v3053 = vpop.permute.xlu0 %3052
    %3055 = vset.pattern.permute.xlu0 1
    %3056 = vperm.xlu0 %3055, %v2511
    %v3057 = vpop.permute.xlu0 %3056
    %3059 = vset.pattern.permute.xlu0 1
    %3060 = vperm.xlu0 %3059, %v2512
    %v3061 = vpop.permute.xlu0 %3060
    %3063 = vset.pattern.permute.xlu0 1
    %3064 = vperm.xlu0 %3063, %v2513
    %v3065 = vpop.permute.xlu0 %3064
    %3067 = vset.pattern.permute.xlu0 1
    %3068 = vperm.xlu0 %3067, %v2514
    %v3069 = vpop.permute.xlu0 %3068
    %3071 = vset.pattern.permute.xlu0 1
    %3072 = vperm.xlu0 %3071, %v2515
    %v3073 = vpop.permute.xlu0 %3072
    %3075 = vset.pattern.permute.xlu0 1
    %3076 = vperm.xlu0 %3075, %v2516
    %v3077 = vpop.permute.xlu0 %3076
    %3079 = vset.pattern.permute.xlu0 1
    %3080 = vperm.xlu0 %3079, %v2517
    %v3081 = vpop.permute.xlu0 %3080
    %3083 = vset.pattern.permute.xlu0 1
    %3084 = vperm.xlu0 %3083, %v2518
    %v3085 = vpop.permute.xlu0 %3084
    %3087 = vset.pattern.permute.xlu0 1
    %3088 = vperm.xlu0 %3087, %v2519
    %v3089 = vpop.permute.xlu0 %3088
    %3091 = vset.pattern.permute.xlu0 1
    %3092 = vperm.xlu0 %3091, %v2520
    %v3093 = vpop.permute.xlu0 %3092
    %3095 = vset.pattern.permute.xlu0 1
    %3096 = vperm.xlu0 %3095, %v2521
    %v3097 = vpop.permute.xlu0 %3096
    %3099 = vset.pattern.permute.xlu0 1
    %3100 = vperm.xlu0 %3099, %v2522
    %v3101 = vpop.permute.xlu0 %3100
    %3103 = vset.pattern.permute.xlu0 1
    %3104 = vperm.xlu0 %3103, %v2523
    %v3105 = vpop.permute.xlu0 %3104
    %3107 = vset.pattern.permute.xlu0 1
    %3108 = vperm.xlu0 %3107, %v2524
    %v3109 = vpop.permute.xlu0 %3108
    %3111 = vset.pattern.permute.xlu0 1
    %3112 = vperm.xlu0 %3111, %v2525
    %v3113 = vpop.permute.xlu0 %3112
    %3115 = vset.pattern.permute.xlu0 1
    %3116 = vperm.xlu0 %3115, %v2526
    %v3117 = vpop.permute.xlu0 %3116
    %3119 = vset.pattern.permute.xlu0 1
    %3120 = vperm.xlu0 %3119, %v2527
    %v3121 = vpop.permute.xlu0 %3120
    %3123 = vset.pattern.permute.xlu0 1
    %3124 = vperm.xlu0 %3123, %v2528
    %v3125 = vpop.permute.xlu0 %3124
    %3127 = vset.pattern.permute.xlu0 1
    %3128 = vperm.xlu0 %3127, %v2529
    %v3129 = vpop.permute.xlu0 %3128
    %3131 = vset.pattern.permute.xlu0 1
    %3132 = vperm.xlu0 %3131, %v2530
    %v3133 = vpop.permute.xlu0 %3132
    %3135 = vset.pattern.permute.xlu0 1
    %3136 = vperm.xlu0 %3135, %v2531
    %v3137 = vpop.permute.xlu0 %3136
    %3139 = vset.pattern.permute.xlu0 1
    %3140 = vperm.xlu0 %3139, %v2532
    %v3141 = vpop.permute.xlu0 %3140
    %3143 = vset.pattern.permute.xlu0 1
    %3144 = vperm.xlu0 %3143, %v2533
    %v3145 = vpop.permute.xlu0 %3144
    %3147 = vset.pattern.permute.xlu0 1
    %3148 = vperm.xlu0 %3147, %v2534
    %v3149 = vpop.permute.xlu0 %3148
    %3151 = vset.pattern.permute.xlu0 1
    %3152 = vperm.xlu0 %3151, %v2535
    %v3153 = vpop.permute.xlu0 %3152
    %3155 = vset.pattern.permute.xlu0 1
    %3156 = vperm.xlu0 %3155, %v2536
    %v3157 = vpop.permute.xlu0 %3156
    %3159 = vset.pattern.permute.xlu0 1
    %3160 = vperm.xlu0 %3159, %v2537
    %v3161 = vpop.permute.xlu0 %3160
    %3163 = vset.pattern.permute.xlu0 1
    %3164 = vperm.xlu0 %3163, %v2538
    %v3165 = vpop.permute.xlu0 %3164
    %3167 = vset.pattern.permute.xlu0 1
    %3168 = vperm.xlu0 %3167, %v2539
    %v3169 = vpop.permute.xlu0 %3168
    %3171 = vset.pattern.permute.xlu0 1
    %3172 = vperm.xlu0 %3171, %v2540
    %v3173 = vpop.permute.xlu0 %3172
    %3175 = vset.pattern.permute.xlu0 1
    %3176 = vperm.xlu0 %3175, %v2541
    %v3177 = vpop.permute.xlu0 %3176
    %3179 = vset.pattern.permute.xlu0 1
    %3180 = vperm.xlu0 %3179, %v2542
    %v3181 = vpop.permute.xlu0 %3180
    %v3183 = vmul.f32 %v2929, %v815
    %v3184 = vmul.f32 %v2933, %v819
    %v3185 = vmul.f32 %v2937, %v825
    %v3186 = vmul.f32 %v2941, %v829
    %v3187 = vmul.f32 %v2945, %v835
    %v3188 = vmul.f32 %v2949, %v839
    %v3189 = vmul.f32 %v2953, %v845
    %v3190 = vmul.f32 %v2957, %v849
    %v3191 = vmul.f32 %v2961, %v855
    %v3192 = vmul.f32 %v2965, %v859
    %v3193 = vmul.f32 %v2969, %v865
    %v3194 = vmul.f32 %v2973, %v869
    %v3195 = vmul.f32 %v2977, %v875
    %v3196 = vmul.f32 %v2981, %v879
    %v3197 = vmul.f32 %v2985, %v885
    %v3198 = vmul.f32 %v2989, %v889
    %v3199 = vmul.f32 %v2993, %v895
    %v3200 = vmul.f32 %v2997, %v899
    %v3201 = vmul.f32 %v3001, %v905
    %v3202 = vmul.f32 %v3005, %v909
    %v3203 = vmul.f32 %v3009, %v915
    %v3204 = vmul.f32 %v3013, %v919
    %v3205 = vmul.f32 %v3017, %v925
    %v3206 = vmul.f32 %v3021, %v929
    %v3207 = vmul.f32 %v3025, %v935
    %v3208 = vmul.f32 %v3029, %v939
    %v3209 = vmul.f32 %v3033, %v945
    %v3210 = vmul.f32 %v3037, %v949
    %v3211 = vmul.f32 %v3041, %v955
    %v3212 = vmul.f32 %v3045, %v959
    %v3213 = vmul.f32 %v3049, %v965
    %v3214 = vmul.f32 %v3053, %v969
    %v3215 = vmul.f32 %v3057, %v975
    %v3216 = vmul.f32 %v3061, %v979
    %v3217 = vmul.f32 %v3065, %v985
    %v3218 = vmul.f32 %v3069, %v989
    %v3219 = vmul.f32 %v3073, %v995
    %v3220 = vmul.f32 %v3077, %v999
    %v3221 = vmul.f32 %v3081, %v1005
    %v3222 = vmul.f32 %v3085, %v1009
    %v3223 = vmul.f32 %v3089, %v1015
    %v3224 = vmul.f32 %v3093, %v1019
    %v3225 = vmul.f32 %v3097, %v1025
    %v3226 = vmul.f32 %v3101, %v1029
    %v3227 = vmul.f32 %v3105, %v1035
    %v3228 = vmul.f32 %v3109, %v1039
    %v3229 = vmul.f32 %v3113, %v1045
    %v3230 = vmul.f32 %v3117, %v1049
    %v3231 = vmul.f32 %v3121, %v1055
    %v3232 = vmul.f32 %v3125, %v1059
    %v3233 = vmul.f32 %v3129, %v1065
    %v3234 = vmul.f32 %v3133, %v1069
    %v3235 = vmul.f32 %v3137, %v1075
    %v3236 = vmul.f32 %v3141, %v1079
    %v3237 = vmul.f32 %v3145, %v1085
    %v3238 = vmul.f32 %v3149, %v1089
    %v3239 = vmul.f32 %v3153, %v1095
    %v3240 = vmul.f32 %v3157, %v1099
    %v3241 = vmul.f32 %v3161, %v1105
    %v3242 = vmul.f32 %v3165, %v1109
    %v3243 = vmul.f32 %v3169, %v1115
    %v3244 = vmul.f32 %v3173, %v1119
    %v3245 = vmul.f32 %v3177, %v1125
    %v3246 = vmul.f32 %v3181, %v1129
    %v3247 = vadd.f32 %v2863, %v3183
    %v3248 = vadd.f32 %v2864, %v3184
    %v3249 = vadd.f32 %v2865, %v3185
    %v3250 = vadd.f32 %v2866, %v3186
    %v3251 = vadd.f32 %v2867, %v3187
    %v3252 = vadd.f32 %v2868, %v3188
    %v3253 = vadd.f32 %v2869, %v3189
    %v3254 = vadd.f32 %v2870, %v3190
    %v3255 = vadd.f32 %v2871, %v3191
    %v3256 = vadd.f32 %v2872, %v3192
    %v3257 = vadd.f32 %v2873, %v3193
    %v3258 = vadd.f32 %v2874, %v3194
    %v3259 = vadd.f32 %v2875, %v3195
    %v3260 = vadd.f32 %v2876, %v3196
    %v3261 = vadd.f32 %v2877, %v3197
    %v3262 = vadd.f32 %v2878, %v3198
    %v3263 = vadd.f32 %v2879, %v3199
    %v3264 = vadd.f32 %v2880, %v3200
    %v3265 = vadd.f32 %v2881, %v3201
    %v3266 = vadd.f32 %v2882, %v3202
    %v3267 = vadd.f32 %v2883, %v3203
    %v3268 = vadd.f32 %v2884, %v3204
    %v3269 = vadd.f32 %v2885, %v3205
    %v3270 = vadd.f32 %v2886, %v3206
    %v3271 = vadd.f32 %v2887, %v3207
    %v3272 = vadd.f32 %v2888, %v3208
    %v3273 = vadd.f32 %v2889, %v3209
    %v3274 = vadd.f32 %v2890, %v3210
    %v3275 = vadd.f32 %v2891, %v3211
    %v3276 = vadd.f32 %v2892, %v3212
    %v3277 = vadd.f32 %v2893, %v3213
    %v3278 = vadd.f32 %v2894, %v3214
    %v3279 = vadd.f32 %v2895, %v3215
    %v3280 = vadd.f32 %v2896, %v3216
    %v3281 = vadd.f32 %v2897, %v3217
    %v3282 = vadd.f32 %v2898, %v3218
    %v3283 = vadd.f32 %v2899, %v3219
    %v3284 = vadd.f32 %v2900, %v3220
    %v3285 = vadd.f32 %v2901, %v3221
    %v3286 = vadd.f32 %v2902, %v3222
    %v3287 = vadd.f32 %v2903, %v3223
    %v3288 = vadd.f32 %v2904, %v3224
    %v3289 = vadd.f32 %v2905, %v3225
    %v3290 = vadd.f32 %v2906, %v3226
    %v3291 = vadd.f32 %v2907, %v3227
    %v3292 = vadd.f32 %v2908, %v3228
    %v3293 = vadd.f32 %v2909, %v3229
    %v3294 = vadd.f32 %v2910, %v3230
    %v3295 = vadd.f32 %v2911, %v3231
    %v3296 = vadd.f32 %v2912, %v3232
    %v3297 = vadd.f32 %v2913, %v3233
    %v3298 = vadd.f32 %v2914, %v3234
    %v3299 = vadd.f32 %v2915, %v3235
    %v3300 = vadd.f32 %v2916, %v3236
    %v3301 = vadd.f32 %v2917, %v3237
    %v3302 = vadd.f32 %v2918, %v3238
    %v3303 = vadd.f32 %v2919, %v3239
    %v3304 = vadd.f32 %v2920, %v3240
    %v3305 = vadd.f32 %v2921, %v3241
    %v3306 = vadd.f32 %v2922, %v3242
    %v3307 = vadd.f32 %v2923, %v3243
    %v3308 = vadd.f32 %v2924, %v3244
    %v3309 = vadd.f32 %v2925, %v3245
    %v3310 = vadd.f32 %v2926, %v3246
    %3311 = vset.pattern.permute.xlu0 2
    %3312 = vperm.xlu0 %3311, %v2479
    %v3313 = vpop.permute.xlu0 %3312
    %3315 = vset.pattern.permute.xlu0 2
    %3316 = vperm.xlu0 %3315, %v2480
    %v3317 = vpop.permute.xlu0 %3316
    %3319 = vset.pattern.permute.xlu0 2
    %3320 = vperm.xlu0 %3319, %v2481
    %v3321 = vpop.permute.xlu0 %3320
    %3323 = vset.pattern.permute.xlu0 2
    %3324 = vperm.xlu0 %3323, %v2482
    %v3325 = vpop.permute.xlu0 %3324
    %3327 = vset.pattern.permute.xlu0 2
    %3328 = vperm.xlu0 %3327, %v2483
    %v3329 = vpop.permute.xlu0 %3328
    %3331 = vset.pattern.permute.xlu0 2
    %3332 = vperm.xlu0 %3331, %v2484
    %v3333 = vpop.permute.xlu0 %3332
    %3335 = vset.pattern.permute.xlu0 2
    %3336 = vperm.xlu0 %3335, %v2485
    %v3337 = vpop.permute.xlu0 %3336
    %3339 = vset.pattern.permute.xlu0 2
    %3340 = vperm.xlu0 %3339, %v2486
    %v3341 = vpop.permute.xlu0 %3340
    %3343 = vset.pattern.permute.xlu0 2
    %3344 = vperm.xlu0 %3343, %v2487
    %v3345 = vpop.permute.xlu0 %3344
    %3347 = vset.pattern.permute.xlu0 2
    %3348 = vperm.xlu0 %3347, %v2488
    %v3349 = vpop.permute.xlu0 %3348
    %3351 = vset.pattern.permute.xlu0 2
    %3352 = vperm.xlu0 %3351, %v2489
    %v3353 = vpop.permute.xlu0 %3352
    %3355 = vset.pattern.permute.xlu0 2
    %3356 = vperm.xlu0 %3355, %v2490
    %v3357 = vpop.permute.xlu0 %3356
    %3359 = vset.pattern.permute.xlu0 2
    %3360 = vperm.xlu0 %3359, %v2491
    %v3361 = vpop.permute.xlu0 %3360
    %3363 = vset.pattern.permute.xlu0 2
    %3364 = vperm.xlu0 %3363, %v2492
    %v3365 = vpop.permute.xlu0 %3364
    %3367 = vset.pattern.permute.xlu0 2
    %3368 = vperm.xlu0 %3367, %v2493
    %v3369 = vpop.permute.xlu0 %3368
    %3371 = vset.pattern.permute.xlu0 2
    %3372 = vperm.xlu0 %3371, %v2494
    %v3373 = vpop.permute.xlu0 %3372
    %3375 = vset.pattern.permute.xlu0 2
    %3376 = vperm.xlu0 %3375, %v2495
    %v3377 = vpop.permute.xlu0 %3376
    %3379 = vset.pattern.permute.xlu0 2
    %3380 = vperm.xlu0 %3379, %v2496
    %v3381 = vpop.permute.xlu0 %3380
    %3383 = vset.pattern.permute.xlu0 2
    %3384 = vperm.xlu0 %3383, %v2497
    %v3385 = vpop.permute.xlu0 %3384
    %3387 = vset.pattern.permute.xlu0 2
    %3388 = vperm.xlu0 %3387, %v2498
    %v3389 = vpop.permute.xlu0 %3388
    %3391 = vset.pattern.permute.xlu0 2
    %3392 = vperm.xlu0 %3391, %v2499
    %v3393 = vpop.permute.xlu0 %3392
    %3395 = vset.pattern.permute.xlu0 2
    %3396 = vperm.xlu0 %3395, %v2500
    %v3397 = vpop.permute.xlu0 %3396
    %3399 = vset.pattern.permute.xlu0 2
    %3400 = vperm.xlu0 %3399, %v2501
    %v3401 = vpop.permute.xlu0 %3400
    %3403 = vset.pattern.permute.xlu0 2
    %3404 = vperm.xlu0 %3403, %v2502
    %v3405 = vpop.permute.xlu0 %3404
    %3407 = vset.pattern.permute.xlu0 2
    %3408 = vperm.xlu0 %3407, %v2503
    %v3409 = vpop.permute.xlu0 %3408
    %3411 = vset.pattern.permute.xlu0 2
    %3412 = vperm.xlu0 %3411, %v2504
    %v3413 = vpop.permute.xlu0 %3412
    %3415 = vset.pattern.permute.xlu0 2
    %3416 = vperm.xlu0 %3415, %v2505
    %v3417 = vpop.permute.xlu0 %3416
    %3419 = vset.pattern.permute.xlu0 2
    %3420 = vperm.xlu0 %3419, %v2506
    %v3421 = vpop.permute.xlu0 %3420
    %3423 = vset.pattern.permute.xlu0 2
    %3424 = vperm.xlu0 %3423, %v2507
    %v3425 = vpop.permute.xlu0 %3424
    %3427 = vset.pattern.permute.xlu0 2
    %3428 = vperm.xlu0 %3427, %v2508
    %v3429 = vpop.permute.xlu0 %3428
    %3431 = vset.pattern.permute.xlu0 2
    %3432 = vperm.xlu0 %3431, %v2509
    %v3433 = vpop.permute.xlu0 %3432
    %3435 = vset.pattern.permute.xlu0 2
    %3436 = vperm.xlu0 %3435, %v2510
    %v3437 = vpop.permute.xlu0 %3436
    %3439 = vset.pattern.permute.xlu0 2
    %3440 = vperm.xlu0 %3439, %v2511
    %v3441 = vpop.permute.xlu0 %3440
    %3443 = vset.pattern.permute.xlu0 2
    %3444 = vperm.xlu0 %3443, %v2512
    %v3445 = vpop.permute.xlu0 %3444
    %3447 = vset.pattern.permute.xlu0 2
    %3448 = vperm.xlu0 %3447, %v2513
    %v3449 = vpop.permute.xlu0 %3448
    %3451 = vset.pattern.permute.xlu0 2
    %3452 = vperm.xlu0 %3451, %v2514
    %v3453 = vpop.permute.xlu0 %3452
    %3455 = vset.pattern.permute.xlu0 2
    %3456 = vperm.xlu0 %3455, %v2515
    %v3457 = vpop.permute.xlu0 %3456
    %3459 = vset.pattern.permute.xlu0 2
    %3460 = vperm.xlu0 %3459, %v2516
    %v3461 = vpop.permute.xlu0 %3460
    %3463 = vset.pattern.permute.xlu0 2
    %3464 = vperm.xlu0 %3463, %v2517
    %v3465 = vpop.permute.xlu0 %3464
    %3467 = vset.pattern.permute.xlu0 2
    %3468 = vperm.xlu0 %3467, %v2518
    %v3469 = vpop.permute.xlu0 %3468
    %3471 = vset.pattern.permute.xlu0 2
    %3472 = vperm.xlu0 %3471, %v2519
    %v3473 = vpop.permute.xlu0 %3472
    %3475 = vset.pattern.permute.xlu0 2
    %3476 = vperm.xlu0 %3475, %v2520
    %v3477 = vpop.permute.xlu0 %3476
    %3479 = vset.pattern.permute.xlu0 2
    %3480 = vperm.xlu0 %3479, %v2521
    %v3481 = vpop.permute.xlu0 %3480
    %3483 = vset.pattern.permute.xlu0 2
    %3484 = vperm.xlu0 %3483, %v2522
    %v3485 = vpop.permute.xlu0 %3484
    %3487 = vset.pattern.permute.xlu0 2
    %3488 = vperm.xlu0 %3487, %v2523
    %v3489 = vpop.permute.xlu0 %3488
    %3491 = vset.pattern.permute.xlu0 2
    %3492 = vperm.xlu0 %3491, %v2524
    %v3493 = vpop.permute.xlu0 %3492
    %3495 = vset.pattern.permute.xlu0 2
    %3496 = vperm.xlu0 %3495, %v2525
    %v3497 = vpop.permute.xlu0 %3496
    %3499 = vset.pattern.permute.xlu0 2
    %3500 = vperm.xlu0 %3499, %v2526
    %v3501 = vpop.permute.xlu0 %3500
    %3503 = vset.pattern.permute.xlu0 2
    %3504 = vperm.xlu0 %3503, %v2527
    %v3505 = vpop.permute.xlu0 %3504
    %3507 = vset.pattern.permute.xlu0 2
    %3508 = vperm.xlu0 %3507, %v2528
    %v3509 = vpop.permute.xlu0 %3508
    %3511 = vset.pattern.permute.xlu0 2
    %3512 = vperm.xlu0 %3511, %v2529
    %v3513 = vpop.permute.xlu0 %3512
    %3515 = vset.pattern.permute.xlu0 2
    %3516 = vperm.xlu0 %3515, %v2530
    %v3517 = vpop.permute.xlu0 %3516
    %3519 = vset.pattern.permute.xlu0 2
    %3520 = vperm.xlu0 %3519, %v2531
    %v3521 = vpop.permute.xlu0 %3520
    %3523 = vset.pattern.permute.xlu0 2
    %3524 = vperm.xlu0 %3523, %v2532
    %v3525 = vpop.permute.xlu0 %3524
    %3527 = vset.pattern.permute.xlu0 2
    %3528 = vperm.xlu0 %3527, %v2533
    %v3529 = vpop.permute.xlu0 %3528
    %3531 = vset.pattern.permute.xlu0 2
    %3532 = vperm.xlu0 %3531, %v2534
    %v3533 = vpop.permute.xlu0 %3532
    %3535 = vset.pattern.permute.xlu0 2
    %3536 = vperm.xlu0 %3535, %v2535
    %v3537 = vpop.permute.xlu0 %3536
    %3539 = vset.pattern.permute.xlu0 2
    %3540 = vperm.xlu0 %3539, %v2536
    %v3541 = vpop.permute.xlu0 %3540
    %3543 = vset.pattern.permute.xlu0 2
    %3544 = vperm.xlu0 %3543, %v2537
    %v3545 = vpop.permute.xlu0 %3544
    %3547 = vset.pattern.permute.xlu0 2
    %3548 = vperm.xlu0 %3547, %v2538
    %v3549 = vpop.permute.xlu0 %3548
    %3551 = vset.pattern.permute.xlu0 2
    %3552 = vperm.xlu0 %3551, %v2539
    %v3553 = vpop.permute.xlu0 %3552
    %3555 = vset.pattern.permute.xlu0 2
    %3556 = vperm.xlu0 %3555, %v2540
    %v3557 = vpop.permute.xlu0 %3556
    %3559 = vset.pattern.permute.xlu0 2
    %3560 = vperm.xlu0 %3559, %v2541
    %v3561 = vpop.permute.xlu0 %3560
    %3563 = vset.pattern.permute.xlu0 2
    %3564 = vperm.xlu0 %3563, %v2542
    %v3565 = vpop.permute.xlu0 %3564
    %v3567 = vmul.f32 %v3313, %v1166
    %v3568 = vmul.f32 %v3317, %v1170
    %v3569 = vmul.f32 %v3321, %v1176
    %v3570 = vmul.f32 %v3325, %v1180
    %v3571 = vmul.f32 %v3329, %v1186
    %v3572 = vmul.f32 %v3333, %v1190
    %v3573 = vmul.f32 %v3337, %v1196
    %v3574 = vmul.f32 %v3341, %v1200
    %v3575 = vmul.f32 %v3345, %v1206
    %v3576 = vmul.f32 %v3349, %v1210
    %v3577 = vmul.f32 %v3353, %v1216
    %v3578 = vmul.f32 %v3357, %v1220
    %v3579 = vmul.f32 %v3361, %v1226
    %v3580 = vmul.f32 %v3365, %v1230
    %v3581 = vmul.f32 %v3369, %v1236
    %v3582 = vmul.f32 %v3373, %v1240
    %v3583 = vmul.f32 %v3377, %v1246
    %v3584 = vmul.f32 %v3381, %v1250
    %v3585 = vmul.f32 %v3385, %v1256
    %v3586 = vmul.f32 %v3389, %v1260
    %v3587 = vmul.f32 %v3393, %v1266
    %v3588 = vmul.f32 %v3397, %v1270
    %v3589 = vmul.f32 %v3401, %v1276
    %v3590 = vmul.f32 %v3405, %v1280
    %v3591 = vmul.f32 %v3409, %v1286
    %v3592 = vmul.f32 %v3413, %v1290
    %v3593 = vmul.f32 %v3417, %v1296
    %v3594 = vmul.f32 %v3421, %v1300
    %v3595 = vmul.f32 %v3425, %v1306
    %v3596 = vmul.f32 %v3429, %v1310
    %v3597 = vmul.f32 %v3433, %v1316
    %v3598 = vmul.f32 %v3437, %v1320
    %v3599 = vmul.f32 %v3441, %v1326
    %v3600 = vmul.f32 %v3445, %v1330
    %v3601 = vmul.f32 %v3449, %v1336
    %v3602 = vmul.f32 %v3453, %v1340
    %v3603 = vmul.f32 %v3457, %v1346
    %v3604 = vmul.f32 %v3461, %v1350
    %v3605 = vmul.f32 %v3465, %v1356
    %v3606 = vmul.f32 %v3469, %v1360
    %v3607 = vmul.f32 %v3473, %v1366
    %v3608 = vmul.f32 %v3477, %v1370
    %v3609 = vmul.f32 %v3481, %v1376
    %v3610 = vmul.f32 %v3485, %v1380
    %v3611 = vmul.f32 %v3489, %v1386
    %v3612 = vmul.f32 %v3493, %v1390
    %v3613 = vmul.f32 %v3497, %v1396
    %v3614 = vmul.f32 %v3501, %v1400
    %v3615 = vmul.f32 %v3505, %v1406
    %v3616 = vmul.f32 %v3509, %v1410
    %v3617 = vmul.f32 %v3513, %v1416
    %v3618 = vmul.f32 %v3517, %v1420
    %v3619 = vmul.f32 %v3521, %v1426
    %v3620 = vmul.f32 %v3525, %v1430
    %v3621 = vmul.f32 %v3529, %v1436
    %v3622 = vmul.f32 %v3533, %v1440
    %v3623 = vmul.f32 %v3537, %v1446
    %v3624 = vmul.f32 %v3541, %v1450
    %v3625 = vmul.f32 %v3545, %v1456
    %v3626 = vmul.f32 %v3549, %v1460
    %v3627 = vmul.f32 %v3553, %v1466
    %v3628 = vmul.f32 %v3557, %v1470
    %v3629 = vmul.f32 %v3561, %v1476
    %v3630 = vmul.f32 %v3565, %v1480
    %v3631 = vadd.f32 %v3247, %v3567
    %v3632 = vadd.f32 %v3248, %v3568
    %v3633 = vadd.f32 %v3249, %v3569
    %v3634 = vadd.f32 %v3250, %v3570
    %v3635 = vadd.f32 %v3251, %v3571
    %v3636 = vadd.f32 %v3252, %v3572
    %v3637 = vadd.f32 %v3253, %v3573
    %v3638 = vadd.f32 %v3254, %v3574
    %v3639 = vadd.f32 %v3255, %v3575
    %v3640 = vadd.f32 %v3256, %v3576
    %v3641 = vadd.f32 %v3257, %v3577
    %v3642 = vadd.f32 %v3258, %v3578
    %v3643 = vadd.f32 %v3259, %v3579
    %v3644 = vadd.f32 %v3260, %v3580
    %v3645 = vadd.f32 %v3261, %v3581
    %v3646 = vadd.f32 %v3262, %v3582
    %v3647 = vadd.f32 %v3263, %v3583
    %v3648 = vadd.f32 %v3264, %v3584
    %v3649 = vadd.f32 %v3265, %v3585
    %v3650 = vadd.f32 %v3266, %v3586
    %v3651 = vadd.f32 %v3267, %v3587
    %v3652 = vadd.f32 %v3268, %v3588
    %v3653 = vadd.f32 %v3269, %v3589
    %v3654 = vadd.f32 %v3270, %v3590
    %v3655 = vadd.f32 %v3271, %v3591
    %v3656 = vadd.f32 %v3272, %v3592
    %v3657 = vadd.f32 %v3273, %v3593
    %v3658 = vadd.f32 %v3274, %v3594
    %v3659 = vadd.f32 %v3275, %v3595
    %v3660 = vadd.f32 %v3276, %v3596
    %v3661 = vadd.f32 %v3277, %v3597
    %v3662 = vadd.f32 %v3278, %v3598
    %v3663 = vadd.f32 %v3279, %v3599
    %v3664 = vadd.f32 %v3280, %v3600
    %v3665 = vadd.f32 %v3281, %v3601
    %v3666 = vadd.f32 %v3282, %v3602
    %v3667 = vadd.f32 %v3283, %v3603
    %v3668 = vadd.f32 %v3284, %v3604
    %v3669 = vadd.f32 %v3285, %v3605
    %v3670 = vadd.f32 %v3286, %v3606
    %v3671 = vadd.f32 %v3287, %v3607
    %v3672 = vadd.f32 %v3288, %v3608
    %v3673 = vadd.f32 %v3289, %v3609
    %v3674 = vadd.f32 %v3290, %v3610
    %v3675 = vadd.f32 %v3291, %v3611
    %v3676 = vadd.f32 %v3292, %v3612
    %v3677 = vadd.f32 %v3293, %v3613
    %v3678 = vadd.f32 %v3294, %v3614
    %v3679 = vadd.f32 %v3295, %v3615
    %v3680 = vadd.f32 %v3296, %v3616
    %v3681 = vadd.f32 %v3297, %v3617
    %v3682 = vadd.f32 %v3298, %v3618
    %v3683 = vadd.f32 %v3299, %v3619
    %v3684 = vadd.f32 %v3300, %v3620
    %v3685 = vadd.f32 %v3301, %v3621
    %v3686 = vadd.f32 %v3302, %v3622
    %v3687 = vadd.f32 %v3303, %v3623
    %v3688 = vadd.f32 %v3304, %v3624
    %v3689 = vadd.f32 %v3305, %v3625
    %v3690 = vadd.f32 %v3306, %v3626
    %v3691 = vadd.f32 %v3307, %v3627
    %v3692 = vadd.f32 %v3308, %v3628
    %v3693 = vadd.f32 %v3309, %v3629
    %v3694 = vadd.f32 %v3310, %v3630
    %3695 = vset.pattern.permute.xlu0 3
    %3696 = vperm.xlu0 %3695, %v2479
    %v3697 = vpop.permute.xlu0 %3696
    %3699 = vset.pattern.permute.xlu0 3
    %3700 = vperm.xlu0 %3699, %v2480
    %v3701 = vpop.permute.xlu0 %3700
    %3703 = vset.pattern.permute.xlu0 3
    %3704 = vperm.xlu0 %3703, %v2481
    %v3705 = vpop.permute.xlu0 %3704
    %3707 = vset.pattern.permute.xlu0 3
    %3708 = vperm.xlu0 %3707, %v2482
    %v3709 = vpop.permute.xlu0 %3708
    %3711 = vset.pattern.permute.xlu0 3
    %3712 = vperm.xlu0 %3711, %v2483
    %v3713 = vpop.permute.xlu0 %3712
    %3715 = vset.pattern.permute.xlu0 3
    %3716 = vperm.xlu0 %3715, %v2484
    %v3717 = vpop.permute.xlu0 %3716
    %3719 = vset.pattern.permute.xlu0 3
    %3720 = vperm.xlu0 %3719, %v2485
    %v3721 = vpop.permute.xlu0 %3720
    %3723 = vset.pattern.permute.xlu0 3
    %3724 = vperm.xlu0 %3723, %v2486
    %v3725 = vpop.permute.xlu0 %3724
    %3727 = vset.pattern.permute.xlu0 3
    %3728 = vperm.xlu0 %3727, %v2487
    %v3729 = vpop.permute.xlu0 %3728
    %3731 = vset.pattern.permute.xlu0 3
    %3732 = vperm.xlu0 %3731, %v2488
    %v3733 = vpop.permute.xlu0 %3732
    %3735 = vset.pattern.permute.xlu0 3
    %3736 = vperm.xlu0 %3735, %v2489
    %v3737 = vpop.permute.xlu0 %3736
    %3739 = vset.pattern.permute.xlu0 3
    %3740 = vperm.xlu0 %3739, %v2490
    %v3741 = vpop.permute.xlu0 %3740
    %3743 = vset.pattern.permute.xlu0 3
    %3744 = vperm.xlu0 %3743, %v2491
    %v3745 = vpop.permute.xlu0 %3744
    %3747 = vset.pattern.permute.xlu0 3
    %3748 = vperm.xlu0 %3747, %v2492
    %v3749 = vpop.permute.xlu0 %3748
    %3751 = vset.pattern.permute.xlu0 3
    %3752 = vperm.xlu0 %3751, %v2493
    %v3753 = vpop.permute.xlu0 %3752
    %3755 = vset.pattern.permute.xlu0 3
    %3756 = vperm.xlu0 %3755, %v2494
    %v3757 = vpop.permute.xlu0 %3756
    %3759 = vset.pattern.permute.xlu0 3
    %3760 = vperm.xlu0 %3759, %v2495
    %v3761 = vpop.permute.xlu0 %3760
    %3763 = vset.pattern.permute.xlu0 3
    %3764 = vperm.xlu0 %3763, %v2496
    %v3765 = vpop.permute.xlu0 %3764
    %3767 = vset.pattern.permute.xlu0 3
    %3768 = vperm.xlu0 %3767, %v2497
    %v3769 = vpop.permute.xlu0 %3768
    %3771 = vset.pattern.permute.xlu0 3
    %3772 = vperm.xlu0 %3771, %v2498
    %v3773 = vpop.permute.xlu0 %3772
    %3775 = vset.pattern.permute.xlu0 3
    %3776 = vperm.xlu0 %3775, %v2499
    %v3777 = vpop.permute.xlu0 %3776
    %3779 = vset.pattern.permute.xlu0 3
    %3780 = vperm.xlu0 %3779, %v2500
    %v3781 = vpop.permute.xlu0 %3780
    %3783 = vset.pattern.permute.xlu0 3
    %3784 = vperm.xlu0 %3783, %v2501
    %v3785 = vpop.permute.xlu0 %3784
    %3787 = vset.pattern.permute.xlu0 3
    %3788 = vperm.xlu0 %3787, %v2502
    %v3789 = vpop.permute.xlu0 %3788
    %3791 = vset.pattern.permute.xlu0 3
    %3792 = vperm.xlu0 %3791, %v2503
    %v3793 = vpop.permute.xlu0 %3792
    %3795 = vset.pattern.permute.xlu0 3
    %3796 = vperm.xlu0 %3795, %v2504
    %v3797 = vpop.permute.xlu0 %3796
    %3799 = vset.pattern.permute.xlu0 3
    %3800 = vperm.xlu0 %3799, %v2505
    %v3801 = vpop.permute.xlu0 %3800
    %3803 = vset.pattern.permute.xlu0 3
    %3804 = vperm.xlu0 %3803, %v2506
    %v3805 = vpop.permute.xlu0 %3804
    %3807 = vset.pattern.permute.xlu0 3
    %3808 = vperm.xlu0 %3807, %v2507
    %v3809 = vpop.permute.xlu0 %3808
    %3811 = vset.pattern.permute.xlu0 3
    %3812 = vperm.xlu0 %3811, %v2508
    %v3813 = vpop.permute.xlu0 %3812
    %3815 = vset.pattern.permute.xlu0 3
    %3816 = vperm.xlu0 %3815, %v2509
    %v3817 = vpop.permute.xlu0 %3816
    %3819 = vset.pattern.permute.xlu0 3
    %3820 = vperm.xlu0 %3819, %v2510
    %v3821 = vpop.permute.xlu0 %3820
    %3823 = vset.pattern.permute.xlu0 3
    %3824 = vperm.xlu0 %3823, %v2511
    %v3825 = vpop.permute.xlu0 %3824
    %3827 = vset.pattern.permute.xlu0 3
    %3828 = vperm.xlu0 %3827, %v2512
    %v3829 = vpop.permute.xlu0 %3828
    %3831 = vset.pattern.permute.xlu0 3
    %3832 = vperm.xlu0 %3831, %v2513
    %v3833 = vpop.permute.xlu0 %3832
    %3835 = vset.pattern.permute.xlu0 3
    %3836 = vperm.xlu0 %3835, %v2514
    %v3837 = vpop.permute.xlu0 %3836
    %3839 = vset.pattern.permute.xlu0 3
    %3840 = vperm.xlu0 %3839, %v2515
    %v3841 = vpop.permute.xlu0 %3840
    %3843 = vset.pattern.permute.xlu0 3
    %3844 = vperm.xlu0 %3843, %v2516
    %v3845 = vpop.permute.xlu0 %3844
    %3847 = vset.pattern.permute.xlu0 3
    %3848 = vperm.xlu0 %3847, %v2517
    %v3849 = vpop.permute.xlu0 %3848
    %3851 = vset.pattern.permute.xlu0 3
    %3852 = vperm.xlu0 %3851, %v2518
    %v3853 = vpop.permute.xlu0 %3852
    %3855 = vset.pattern.permute.xlu0 3
    %3856 = vperm.xlu0 %3855, %v2519
    %v3857 = vpop.permute.xlu0 %3856
    %3859 = vset.pattern.permute.xlu0 3
    %3860 = vperm.xlu0 %3859, %v2520
    %v3861 = vpop.permute.xlu0 %3860
    %3863 = vset.pattern.permute.xlu0 3
    %3864 = vperm.xlu0 %3863, %v2521
    %v3865 = vpop.permute.xlu0 %3864
    %3867 = vset.pattern.permute.xlu0 3
    %3868 = vperm.xlu0 %3867, %v2522
    %v3869 = vpop.permute.xlu0 %3868
    %3871 = vset.pattern.permute.xlu0 3
    %3872 = vperm.xlu0 %3871, %v2523
    %v3873 = vpop.permute.xlu0 %3872
    %3875 = vset.pattern.permute.xlu0 3
    %3876 = vperm.xlu0 %3875, %v2524
    %v3877 = vpop.permute.xlu0 %3876
    %3879 = vset.pattern.permute.xlu0 3
    %3880 = vperm.xlu0 %3879, %v2525
    %v3881 = vpop.permute.xlu0 %3880
    %3883 = vset.pattern.permute.xlu0 3
    %3884 = vperm.xlu0 %3883, %v2526
    %v3885 = vpop.permute.xlu0 %3884
    %3887 = vset.pattern.permute.xlu0 3
    %3888 = vperm.xlu0 %3887, %v2527
    %v3889 = vpop.permute.xlu0 %3888
    %3891 = vset.pattern.permute.xlu0 3
    %3892 = vperm.xlu0 %3891, %v2528
    %v3893 = vpop.permute.xlu0 %3892
    %3895 = vset.pattern.permute.xlu0 3
    %3896 = vperm.xlu0 %3895, %v2529
    %v3897 = vpop.permute.xlu0 %3896
    %3899 = vset.pattern.permute.xlu0 3
    %3900 = vperm.xlu0 %3899, %v2530
    %v3901 = vpop.permute.xlu0 %3900
    %3903 = vset.pattern.permute.xlu0 3
    %3904 = vperm.xlu0 %3903, %v2531
    %v3905 = vpop.permute.xlu0 %3904
    %3907 = vset.pattern.permute.xlu0 3
    %3908 = vperm.xlu0 %3907, %v2532
    %v3909 = vpop.permute.xlu0 %3908
    %3911 = vset.pattern.permute.xlu0 3
    %3912 = vperm.xlu0 %3911, %v2533
    %v3913 = vpop.permute.xlu0 %3912
    %3915 = vset.pattern.permute.xlu0 3
    %3916 = vperm.xlu0 %3915, %v2534
    %v3917 = vpop.permute.xlu0 %3916
    %3919 = vset.pattern.permute.xlu0 3
    %3920 = vperm.xlu0 %3919, %v2535
    %v3921 = vpop.permute.xlu0 %3920
    %3923 = vset.pattern.permute.xlu0 3
    %3924 = vperm.xlu0 %3923, %v2536
    %v3925 = vpop.permute.xlu0 %3924
    %3927 = vset.pattern.permute.xlu0 3
    %3928 = vperm.xlu0 %3927, %v2537
    %v3929 = vpop.permute.xlu0 %3928
    %3931 = vset.pattern.permute.xlu0 3
    %3932 = vperm.xlu0 %3931, %v2538
    %v3933 = vpop.permute.xlu0 %3932
    %3935 = vset.pattern.permute.xlu0 3
    %3936 = vperm.xlu0 %3935, %v2539
    %v3937 = vpop.permute.xlu0 %3936
    %3939 = vset.pattern.permute.xlu0 3
    %3940 = vperm.xlu0 %3939, %v2540
    %v3941 = vpop.permute.xlu0 %3940
    %3943 = vset.pattern.permute.xlu0 3
    %3944 = vperm.xlu0 %3943, %v2541
    %v3945 = vpop.permute.xlu0 %3944
    %3947 = vset.pattern.permute.xlu0 3
    %3948 = vperm.xlu0 %3947, %v2542
    %v3949 = vpop.permute.xlu0 %3948
    %v3951 = vmul.f32 %v3697, %v1168
    %v3952 = vmul.f32 %v3701, %v1172
    %v3953 = vmul.f32 %v3705, %v1178
    %v3954 = vmul.f32 %v3709, %v1182
    %v3955 = vmul.f32 %v3713, %v1188
    %v3956 = vmul.f32 %v3717, %v1192
    %v3957 = vmul.f32 %v3721, %v1198
    %v3958 = vmul.f32 %v3725, %v1202
    %v3959 = vmul.f32 %v3729, %v1208
    %v3960 = vmul.f32 %v3733, %v1212
    %v3961 = vmul.f32 %v3737, %v1218
    %v3962 = vmul.f32 %v3741, %v1222
    %v3963 = vmul.f32 %v3745, %v1228
    %v3964 = vmul.f32 %v3749, %v1232
    %v3965 = vmul.f32 %v3753, %v1238
    %v3966 = vmul.f32 %v3757, %v1242
    %v3967 = vmul.f32 %v3761, %v1248
    %v3968 = vmul.f32 %v3765, %v1252
    %v3969 = vmul.f32 %v3769, %v1258
    %v3970 = vmul.f32 %v3773, %v1262
    %v3971 = vmul.f32 %v3777, %v1268
    %v3972 = vmul.f32 %v3781, %v1272
    %v3973 = vmul.f32 %v3785, %v1278
    %v3974 = vmul.f32 %v3789, %v1282
    %v3975 = vmul.f32 %v3793, %v1288
    %v3976 = vmul.f32 %v3797, %v1292
    %v3977 = vmul.f32 %v3801, %v1298
    %v3978 = vmul.f32 %v3805, %v1302
    %v3979 = vmul.f32 %v3809, %v1308
    %v3980 = vmul.f32 %v3813, %v1312
    %v3981 = vmul.f32 %v3817, %v1318
    %v3982 = vmul.f32 %v3821, %v1322
    %v3983 = vmul.f32 %v3825, %v1328
    %v3984 = vmul.f32 %v3829, %v1332
    %v3985 = vmul.f32 %v3833, %v1338
    %v3986 = vmul.f32 %v3837, %v1342
    %v3987 = vmul.f32 %v3841, %v1348
    %v3988 = vmul.f32 %v3845, %v1352
    %v3989 = vmul.f32 %v3849, %v1358
    %v3990 = vmul.f32 %v3853, %v1362
    %v3991 = vmul.f32 %v3857, %v1368
    %v3992 = vmul.f32 %v3861, %v1372
    %v3993 = vmul.f32 %v3865, %v1378
    %v3994 = vmul.f32 %v3869, %v1382
    %v3995 = vmul.f32 %v3873, %v1388
    %v3996 = vmul.f32 %v3877, %v1392
    %v3997 = vmul.f32 %v3881, %v1398
    %v3998 = vmul.f32 %v3885, %v1402
    %v3999 = vmul.f32 %v3889, %v1408
    %v4000 = vmul.f32 %v3893, %v1412
    %v4001 = vmul.f32 %v3897, %v1418
    %v4002 = vmul.f32 %v3901, %v1422
    %v4003 = vmul.f32 %v3905, %v1428
    %v4004 = vmul.f32 %v3909, %v1432
    %v4005 = vmul.f32 %v3913, %v1438
    %v4006 = vmul.f32 %v3917, %v1442
    %v4007 = vmul.f32 %v3921, %v1448
    %v4008 = vmul.f32 %v3925, %v1452
    %v4009 = vmul.f32 %v3929, %v1458
    %v4010 = vmul.f32 %v3933, %v1462
    %v4011 = vmul.f32 %v3937, %v1468
    %v4012 = vmul.f32 %v3941, %v1472
    %v4013 = vmul.f32 %v3945, %v1478
    %v4014 = vmul.f32 %v3949, %v1482
    %v4015 = vadd.f32 %v3631, %v3951
    %v4016 = vadd.f32 %v3632, %v3952
    %v4017 = vadd.f32 %v3633, %v3953
    %v4018 = vadd.f32 %v3634, %v3954
    %v4019 = vadd.f32 %v3635, %v3955
    %v4020 = vadd.f32 %v3636, %v3956
    %v4021 = vadd.f32 %v3637, %v3957
    %v4022 = vadd.f32 %v3638, %v3958
    %v4023 = vadd.f32 %v3639, %v3959
    %v4024 = vadd.f32 %v3640, %v3960
    %v4025 = vadd.f32 %v3641, %v3961
    %v4026 = vadd.f32 %v3642, %v3962
    %v4027 = vadd.f32 %v3643, %v3963
    %v4028 = vadd.f32 %v3644, %v3964
    %v4029 = vadd.f32 %v3645, %v3965
    %v4030 = vadd.f32 %v3646, %v3966
    %v4031 = vadd.f32 %v3647, %v3967
    %v4032 = vadd.f32 %v3648, %v3968
    %v4033 = vadd.f32 %v3649, %v3969
    %v4034 = vadd.f32 %v3650, %v3970
    %v4035 = vadd.f32 %v3651, %v3971
    %v4036 = vadd.f32 %v3652, %v3972
    %v4037 = vadd.f32 %v3653, %v3973
    %v4038 = vadd.f32 %v3654, %v3974
    %v4039 = vadd.f32 %v3655, %v3975
    %v4040 = vadd.f32 %v3656, %v3976
    %v4041 = vadd.f32 %v3657, %v3977
    %v4042 = vadd.f32 %v3658, %v3978
    %v4043 = vadd.f32 %v3659, %v3979
    %v4044 = vadd.f32 %v3660, %v3980
    %v4045 = vadd.f32 %v3661, %v3981
    %v4046 = vadd.f32 %v3662, %v3982
    %v4047 = vadd.f32 %v3663, %v3983
    %v4048 = vadd.f32 %v3664, %v3984
    %v4049 = vadd.f32 %v3665, %v3985
    %v4050 = vadd.f32 %v3666, %v3986
    %v4051 = vadd.f32 %v3667, %v3987
    %v4052 = vadd.f32 %v3668, %v3988
    %v4053 = vadd.f32 %v3669, %v3989
    %v4054 = vadd.f32 %v3670, %v3990
    %v4055 = vadd.f32 %v3671, %v3991
    %v4056 = vadd.f32 %v3672, %v3992
    %v4057 = vadd.f32 %v3673, %v3993
    %v4058 = vadd.f32 %v3674, %v3994
    %v4059 = vadd.f32 %v3675, %v3995
    %v4060 = vadd.f32 %v3676, %v3996
    %v4061 = vadd.f32 %v3677, %v3997
    %v4062 = vadd.f32 %v3678, %v3998
    %v4063 = vadd.f32 %v3679, %v3999
    %v4064 = vadd.f32 %v3680, %v4000
    %v4065 = vadd.f32 %v3681, %v4001
    %v4066 = vadd.f32 %v3682, %v4002
    %v4067 = vadd.f32 %v3683, %v4003
    %v4068 = vadd.f32 %v3684, %v4004
    %v4069 = vadd.f32 %v3685, %v4005
    %v4070 = vadd.f32 %v3686, %v4006
    %v4071 = vadd.f32 %v3687, %v4007
    %v4072 = vadd.f32 %v3688, %v4008
    %v4073 = vadd.f32 %v3689, %v4009
    %v4074 = vadd.f32 %v3690, %v4010
    %v4075 = vadd.f32 %v3691, %v4011
    %v4076 = vadd.f32 %v3692, %v4012
    %v4077 = vadd.f32 %v3693, %v4013
    %v4078 = vadd.f32 %v3694, %v4014
    %4079 = vset.pattern.permute.xlu0 4
    %4080 = vperm.xlu0 %4079, %v2479
    %v4081 = vpop.permute.xlu0 %4080
    %4083 = vset.pattern.permute.xlu0 4
    %4084 = vperm.xlu0 %4083, %v2480
    %v4085 = vpop.permute.xlu0 %4084
    %4087 = vset.pattern.permute.xlu0 4
    %4088 = vperm.xlu0 %4087, %v2481
    %v4089 = vpop.permute.xlu0 %4088
    %4091 = vset.pattern.permute.xlu0 4
    %4092 = vperm.xlu0 %4091, %v2482
    %v4093 = vpop.permute.xlu0 %4092
    %4095 = vset.pattern.permute.xlu0 4
    %4096 = vperm.xlu0 %4095, %v2483
    %v4097 = vpop.permute.xlu0 %4096
    %4099 = vset.pattern.permute.xlu0 4
    %4100 = vperm.xlu0 %4099, %v2484
    %v4101 = vpop.permute.xlu0 %4100
    %4103 = vset.pattern.permute.xlu0 4
    %4104 = vperm.xlu0 %4103, %v2485
    %v4105 = vpop.permute.xlu0 %4104
    %4107 = vset.pattern.permute.xlu0 4
    %4108 = vperm.xlu0 %4107, %v2486
    %v4109 = vpop.permute.xlu0 %4108
    %4111 = vset.pattern.permute.xlu0 4
    %4112 = vperm.xlu0 %4111, %v2487
    %v4113 = vpop.permute.xlu0 %4112
    %4115 = vset.pattern.permute.xlu0 4
    %4116 = vperm.xlu0 %4115, %v2488
    %v4117 = vpop.permute.xlu0 %4116
    %4119 = vset.pattern.permute.xlu0 4
    %4120 = vperm.xlu0 %4119, %v2489
    %v4121 = vpop.permute.xlu0 %4120
    %4123 = vset.pattern.permute.xlu0 4
    %4124 = vperm.xlu0 %4123, %v2490
    %v4125 = vpop.permute.xlu0 %4124
    %4127 = vset.pattern.permute.xlu0 4
    %4128 = vperm.xlu0 %4127, %v2491
    %v4129 = vpop.permute.xlu0 %4128
    %4131 = vset.pattern.permute.xlu0 4
    %4132 = vperm.xlu0 %4131, %v2492
    %v4133 = vpop.permute.xlu0 %4132
    %4135 = vset.pattern.permute.xlu0 4
    %4136 = vperm.xlu0 %4135, %v2493
    %v4137 = vpop.permute.xlu0 %4136
    %4139 = vset.pattern.permute.xlu0 4
    %4140 = vperm.xlu0 %4139, %v2494
    %v4141 = vpop.permute.xlu0 %4140
    %4143 = vset.pattern.permute.xlu0 4
    %4144 = vperm.xlu0 %4143, %v2495
    %v4145 = vpop.permute.xlu0 %4144
    %4147 = vset.pattern.permute.xlu0 4
    %4148 = vperm.xlu0 %4147, %v2496
    %v4149 = vpop.permute.xlu0 %4148
    %4151 = vset.pattern.permute.xlu0 4
    %4152 = vperm.xlu0 %4151, %v2497
    %v4153 = vpop.permute.xlu0 %4152
    %4155 = vset.pattern.permute.xlu0 4
    %4156 = vperm.xlu0 %4155, %v2498
    %v4157 = vpop.permute.xlu0 %4156
    %4159 = vset.pattern.permute.xlu0 4
    %4160 = vperm.xlu0 %4159, %v2499
    %v4161 = vpop.permute.xlu0 %4160
    %4163 = vset.pattern.permute.xlu0 4
    %4164 = vperm.xlu0 %4163, %v2500
    %v4165 = vpop.permute.xlu0 %4164
    %4167 = vset.pattern.permute.xlu0 4
    %4168 = vperm.xlu0 %4167, %v2501
    %v4169 = vpop.permute.xlu0 %4168
    %4171 = vset.pattern.permute.xlu0 4
    %4172 = vperm.xlu0 %4171, %v2502
    %v4173 = vpop.permute.xlu0 %4172
    %4175 = vset.pattern.permute.xlu0 4
    %4176 = vperm.xlu0 %4175, %v2503
    %v4177 = vpop.permute.xlu0 %4176
    %4179 = vset.pattern.permute.xlu0 4
    %4180 = vperm.xlu0 %4179, %v2504
    %v4181 = vpop.permute.xlu0 %4180
    %4183 = vset.pattern.permute.xlu0 4
    %4184 = vperm.xlu0 %4183, %v2505
    %v4185 = vpop.permute.xlu0 %4184
    %4187 = vset.pattern.permute.xlu0 4
    %4188 = vperm.xlu0 %4187, %v2506
    %v4189 = vpop.permute.xlu0 %4188
    %4191 = vset.pattern.permute.xlu0 4
    %4192 = vperm.xlu0 %4191, %v2507
    %v4193 = vpop.permute.xlu0 %4192
    %4195 = vset.pattern.permute.xlu0 4
    %4196 = vperm.xlu0 %4195, %v2508
    %v4197 = vpop.permute.xlu0 %4196
    %4199 = vset.pattern.permute.xlu0 4
    %4200 = vperm.xlu0 %4199, %v2509
    %v4201 = vpop.permute.xlu0 %4200
    %4203 = vset.pattern.permute.xlu0 4
    %4204 = vperm.xlu0 %4203, %v2510
    %v4205 = vpop.permute.xlu0 %4204
    %4207 = vset.pattern.permute.xlu0 4
    %4208 = vperm.xlu0 %4207, %v2511
    %v4209 = vpop.permute.xlu0 %4208
    %4211 = vset.pattern.permute.xlu0 4
    %4212 = vperm.xlu0 %4211, %v2512
    %v4213 = vpop.permute.xlu0 %4212
    %4215 = vset.pattern.permute.xlu0 4
    %4216 = vperm.xlu0 %4215, %v2513
    %v4217 = vpop.permute.xlu0 %4216
    %4219 = vset.pattern.permute.xlu0 4
    %4220 = vperm.xlu0 %4219, %v2514
    %v4221 = vpop.permute.xlu0 %4220
    %4223 = vset.pattern.permute.xlu0 4
    %4224 = vperm.xlu0 %4223, %v2515
    %v4225 = vpop.permute.xlu0 %4224
    %4227 = vset.pattern.permute.xlu0 4
    %4228 = vperm.xlu0 %4227, %v2516
    %v4229 = vpop.permute.xlu0 %4228
    %4231 = vset.pattern.permute.xlu0 4
    %4232 = vperm.xlu0 %4231, %v2517
    %v4233 = vpop.permute.xlu0 %4232
    %4235 = vset.pattern.permute.xlu0 4
    %4236 = vperm.xlu0 %4235, %v2518
    %v4237 = vpop.permute.xlu0 %4236
    %4239 = vset.pattern.permute.xlu0 4
    %4240 = vperm.xlu0 %4239, %v2519
    %v4241 = vpop.permute.xlu0 %4240
    %4243 = vset.pattern.permute.xlu0 4
    %4244 = vperm.xlu0 %4243, %v2520
    %v4245 = vpop.permute.xlu0 %4244
    %4247 = vset.pattern.permute.xlu0 4
    %4248 = vperm.xlu0 %4247, %v2521
    %v4249 = vpop.permute.xlu0 %4248
    %4251 = vset.pattern.permute.xlu0 4
    %4252 = vperm.xlu0 %4251, %v2522
    %v4253 = vpop.permute.xlu0 %4252
    %4255 = vset.pattern.permute.xlu0 4
    %4256 = vperm.xlu0 %4255, %v2523
    %v4257 = vpop.permute.xlu0 %4256
    %4259 = vset.pattern.permute.xlu0 4
    %4260 = vperm.xlu0 %4259, %v2524
    %v4261 = vpop.permute.xlu0 %4260
    %4263 = vset.pattern.permute.xlu0 4
    %4264 = vperm.xlu0 %4263, %v2525
    %v4265 = vpop.permute.xlu0 %4264
    %4267 = vset.pattern.permute.xlu0 4
    %4268 = vperm.xlu0 %4267, %v2526
    %v4269 = vpop.permute.xlu0 %4268
    %4271 = vset.pattern.permute.xlu0 4
    %4272 = vperm.xlu0 %4271, %v2527
    %v4273 = vpop.permute.xlu0 %4272
    %4275 = vset.pattern.permute.xlu0 4
    %4276 = vperm.xlu0 %4275, %v2528
    %v4277 = vpop.permute.xlu0 %4276
    %4279 = vset.pattern.permute.xlu0 4
    %4280 = vperm.xlu0 %4279, %v2529
    %v4281 = vpop.permute.xlu0 %4280
    %4283 = vset.pattern.permute.xlu0 4
    %4284 = vperm.xlu0 %4283, %v2530
    %v4285 = vpop.permute.xlu0 %4284
    %4287 = vset.pattern.permute.xlu0 4
    %4288 = vperm.xlu0 %4287, %v2531
    %v4289 = vpop.permute.xlu0 %4288
    %4291 = vset.pattern.permute.xlu0 4
    %4292 = vperm.xlu0 %4291, %v2532
    %v4293 = vpop.permute.xlu0 %4292
    %4295 = vset.pattern.permute.xlu0 4
    %4296 = vperm.xlu0 %4295, %v2533
    %v4297 = vpop.permute.xlu0 %4296
    %4299 = vset.pattern.permute.xlu0 4
    %4300 = vperm.xlu0 %4299, %v2534
    %v4301 = vpop.permute.xlu0 %4300
    %4303 = vset.pattern.permute.xlu0 4
    %4304 = vperm.xlu0 %4303, %v2535
    %v4305 = vpop.permute.xlu0 %4304
    %4307 = vset.pattern.permute.xlu0 4
    %4308 = vperm.xlu0 %4307, %v2536
    %v4309 = vpop.permute.xlu0 %4308
    %4311 = vset.pattern.permute.xlu0 4
    %4312 = vperm.xlu0 %4311, %v2537
    %v4313 = vpop.permute.xlu0 %4312
    %4315 = vset.pattern.permute.xlu0 4
    %4316 = vperm.xlu0 %4315, %v2538
    %v4317 = vpop.permute.xlu0 %4316
    %4319 = vset.pattern.permute.xlu0 4
    %4320 = vperm.xlu0 %4319, %v2539
    %v4321 = vpop.permute.xlu0 %4320
    %4323 = vset.pattern.permute.xlu0 4
    %4324 = vperm.xlu0 %4323, %v2540
    %v4325 = vpop.permute.xlu0 %4324
    %4327 = vset.pattern.permute.xlu0 4
    %4328 = vperm.xlu0 %4327, %v2541
    %v4329 = vpop.permute.xlu0 %4328
    %4331 = vset.pattern.permute.xlu0 4
    %4332 = vperm.xlu0 %4331, %v2542
    %v4333 = vpop.permute.xlu0 %4332
    %v4335 = vmul.f32 %v4081, %v1519
    %v4336 = vmul.f32 %v4085, %v1523
    %v4337 = vmul.f32 %v4089, %v1529
    %v4338 = vmul.f32 %v4093, %v1533
    %v4339 = vmul.f32 %v4097, %v1539
    %v4340 = vmul.f32 %v4101, %v1543
    %v4341 = vmul.f32 %v4105, %v1549
    %v4342 = vmul.f32 %v4109, %v1553
    %v4343 = vmul.f32 %v4113, %v1559
    %v4344 = vmul.f32 %v4117, %v1563
    %v4345 = vmul.f32 %v4121, %v1569
    %v4346 = vmul.f32 %v4125, %v1573
    %v4347 = vmul.f32 %v4129, %v1579
    %v4348 = vmul.f32 %v4133, %v1583
    %v4349 = vmul.f32 %v4137, %v1589
    %v4350 = vmul.f32 %v4141, %v1593
    %v4351 = vmul.f32 %v4145, %v1599
    %v4352 = vmul.f32 %v4149, %v1603
    %v4353 = vmul.f32 %v4153, %v1609
    %v4354 = vmul.f32 %v4157, %v1613
    %v4355 = vmul.f32 %v4161, %v1619
    %v4356 = vmul.f32 %v4165, %v1623
    %v4357 = vmul.f32 %v4169, %v1629
    %v4358 = vmul.f32 %v4173, %v1633
    %v4359 = vmul.f32 %v4177, %v1639
    %v4360 = vmul.f32 %v4181, %v1643
    %v4361 = vmul.f32 %v4185, %v1649
    %v4362 = vmul.f32 %v4189, %v1653
    %v4363 = vmul.f32 %v4193, %v1659
    %v4364 = vmul.f32 %v4197, %v1663
    %v4365 = vmul.f32 %v4201, %v1669
    %v4366 = vmul.f32 %v4205, %v1673
    %v4367 = vmul.f32 %v4209, %v1679
    %v4368 = vmul.f32 %v4213, %v1683
    %v4369 = vmul.f32 %v4217, %v1689
    %v4370 = vmul.f32 %v4221, %v1693
    %v4371 = vmul.f32 %v4225, %v1699
    %v4372 = vmul.f32 %v4229, %v1703
    %v4373 = vmul.f32 %v4233, %v1709
    %v4374 = vmul.f32 %v4237, %v1713
    %v4375 = vmul.f32 %v4241, %v1719
    %v4376 = vmul.f32 %v4245, %v1723
    %v4377 = vmul.f32 %v4249, %v1729
    %v4378 = vmul.f32 %v4253, %v1733
    %v4379 = vmul.f32 %v4257, %v1739
    %v4380 = vmul.f32 %v4261, %v1743
    %v4381 = vmul.f32 %v4265, %v1749
    %v4382 = vmul.f32 %v4269, %v1753
    %v4383 = vmul.f32 %v4273, %v1759
    %v4384 = vmul.f32 %v4277, %v1763
    %v4385 = vmul.f32 %v4281, %v1769
    %v4386 = vmul.f32 %v4285, %v1773
    %v4387 = vmul.f32 %v4289, %v1779
    %v4388 = vmul.f32 %v4293, %v1783
    %v4389 = vmul.f32 %v4297, %v1789
    %v4390 = vmul.f32 %v4301, %v1793
    %v4391 = vmul.f32 %v4305, %v1799
    %v4392 = vmul.f32 %v4309, %v1803
    %v4393 = vmul.f32 %v4313, %v1809
    %v4394 = vmul.f32 %v4317, %v1813
    %v4395 = vmul.f32 %v4321, %v1819
    %v4396 = vmul.f32 %v4325, %v1823
    %v4397 = vmul.f32 %v4329, %v1829
    %v4398 = vmul.f32 %v4333, %v1833
    %v4399 = vadd.f32 %v4015, %v4335
    %v4400 = vadd.f32 %v4016, %v4336
    %v4401 = vadd.f32 %v4017, %v4337
    %v4402 = vadd.f32 %v4018, %v4338
    %v4403 = vadd.f32 %v4019, %v4339
    %v4404 = vadd.f32 %v4020, %v4340
    %v4405 = vadd.f32 %v4021, %v4341
    %v4406 = vadd.f32 %v4022, %v4342
    %v4407 = vadd.f32 %v4023, %v4343
    %v4408 = vadd.f32 %v4024, %v4344
    %v4409 = vadd.f32 %v4025, %v4345
    %v4410 = vadd.f32 %v4026, %v4346
    %v4411 = vadd.f32 %v4027, %v4347
    %v4412 = vadd.f32 %v4028, %v4348
    %v4413 = vadd.f32 %v4029, %v4349
    %v4414 = vadd.f32 %v4030, %v4350
    %v4415 = vadd.f32 %v4031, %v4351
    %v4416 = vadd.f32 %v4032, %v4352
    %v4417 = vadd.f32 %v4033, %v4353
    %v4418 = vadd.f32 %v4034, %v4354
    %v4419 = vadd.f32 %v4035, %v4355
    %v4420 = vadd.f32 %v4036, %v4356
    %v4421 = vadd.f32 %v4037, %v4357
    %v4422 = vadd.f32 %v4038, %v4358
    %v4423 = vadd.f32 %v4039, %v4359
    %v4424 = vadd.f32 %v4040, %v4360
    %v4425 = vadd.f32 %v4041, %v4361
    %v4426 = vadd.f32 %v4042, %v4362
    %v4427 = vadd.f32 %v4043, %v4363
    %v4428 = vadd.f32 %v4044, %v4364
    %v4429 = vadd.f32 %v4045, %v4365
    %v4430 = vadd.f32 %v4046, %v4366
    %v4431 = vadd.f32 %v4047, %v4367
    %v4432 = vadd.f32 %v4048, %v4368
    %v4433 = vadd.f32 %v4049, %v4369
    %v4434 = vadd.f32 %v4050, %v4370
    %v4435 = vadd.f32 %v4051, %v4371
    %v4436 = vadd.f32 %v4052, %v4372
    %v4437 = vadd.f32 %v4053, %v4373
    %v4438 = vadd.f32 %v4054, %v4374
    %v4439 = vadd.f32 %v4055, %v4375
    %v4440 = vadd.f32 %v4056, %v4376
    %v4441 = vadd.f32 %v4057, %v4377
    %v4442 = vadd.f32 %v4058, %v4378
    %v4443 = vadd.f32 %v4059, %v4379
    %v4444 = vadd.f32 %v4060, %v4380
    %v4445 = vadd.f32 %v4061, %v4381
    %v4446 = vadd.f32 %v4062, %v4382
    %v4447 = vadd.f32 %v4063, %v4383
    %v4448 = vadd.f32 %v4064, %v4384
    %v4449 = vadd.f32 %v4065, %v4385
    %v4450 = vadd.f32 %v4066, %v4386
    %v4451 = vadd.f32 %v4067, %v4387
    %v4452 = vadd.f32 %v4068, %v4388
    %v4453 = vadd.f32 %v4069, %v4389
    %v4454 = vadd.f32 %v4070, %v4390
    %v4455 = vadd.f32 %v4071, %v4391
    %v4456 = vadd.f32 %v4072, %v4392
    %v4457 = vadd.f32 %v4073, %v4393
    %v4458 = vadd.f32 %v4074, %v4394
    %v4459 = vadd.f32 %v4075, %v4395
    %v4460 = vadd.f32 %v4076, %v4396
    %v4461 = vadd.f32 %v4077, %v4397
    %v4462 = vadd.f32 %v4078, %v4398
    %4463 = vset.pattern.permute.xlu0 5
    %4464 = vperm.xlu0 %4463, %v2479
    %v4465 = vpop.permute.xlu0 %4464
    %4467 = vset.pattern.permute.xlu0 5
    %4468 = vperm.xlu0 %4467, %v2480
    %v4469 = vpop.permute.xlu0 %4468
    %4471 = vset.pattern.permute.xlu0 5
    %4472 = vperm.xlu0 %4471, %v2481
    %v4473 = vpop.permute.xlu0 %4472
    %4475 = vset.pattern.permute.xlu0 5
    %4476 = vperm.xlu0 %4475, %v2482
    %v4477 = vpop.permute.xlu0 %4476
    %4479 = vset.pattern.permute.xlu0 5
    %4480 = vperm.xlu0 %4479, %v2483
    %v4481 = vpop.permute.xlu0 %4480
    %4483 = vset.pattern.permute.xlu0 5
    %4484 = vperm.xlu0 %4483, %v2484
    %v4485 = vpop.permute.xlu0 %4484
    %4487 = vset.pattern.permute.xlu0 5
    %4488 = vperm.xlu0 %4487, %v2485
    %v4489 = vpop.permute.xlu0 %4488
    %4491 = vset.pattern.permute.xlu0 5
    %4492 = vperm.xlu0 %4491, %v2486
    %v4493 = vpop.permute.xlu0 %4492
    %4495 = vset.pattern.permute.xlu0 5
    %4496 = vperm.xlu0 %4495, %v2487
    %v4497 = vpop.permute.xlu0 %4496
    %4499 = vset.pattern.permute.xlu0 5
    %4500 = vperm.xlu0 %4499, %v2488
    %v4501 = vpop.permute.xlu0 %4500
    %4503 = vset.pattern.permute.xlu0 5
    %4504 = vperm.xlu0 %4503, %v2489
    %v4505 = vpop.permute.xlu0 %4504
    %4507 = vset.pattern.permute.xlu0 5
    %4508 = vperm.xlu0 %4507, %v2490
    %v4509 = vpop.permute.xlu0 %4508
    %4511 = vset.pattern.permute.xlu0 5
    %4512 = vperm.xlu0 %4511, %v2491
    %v4513 = vpop.permute.xlu0 %4512
    %4515 = vset.pattern.permute.xlu0 5
    %4516 = vperm.xlu0 %4515, %v2492
    %v4517 = vpop.permute.xlu0 %4516
    %4519 = vset.pattern.permute.xlu0 5
    %4520 = vperm.xlu0 %4519, %v2493
    %v4521 = vpop.permute.xlu0 %4520
    %4523 = vset.pattern.permute.xlu0 5
    %4524 = vperm.xlu0 %4523, %v2494
    %v4525 = vpop.permute.xlu0 %4524
    %4527 = vset.pattern.permute.xlu0 5
    %4528 = vperm.xlu0 %4527, %v2495
    %v4529 = vpop.permute.xlu0 %4528
    %4531 = vset.pattern.permute.xlu0 5
    %4532 = vperm.xlu0 %4531, %v2496
    %v4533 = vpop.permute.xlu0 %4532
    %4535 = vset.pattern.permute.xlu0 5
    %4536 = vperm.xlu0 %4535, %v2497
    %v4537 = vpop.permute.xlu0 %4536
    %4539 = vset.pattern.permute.xlu0 5
    %4540 = vperm.xlu0 %4539, %v2498
    %v4541 = vpop.permute.xlu0 %4540
    %4543 = vset.pattern.permute.xlu0 5
    %4544 = vperm.xlu0 %4543, %v2499
    %v4545 = vpop.permute.xlu0 %4544
    %4547 = vset.pattern.permute.xlu0 5
    %4548 = vperm.xlu0 %4547, %v2500
    %v4549 = vpop.permute.xlu0 %4548
    %4551 = vset.pattern.permute.xlu0 5
    %4552 = vperm.xlu0 %4551, %v2501
    %v4553 = vpop.permute.xlu0 %4552
    %4555 = vset.pattern.permute.xlu0 5
    %4556 = vperm.xlu0 %4555, %v2502
    %v4557 = vpop.permute.xlu0 %4556
    %4559 = vset.pattern.permute.xlu0 5
    %4560 = vperm.xlu0 %4559, %v2503
    %v4561 = vpop.permute.xlu0 %4560
    %4563 = vset.pattern.permute.xlu0 5
    %4564 = vperm.xlu0 %4563, %v2504
    %v4565 = vpop.permute.xlu0 %4564
    %4567 = vset.pattern.permute.xlu0 5
    %4568 = vperm.xlu0 %4567, %v2505
    %v4569 = vpop.permute.xlu0 %4568
    %4571 = vset.pattern.permute.xlu0 5
    %4572 = vperm.xlu0 %4571, %v2506
    %v4573 = vpop.permute.xlu0 %4572
    %4575 = vset.pattern.permute.xlu0 5
    %4576 = vperm.xlu0 %4575, %v2507
    %v4577 = vpop.permute.xlu0 %4576
    %4579 = vset.pattern.permute.xlu0 5
    %4580 = vperm.xlu0 %4579, %v2508
    %v4581 = vpop.permute.xlu0 %4580
    %4583 = vset.pattern.permute.xlu0 5
    %4584 = vperm.xlu0 %4583, %v2509
    %v4585 = vpop.permute.xlu0 %4584
    %4587 = vset.pattern.permute.xlu0 5
    %4588 = vperm.xlu0 %4587, %v2510
    %v4589 = vpop.permute.xlu0 %4588
    %4591 = vset.pattern.permute.xlu0 5
    %4592 = vperm.xlu0 %4591, %v2511
    %v4593 = vpop.permute.xlu0 %4592
    %4595 = vset.pattern.permute.xlu0 5
    %4596 = vperm.xlu0 %4595, %v2512
    %v4597 = vpop.permute.xlu0 %4596
    %4599 = vset.pattern.permute.xlu0 5
    %4600 = vperm.xlu0 %4599, %v2513
    %v4601 = vpop.permute.xlu0 %4600
    %4603 = vset.pattern.permute.xlu0 5
    %4604 = vperm.xlu0 %4603, %v2514
    %v4605 = vpop.permute.xlu0 %4604
    %4607 = vset.pattern.permute.xlu0 5
    %4608 = vperm.xlu0 %4607, %v2515
    %v4609 = vpop.permute.xlu0 %4608
    %4611 = vset.pattern.permute.xlu0 5
    %4612 = vperm.xlu0 %4611, %v2516
    %v4613 = vpop.permute.xlu0 %4612
    %4615 = vset.pattern.permute.xlu0 5
    %4616 = vperm.xlu0 %4615, %v2517
    %v4617 = vpop.permute.xlu0 %4616
    %4619 = vset.pattern.permute.xlu0 5
    %4620 = vperm.xlu0 %4619, %v2518
    %v4621 = vpop.permute.xlu0 %4620
    %4623 = vset.pattern.permute.xlu0 5
    %4624 = vperm.xlu0 %4623, %v2519
    %v4625 = vpop.permute.xlu0 %4624
    %4627 = vset.pattern.permute.xlu0 5
    %4628 = vperm.xlu0 %4627, %v2520
    %v4629 = vpop.permute.xlu0 %4628
    %4631 = vset.pattern.permute.xlu0 5
    %4632 = vperm.xlu0 %4631, %v2521
    %v4633 = vpop.permute.xlu0 %4632
    %4635 = vset.pattern.permute.xlu0 5
    %4636 = vperm.xlu0 %4635, %v2522
    %v4637 = vpop.permute.xlu0 %4636
    %4639 = vset.pattern.permute.xlu0 5
    %4640 = vperm.xlu0 %4639, %v2523
    %v4641 = vpop.permute.xlu0 %4640
    %4643 = vset.pattern.permute.xlu0 5
    %4644 = vperm.xlu0 %4643, %v2524
    %v4645 = vpop.permute.xlu0 %4644
    %4647 = vset.pattern.permute.xlu0 5
    %4648 = vperm.xlu0 %4647, %v2525
    %v4649 = vpop.permute.xlu0 %4648
    %4651 = vset.pattern.permute.xlu0 5
    %4652 = vperm.xlu0 %4651, %v2526
    %v4653 = vpop.permute.xlu0 %4652
    %4655 = vset.pattern.permute.xlu0 5
    %4656 = vperm.xlu0 %4655, %v2527
    %v4657 = vpop.permute.xlu0 %4656
    %4659 = vset.pattern.permute.xlu0 5
    %4660 = vperm.xlu0 %4659, %v2528
    %v4661 = vpop.permute.xlu0 %4660
    %4663 = vset.pattern.permute.xlu0 5
    %4664 = vperm.xlu0 %4663, %v2529
    %v4665 = vpop.permute.xlu0 %4664
    %4667 = vset.pattern.permute.xlu0 5
    %4668 = vperm.xlu0 %4667, %v2530
    %v4669 = vpop.permute.xlu0 %4668
    %4671 = vset.pattern.permute.xlu0 5
    %4672 = vperm.xlu0 %4671, %v2531
    %v4673 = vpop.permute.xlu0 %4672
    %4675 = vset.pattern.permute.xlu0 5
    %4676 = vperm.xlu0 %4675, %v2532
    %v4677 = vpop.permute.xlu0 %4676
    %4679 = vset.pattern.permute.xlu0 5
    %4680 = vperm.xlu0 %4679, %v2533
    %v4681 = vpop.permute.xlu0 %4680
    %4683 = vset.pattern.permute.xlu0 5
    %4684 = vperm.xlu0 %4683, %v2534
    %v4685 = vpop.permute.xlu0 %4684
    %4687 = vset.pattern.permute.xlu0 5
    %4688 = vperm.xlu0 %4687, %v2535
    %v4689 = vpop.permute.xlu0 %4688
    %4691 = vset.pattern.permute.xlu0 5
    %4692 = vperm.xlu0 %4691, %v2536
    %v4693 = vpop.permute.xlu0 %4692
    %4695 = vset.pattern.permute.xlu0 5
    %4696 = vperm.xlu0 %4695, %v2537
    %v4697 = vpop.permute.xlu0 %4696
    %4699 = vset.pattern.permute.xlu0 5
    %4700 = vperm.xlu0 %4699, %v2538
    %v4701 = vpop.permute.xlu0 %4700
    %4703 = vset.pattern.permute.xlu0 5
    %4704 = vperm.xlu0 %4703, %v2539
    %v4705 = vpop.permute.xlu0 %4704
    %4707 = vset.pattern.permute.xlu0 5
    %4708 = vperm.xlu0 %4707, %v2540
    %v4709 = vpop.permute.xlu0 %4708
    %4711 = vset.pattern.permute.xlu0 5
    %4712 = vperm.xlu0 %4711, %v2541
    %v4713 = vpop.permute.xlu0 %4712
    %4715 = vset.pattern.permute.xlu0 5
    %4716 = vperm.xlu0 %4715, %v2542
    %v4717 = vpop.permute.xlu0 %4716
    %v4719 = vmul.f32 %v4465, %v1521
    %v4720 = vmul.f32 %v4469, %v1525
    %v4721 = vmul.f32 %v4473, %v1531
    %v4722 = vmul.f32 %v4477, %v1535
    %v4723 = vmul.f32 %v4481, %v1541
    %v4724 = vmul.f32 %v4485, %v1545
    %v4725 = vmul.f32 %v4489, %v1551
    %v4726 = vmul.f32 %v4493, %v1555
    %v4727 = vmul.f32 %v4497, %v1561
    %v4728 = vmul.f32 %v4501, %v1565
    %v4729 = vmul.f32 %v4505, %v1571
    %v4730 = vmul.f32 %v4509, %v1575
    %v4731 = vmul.f32 %v4513, %v1581
    %v4732 = vmul.f32 %v4517, %v1585
    %v4733 = vmul.f32 %v4521, %v1591
    %v4734 = vmul.f32 %v4525, %v1595
    %v4735 = vmul.f32 %v4529, %v1601
    %v4736 = vmul.f32 %v4533, %v1605
    %v4737 = vmul.f32 %v4537, %v1611
    %v4738 = vmul.f32 %v4541, %v1615
    %v4739 = vmul.f32 %v4545, %v1621
    %v4740 = vmul.f32 %v4549, %v1625
    %v4741 = vmul.f32 %v4553, %v1631
    %v4742 = vmul.f32 %v4557, %v1635
    %v4743 = vmul.f32 %v4561, %v1641
    %v4744 = vmul.f32 %v4565, %v1645
    %v4745 = vmul.f32 %v4569, %v1651
    %v4746 = vmul.f32 %v4573, %v1655
    %v4747 = vmul.f32 %v4577, %v1661
    %v4748 = vmul.f32 %v4581, %v1665
    %v4749 = vmul.f32 %v4585, %v1671
    %v4750 = vmul.f32 %v4589, %v1675
    %v4751 = vmul.f32 %v4593, %v1681
    %v4752 = vmul.f32 %v4597, %v1685
    %v4753 = vmul.f32 %v4601, %v1691
    %v4754 = vmul.f32 %v4605, %v1695
    %v4755 = vmul.f32 %v4609, %v1701
    %v4756 = vmul.f32 %v4613, %v1705
    %v4757 = vmul.f32 %v4617, %v1711
    %v4758 = vmul.f32 %v4621, %v1715
    %v4759 = vmul.f32 %v4625, %v1721
    %v4760 = vmul.f32 %v4629, %v1725
    %v4761 = vmul.f32 %v4633, %v1731
    %v4762 = vmul.f32 %v4637, %v1735
    %v4763 = vmul.f32 %v4641, %v1741
    %v4764 = vmul.f32 %v4645, %v1745
    %v4765 = vmul.f32 %v4649, %v1751
    %v4766 = vmul.f32 %v4653, %v1755
    %v4767 = vmul.f32 %v4657, %v1761
    %v4768 = vmul.f32 %v4661, %v1765
    %v4769 = vmul.f32 %v4665, %v1771
    %v4770 = vmul.f32 %v4669, %v1775
    %v4771 = vmul.f32 %v4673, %v1781
    %v4772 = vmul.f32 %v4677, %v1785
    %v4773 = vmul.f32 %v4681, %v1791
    %v4774 = vmul.f32 %v4685, %v1795
    %v4775 = vmul.f32 %v4689, %v1801
    %v4776 = vmul.f32 %v4693, %v1805
    %v4777 = vmul.f32 %v4697, %v1811
    %v4778 = vmul.f32 %v4701, %v1815
    %v4779 = vmul.f32 %v4705, %v1821
    %v4780 = vmul.f32 %v4709, %v1825
    %v4781 = vmul.f32 %v4713, %v1831
    %v4782 = vmul.f32 %v4717, %v1835
    %v4783 = vadd.f32 %v4399, %v4719
    %v4784 = vadd.f32 %v4400, %v4720
    %v4785 = vadd.f32 %v4401, %v4721
    %v4786 = vadd.f32 %v4402, %v4722
    %v4787 = vadd.f32 %v4403, %v4723
    %v4788 = vadd.f32 %v4404, %v4724
    %v4789 = vadd.f32 %v4405, %v4725
    %v4790 = vadd.f32 %v4406, %v4726
    %v4791 = vadd.f32 %v4407, %v4727
    %v4792 = vadd.f32 %v4408, %v4728
    %v4793 = vadd.f32 %v4409, %v4729
    %v4794 = vadd.f32 %v4410, %v4730
    %v4795 = vadd.f32 %v4411, %v4731
    %v4796 = vadd.f32 %v4412, %v4732
    %v4797 = vadd.f32 %v4413, %v4733
    %v4798 = vadd.f32 %v4414, %v4734
    %v4799 = vadd.f32 %v4415, %v4735
    %v4800 = vadd.f32 %v4416, %v4736
    %v4801 = vadd.f32 %v4417, %v4737
    %v4802 = vadd.f32 %v4418, %v4738
    %v4803 = vadd.f32 %v4419, %v4739
    %v4804 = vadd.f32 %v4420, %v4740
    %v4805 = vadd.f32 %v4421, %v4741
    %v4806 = vadd.f32 %v4422, %v4742
    %v4807 = vadd.f32 %v4423, %v4743
    %v4808 = vadd.f32 %v4424, %v4744
    %v4809 = vadd.f32 %v4425, %v4745
    %v4810 = vadd.f32 %v4426, %v4746
    %v4811 = vadd.f32 %v4427, %v4747
    %v4812 = vadd.f32 %v4428, %v4748
    %v4813 = vadd.f32 %v4429, %v4749
    %v4814 = vadd.f32 %v4430, %v4750
    %v4815 = vadd.f32 %v4431, %v4751
    %v4816 = vadd.f32 %v4432, %v4752
    %v4817 = vadd.f32 %v4433, %v4753
    %v4818 = vadd.f32 %v4434, %v4754
    %v4819 = vadd.f32 %v4435, %v4755
    %v4820 = vadd.f32 %v4436, %v4756
    %v4821 = vadd.f32 %v4437, %v4757
    %v4822 = vadd.f32 %v4438, %v4758
    %v4823 = vadd.f32 %v4439, %v4759
    %v4824 = vadd.f32 %v4440, %v4760
    %v4825 = vadd.f32 %v4441, %v4761
    %v4826 = vadd.f32 %v4442, %v4762
    %v4827 = vadd.f32 %v4443, %v4763
    %v4828 = vadd.f32 %v4444, %v4764
    %v4829 = vadd.f32 %v4445, %v4765
    %v4830 = vadd.f32 %v4446, %v4766
    %v4831 = vadd.f32 %v4447, %v4767
    %v4832 = vadd.f32 %v4448, %v4768
    %v4833 = vadd.f32 %v4449, %v4769
    %v4834 = vadd.f32 %v4450, %v4770
    %v4835 = vadd.f32 %v4451, %v4771
    %v4836 = vadd.f32 %v4452, %v4772
    %v4837 = vadd.f32 %v4453, %v4773
    %v4838 = vadd.f32 %v4454, %v4774
    %v4839 = vadd.f32 %v4455, %v4775
    %v4840 = vadd.f32 %v4456, %v4776
    %v4841 = vadd.f32 %v4457, %v4777
    %v4842 = vadd.f32 %v4458, %v4778
    %v4843 = vadd.f32 %v4459, %v4779
    %v4844 = vadd.f32 %v4460, %v4780
    %v4845 = vadd.f32 %v4461, %v4781
    %v4846 = vadd.f32 %v4462, %v4782
    %4847 = vset.pattern.permute.xlu0 6
    %4848 = vperm.xlu0 %4847, %v2479
    %v4849 = vpop.permute.xlu0 %4848
    %4851 = vset.pattern.permute.xlu0 6
    %4852 = vperm.xlu0 %4851, %v2480
    %v4853 = vpop.permute.xlu0 %4852
    %4855 = vset.pattern.permute.xlu0 6
    %4856 = vperm.xlu0 %4855, %v2481
    %v4857 = vpop.permute.xlu0 %4856
    %4859 = vset.pattern.permute.xlu0 6
    %4860 = vperm.xlu0 %4859, %v2482
    %v4861 = vpop.permute.xlu0 %4860
    %4863 = vset.pattern.permute.xlu0 6
    %4864 = vperm.xlu0 %4863, %v2483
    %v4865 = vpop.permute.xlu0 %4864
    %4867 = vset.pattern.permute.xlu0 6
    %4868 = vperm.xlu0 %4867, %v2484
    %v4869 = vpop.permute.xlu0 %4868
    %4871 = vset.pattern.permute.xlu0 6
    %4872 = vperm.xlu0 %4871, %v2485
    %v4873 = vpop.permute.xlu0 %4872
    %4875 = vset.pattern.permute.xlu0 6
    %4876 = vperm.xlu0 %4875, %v2486
    %v4877 = vpop.permute.xlu0 %4876
    %4879 = vset.pattern.permute.xlu0 6
    %4880 = vperm.xlu0 %4879, %v2487
    %v4881 = vpop.permute.xlu0 %4880
    %4883 = vset.pattern.permute.xlu0 6
    %4884 = vperm.xlu0 %4883, %v2488
    %v4885 = vpop.permute.xlu0 %4884
    %4887 = vset.pattern.permute.xlu0 6
    %4888 = vperm.xlu0 %4887, %v2489
    %v4889 = vpop.permute.xlu0 %4888
    %4891 = vset.pattern.permute.xlu0 6
    %4892 = vperm.xlu0 %4891, %v2490
    %v4893 = vpop.permute.xlu0 %4892
    %4895 = vset.pattern.permute.xlu0 6
    %4896 = vperm.xlu0 %4895, %v2491
    %v4897 = vpop.permute.xlu0 %4896
    %4899 = vset.pattern.permute.xlu0 6
    %4900 = vperm.xlu0 %4899, %v2492
    %v4901 = vpop.permute.xlu0 %4900
    %4903 = vset.pattern.permute.xlu0 6
    %4904 = vperm.xlu0 %4903, %v2493
    %v4905 = vpop.permute.xlu0 %4904
    %4907 = vset.pattern.permute.xlu0 6
    %4908 = vperm.xlu0 %4907, %v2494
    %v4909 = vpop.permute.xlu0 %4908
    %4911 = vset.pattern.permute.xlu0 6
    %4912 = vperm.xlu0 %4911, %v2495
    %v4913 = vpop.permute.xlu0 %4912
    %4915 = vset.pattern.permute.xlu0 6
    %4916 = vperm.xlu0 %4915, %v2496
    %v4917 = vpop.permute.xlu0 %4916
    %4919 = vset.pattern.permute.xlu0 6
    %4920 = vperm.xlu0 %4919, %v2497
    %v4921 = vpop.permute.xlu0 %4920
    %4923 = vset.pattern.permute.xlu0 6
    %4924 = vperm.xlu0 %4923, %v2498
    %v4925 = vpop.permute.xlu0 %4924
    %4927 = vset.pattern.permute.xlu0 6
    %4928 = vperm.xlu0 %4927, %v2499
    %v4929 = vpop.permute.xlu0 %4928
    %4931 = vset.pattern.permute.xlu0 6
    %4932 = vperm.xlu0 %4931, %v2500
    %v4933 = vpop.permute.xlu0 %4932
    %4935 = vset.pattern.permute.xlu0 6
    %4936 = vperm.xlu0 %4935, %v2501
    %v4937 = vpop.permute.xlu0 %4936
    %4939 = vset.pattern.permute.xlu0 6
    %4940 = vperm.xlu0 %4939, %v2502
    %v4941 = vpop.permute.xlu0 %4940
    %4943 = vset.pattern.permute.xlu0 6
    %4944 = vperm.xlu0 %4943, %v2503
    %v4945 = vpop.permute.xlu0 %4944
    %4947 = vset.pattern.permute.xlu0 6
    %4948 = vperm.xlu0 %4947, %v2504
    %v4949 = vpop.permute.xlu0 %4948
    %4951 = vset.pattern.permute.xlu0 6
    %4952 = vperm.xlu0 %4951, %v2505
    %v4953 = vpop.permute.xlu0 %4952
    %4955 = vset.pattern.permute.xlu0 6
    %4956 = vperm.xlu0 %4955, %v2506
    %v4957 = vpop.permute.xlu0 %4956
    %4959 = vset.pattern.permute.xlu0 6
    %4960 = vperm.xlu0 %4959, %v2507
    %v4961 = vpop.permute.xlu0 %4960
    %4963 = vset.pattern.permute.xlu0 6
    %4964 = vperm.xlu0 %4963, %v2508
    %v4965 = vpop.permute.xlu0 %4964
    %4967 = vset.pattern.permute.xlu0 6
    %4968 = vperm.xlu0 %4967, %v2509
    %v4969 = vpop.permute.xlu0 %4968
    %4971 = vset.pattern.permute.xlu0 6
    %4972 = vperm.xlu0 %4971, %v2510
    %v4973 = vpop.permute.xlu0 %4972
    %4975 = vset.pattern.permute.xlu0 6
    %4976 = vperm.xlu0 %4975, %v2511
    %v4977 = vpop.permute.xlu0 %4976
    %4979 = vset.pattern.permute.xlu0 6
    %4980 = vperm.xlu0 %4979, %v2512
    %v4981 = vpop.permute.xlu0 %4980
    %4983 = vset.pattern.permute.xlu0 6
    %4984 = vperm.xlu0 %4983, %v2513
    %v4985 = vpop.permute.xlu0 %4984
    %4987 = vset.pattern.permute.xlu0 6
    %4988 = vperm.xlu0 %4987, %v2514
    %v4989 = vpop.permute.xlu0 %4988
    %4991 = vset.pattern.permute.xlu0 6
    %4992 = vperm.xlu0 %4991, %v2515
    %v4993 = vpop.permute.xlu0 %4992
    %4995 = vset.pattern.permute.xlu0 6
    %4996 = vperm.xlu0 %4995, %v2516
    %v4997 = vpop.permute.xlu0 %4996
    %4999 = vset.pattern.permute.xlu0 6
    %5000 = vperm.xlu0 %4999, %v2517
    %v5001 = vpop.permute.xlu0 %5000
    %5003 = vset.pattern.permute.xlu0 6
    %5004 = vperm.xlu0 %5003, %v2518
    %v5005 = vpop.permute.xlu0 %5004
    %5007 = vset.pattern.permute.xlu0 6
    %5008 = vperm.xlu0 %5007, %v2519
    %v5009 = vpop.permute.xlu0 %5008
    %5011 = vset.pattern.permute.xlu0 6
    %5012 = vperm.xlu0 %5011, %v2520
    %v5013 = vpop.permute.xlu0 %5012
    %5015 = vset.pattern.permute.xlu0 6
    %5016 = vperm.xlu0 %5015, %v2521
    %v5017 = vpop.permute.xlu0 %5016
    %5019 = vset.pattern.permute.xlu0 6
    %5020 = vperm.xlu0 %5019, %v2522
    %v5021 = vpop.permute.xlu0 %5020
    %5023 = vset.pattern.permute.xlu0 6
    %5024 = vperm.xlu0 %5023, %v2523
    %v5025 = vpop.permute.xlu0 %5024
    %5027 = vset.pattern.permute.xlu0 6
    %5028 = vperm.xlu0 %5027, %v2524
    %v5029 = vpop.permute.xlu0 %5028
    %5031 = vset.pattern.permute.xlu0 6
    %5032 = vperm.xlu0 %5031, %v2525
    %v5033 = vpop.permute.xlu0 %5032
    %5035 = vset.pattern.permute.xlu0 6
    %5036 = vperm.xlu0 %5035, %v2526
    %v5037 = vpop.permute.xlu0 %5036
    %5039 = vset.pattern.permute.xlu0 6
    %5040 = vperm.xlu0 %5039, %v2527
    %v5041 = vpop.permute.xlu0 %5040
    %5043 = vset.pattern.permute.xlu0 6
    %5044 = vperm.xlu0 %5043, %v2528
    %v5045 = vpop.permute.xlu0 %5044
    %5047 = vset.pattern.permute.xlu0 6
    %5048 = vperm.xlu0 %5047, %v2529
    %v5049 = vpop.permute.xlu0 %5048
    %5051 = vset.pattern.permute.xlu0 6
    %5052 = vperm.xlu0 %5051, %v2530
    %v5053 = vpop.permute.xlu0 %5052
    %5055 = vset.pattern.permute.xlu0 6
    %5056 = vperm.xlu0 %5055, %v2531
    %v5057 = vpop.permute.xlu0 %5056
    %5059 = vset.pattern.permute.xlu0 6
    %5060 = vperm.xlu0 %5059, %v2532
    %v5061 = vpop.permute.xlu0 %5060
    %5063 = vset.pattern.permute.xlu0 6
    %5064 = vperm.xlu0 %5063, %v2533
    %v5065 = vpop.permute.xlu0 %5064
    %5067 = vset.pattern.permute.xlu0 6
    %5068 = vperm.xlu0 %5067, %v2534
    %v5069 = vpop.permute.xlu0 %5068
    %5071 = vset.pattern.permute.xlu0 6
    %5072 = vperm.xlu0 %5071, %v2535
    %v5073 = vpop.permute.xlu0 %5072
    %5075 = vset.pattern.permute.xlu0 6
    %5076 = vperm.xlu0 %5075, %v2536
    %v5077 = vpop.permute.xlu0 %5076
    %5079 = vset.pattern.permute.xlu0 6
    %5080 = vperm.xlu0 %5079, %v2537
    %v5081 = vpop.permute.xlu0 %5080
    %5083 = vset.pattern.permute.xlu0 6
    %5084 = vperm.xlu0 %5083, %v2538
    %v5085 = vpop.permute.xlu0 %5084
    %5087 = vset.pattern.permute.xlu0 6
    %5088 = vperm.xlu0 %5087, %v2539
    %v5089 = vpop.permute.xlu0 %5088
    %5091 = vset.pattern.permute.xlu0 6
    %5092 = vperm.xlu0 %5091, %v2540
    %v5093 = vpop.permute.xlu0 %5092
    %5095 = vset.pattern.permute.xlu0 6
    %5096 = vperm.xlu0 %5095, %v2541
    %v5097 = vpop.permute.xlu0 %5096
    %5099 = vset.pattern.permute.xlu0 6
    %5100 = vperm.xlu0 %5099, %v2542
    %v5101 = vpop.permute.xlu0 %5100
    %v5103 = vmul.f32 %v4849, %v1872
    %v5104 = vmul.f32 %v4853, %v1876
    %v5105 = vmul.f32 %v4857, %v1882
    %v5106 = vmul.f32 %v4861, %v1886
    %v5107 = vmul.f32 %v4865, %v1892
    %v5108 = vmul.f32 %v4869, %v1896
    %v5109 = vmul.f32 %v4873, %v1902
    %v5110 = vmul.f32 %v4877, %v1906
    %v5111 = vmul.f32 %v4881, %v1912
    %v5112 = vmul.f32 %v4885, %v1916
    %v5113 = vmul.f32 %v4889, %v1922
    %v5114 = vmul.f32 %v4893, %v1926
    %v5115 = vmul.f32 %v4897, %v1932
    %v5116 = vmul.f32 %v4901, %v1936
    %v5117 = vmul.f32 %v4905, %v1942
    %v5118 = vmul.f32 %v4909, %v1946
    %v5119 = vmul.f32 %v4913, %v1952
    %v5120 = vmul.f32 %v4917, %v1956
    %v5121 = vmul.f32 %v4921, %v1962
    %v5122 = vmul.f32 %v4925, %v1966
    %v5123 = vmul.f32 %v4929, %v1972
    %v5124 = vmul.f32 %v4933, %v1976
    %v5125 = vmul.f32 %v4937, %v1982
    %v5126 = vmul.f32 %v4941, %v1986
    %v5127 = vmul.f32 %v4945, %v1992
    %v5128 = vmul.f32 %v4949, %v1996
    %v5129 = vmul.f32 %v4953, %v2002
    %v5130 = vmul.f32 %v4957, %v2006
    %v5131 = vmul.f32 %v4961, %v2012
    %v5132 = vmul.f32 %v4965, %v2016
    %v5133 = vmul.f32 %v4969, %v2022
    %v5134 = vmul.f32 %v4973, %v2026
    %v5135 = vmul.f32 %v4977, %v2032
    %v5136 = vmul.f32 %v4981, %v2036
    %v5137 = vmul.f32 %v4985, %v2042
    %v5138 = vmul.f32 %v4989, %v2046
    %v5139 = vmul.f32 %v4993, %v2052
    %v5140 = vmul.f32 %v4997, %v2056
    %v5141 = vmul.f32 %v5001, %v2062
    %v5142 = vmul.f32 %v5005, %v2066
    %v5143 = vmul.f32 %v5009, %v2072
    %v5144 = vmul.f32 %v5013, %v2076
    %v5145 = vmul.f32 %v5017, %v2082
    %v5146 = vmul.f32 %v5021, %v2086
    %v5147 = vmul.f32 %v5025, %v2092
    %v5148 = vmul.f32 %v5029, %v2096
    %v5149 = vmul.f32 %v5033, %v2102
    %v5150 = vmul.f32 %v5037, %v2106
    %v5151 = vmul.f32 %v5041, %v2112
    %v5152 = vmul.f32 %v5045, %v2116
    %v5153 = vmul.f32 %v5049, %v2122
    %v5154 = vmul.f32 %v5053, %v2126
    %v5155 = vmul.f32 %v5057, %v2132
    %v5156 = vmul.f32 %v5061, %v2136
    %v5157 = vmul.f32 %v5065, %v2142
    %v5158 = vmul.f32 %v5069, %v2146
    %v5159 = vmul.f32 %v5073, %v2152
    %v5160 = vmul.f32 %v5077, %v2156
    %v5161 = vmul.f32 %v5081, %v2162
    %v5162 = vmul.f32 %v5085, %v2166
    %v5163 = vmul.f32 %v5089, %v2172
    %v5164 = vmul.f32 %v5093, %v2176
    %v5165 = vmul.f32 %v5097, %v2182
    %v5166 = vmul.f32 %v5101, %v2186
    %v5167 = vadd.f32 %v4783, %v5103
    %v5168 = vadd.f32 %v4784, %v5104
    %v5169 = vadd.f32 %v4785, %v5105
    %v5170 = vadd.f32 %v4786, %v5106
    %v5171 = vadd.f32 %v4787, %v5107
    %v5172 = vadd.f32 %v4788, %v5108
    %v5173 = vadd.f32 %v4789, %v5109
    %v5174 = vadd.f32 %v4790, %v5110
    %v5175 = vadd.f32 %v4791, %v5111
    %v5176 = vadd.f32 %v4792, %v5112
    %v5177 = vadd.f32 %v4793, %v5113
    %v5178 = vadd.f32 %v4794, %v5114
    %v5179 = vadd.f32 %v4795, %v5115
    %v5180 = vadd.f32 %v4796, %v5116
    %v5181 = vadd.f32 %v4797, %v5117
    %v5182 = vadd.f32 %v4798, %v5118
    %v5183 = vadd.f32 %v4799, %v5119
    %v5184 = vadd.f32 %v4800, %v5120
    %v5185 = vadd.f32 %v4801, %v5121
    %v5186 = vadd.f32 %v4802, %v5122
    %v5187 = vadd.f32 %v4803, %v5123
    %v5188 = vadd.f32 %v4804, %v5124
    %v5189 = vadd.f32 %v4805, %v5125
    %v5190 = vadd.f32 %v4806, %v5126
    %v5191 = vadd.f32 %v4807, %v5127
    %v5192 = vadd.f32 %v4808, %v5128
    %v5193 = vadd.f32 %v4809, %v5129
    %v5194 = vadd.f32 %v4810, %v5130
    %v5195 = vadd.f32 %v4811, %v5131
    %v5196 = vadd.f32 %v4812, %v5132
    %v5197 = vadd.f32 %v4813, %v5133
    %v5198 = vadd.f32 %v4814, %v5134
    %v5199 = vadd.f32 %v4815, %v5135
    %v5200 = vadd.f32 %v4816, %v5136
    %v5201 = vadd.f32 %v4817, %v5137
    %v5202 = vadd.f32 %v4818, %v5138
    %v5203 = vadd.f32 %v4819, %v5139
    %v5204 = vadd.f32 %v4820, %v5140
    %v5205 = vadd.f32 %v4821, %v5141
    %v5206 = vadd.f32 %v4822, %v5142
    %v5207 = vadd.f32 %v4823, %v5143
    %v5208 = vadd.f32 %v4824, %v5144
    %v5209 = vadd.f32 %v4825, %v5145
    %v5210 = vadd.f32 %v4826, %v5146
    %v5211 = vadd.f32 %v4827, %v5147
    %v5212 = vadd.f32 %v4828, %v5148
    %v5213 = vadd.f32 %v4829, %v5149
    %v5214 = vadd.f32 %v4830, %v5150
    %v5215 = vadd.f32 %v4831, %v5151
    %v5216 = vadd.f32 %v4832, %v5152
    %v5217 = vadd.f32 %v4833, %v5153
    %v5218 = vadd.f32 %v4834, %v5154
    %v5219 = vadd.f32 %v4835, %v5155
    %v5220 = vadd.f32 %v4836, %v5156
    %v5221 = vadd.f32 %v4837, %v5157
    %v5222 = vadd.f32 %v4838, %v5158
    %v5223 = vadd.f32 %v4839, %v5159
    %v5224 = vadd.f32 %v4840, %v5160
    %v5225 = vadd.f32 %v4841, %v5161
    %v5226 = vadd.f32 %v4842, %v5162
    %v5227 = vadd.f32 %v4843, %v5163
    %v5228 = vadd.f32 %v4844, %v5164
    %v5229 = vadd.f32 %v4845, %v5165
    %v5230 = vadd.f32 %v4846, %v5166
    %5231 = vset.pattern.permute.xlu0 7
    %5232 = vperm.xlu0 %5231, %v2479
    %v5233 = vpop.permute.xlu0 %5232
    %5235 = vset.pattern.permute.xlu0 7
    %5236 = vperm.xlu0 %5235, %v2480
    %v5237 = vpop.permute.xlu0 %5236
    %5239 = vset.pattern.permute.xlu0 7
    %5240 = vperm.xlu0 %5239, %v2481
    %v5241 = vpop.permute.xlu0 %5240
    %5243 = vset.pattern.permute.xlu0 7
    %5244 = vperm.xlu0 %5243, %v2482
    %v5245 = vpop.permute.xlu0 %5244
    %5247 = vset.pattern.permute.xlu0 7
    %5248 = vperm.xlu0 %5247, %v2483
    %v5249 = vpop.permute.xlu0 %5248
    %5251 = vset.pattern.permute.xlu0 7
    %5252 = vperm.xlu0 %5251, %v2484
    %v5253 = vpop.permute.xlu0 %5252
    %5255 = vset.pattern.permute.xlu0 7
    %5256 = vperm.xlu0 %5255, %v2485
    %v5257 = vpop.permute.xlu0 %5256
    %5259 = vset.pattern.permute.xlu0 7
    %5260 = vperm.xlu0 %5259, %v2486
    %v5261 = vpop.permute.xlu0 %5260
    %5263 = vset.pattern.permute.xlu0 7
    %5264 = vperm.xlu0 %5263, %v2487
    %v5265 = vpop.permute.xlu0 %5264
    %5267 = vset.pattern.permute.xlu0 7
    %5268 = vperm.xlu0 %5267, %v2488
    %v5269 = vpop.permute.xlu0 %5268
    %5271 = vset.pattern.permute.xlu0 7
    %5272 = vperm.xlu0 %5271, %v2489
    %v5273 = vpop.permute.xlu0 %5272
    %5275 = vset.pattern.permute.xlu0 7
    %5276 = vperm.xlu0 %5275, %v2490
    %v5277 = vpop.permute.xlu0 %5276
    %5279 = vset.pattern.permute.xlu0 7
    %5280 = vperm.xlu0 %5279, %v2491
    %v5281 = vpop.permute.xlu0 %5280
    %5283 = vset.pattern.permute.xlu0 7
    %5284 = vperm.xlu0 %5283, %v2492
    %v5285 = vpop.permute.xlu0 %5284
    %5287 = vset.pattern.permute.xlu0 7
    %5288 = vperm.xlu0 %5287, %v2493
    %v5289 = vpop.permute.xlu0 %5288
    %5291 = vset.pattern.permute.xlu0 7
    %5292 = vperm.xlu0 %5291, %v2494
    %v5293 = vpop.permute.xlu0 %5292
    %5295 = vset.pattern.permute.xlu0 7
    %5296 = vperm.xlu0 %5295, %v2495
    %v5297 = vpop.permute.xlu0 %5296
    %5299 = vset.pattern.permute.xlu0 7
    %5300 = vperm.xlu0 %5299, %v2496
    %v5301 = vpop.permute.xlu0 %5300
    %5303 = vset.pattern.permute.xlu0 7
    %5304 = vperm.xlu0 %5303, %v2497
    %v5305 = vpop.permute.xlu0 %5304
    %5307 = vset.pattern.permute.xlu0 7
    %5308 = vperm.xlu0 %5307, %v2498
    %v5309 = vpop.permute.xlu0 %5308
    %5311 = vset.pattern.permute.xlu0 7
    %5312 = vperm.xlu0 %5311, %v2499
    %v5313 = vpop.permute.xlu0 %5312
    %5315 = vset.pattern.permute.xlu0 7
    %5316 = vperm.xlu0 %5315, %v2500
    %v5317 = vpop.permute.xlu0 %5316
    %5319 = vset.pattern.permute.xlu0 7
    %5320 = vperm.xlu0 %5319, %v2501
    %v5321 = vpop.permute.xlu0 %5320
    %5323 = vset.pattern.permute.xlu0 7
    %5324 = vperm.xlu0 %5323, %v2502
    %v5325 = vpop.permute.xlu0 %5324
    %5327 = vset.pattern.permute.xlu0 7
    %5328 = vperm.xlu0 %5327, %v2503
    %v5329 = vpop.permute.xlu0 %5328
    %5331 = vset.pattern.permute.xlu0 7
    %5332 = vperm.xlu0 %5331, %v2504
    %v5333 = vpop.permute.xlu0 %5332
    %5335 = vset.pattern.permute.xlu0 7
    %5336 = vperm.xlu0 %5335, %v2505
    %v5337 = vpop.permute.xlu0 %5336
    %5339 = vset.pattern.permute.xlu0 7
    %5340 = vperm.xlu0 %5339, %v2506
    %v5341 = vpop.permute.xlu0 %5340
    %5343 = vset.pattern.permute.xlu0 7
    %5344 = vperm.xlu0 %5343, %v2507
    %v5345 = vpop.permute.xlu0 %5344
    %5347 = vset.pattern.permute.xlu0 7
    %5348 = vperm.xlu0 %5347, %v2508
    %v5349 = vpop.permute.xlu0 %5348
    %5351 = vset.pattern.permute.xlu0 7
    %5352 = vperm.xlu0 %5351, %v2509
    %v5353 = vpop.permute.xlu0 %5352
    %5355 = vset.pattern.permute.xlu0 7
    %5356 = vperm.xlu0 %5355, %v2510
    %v5357 = vpop.permute.xlu0 %5356
    %5359 = vset.pattern.permute.xlu0 7
    %5360 = vperm.xlu0 %5359, %v2511
    %v5361 = vpop.permute.xlu0 %5360
    %5363 = vset.pattern.permute.xlu0 7
    %5364 = vperm.xlu0 %5363, %v2512
    %v5365 = vpop.permute.xlu0 %5364
    %5367 = vset.pattern.permute.xlu0 7
    %5368 = vperm.xlu0 %5367, %v2513
    %v5369 = vpop.permute.xlu0 %5368
    %5371 = vset.pattern.permute.xlu0 7
    %5372 = vperm.xlu0 %5371, %v2514
    %v5373 = vpop.permute.xlu0 %5372
    %5375 = vset.pattern.permute.xlu0 7
    %5376 = vperm.xlu0 %5375, %v2515
    %v5377 = vpop.permute.xlu0 %5376
    %5379 = vset.pattern.permute.xlu0 7
    %5380 = vperm.xlu0 %5379, %v2516
    %v5381 = vpop.permute.xlu0 %5380
    %5383 = vset.pattern.permute.xlu0 7
    %5384 = vperm.xlu0 %5383, %v2517
    %v5385 = vpop.permute.xlu0 %5384
    %5387 = vset.pattern.permute.xlu0 7
    %5388 = vperm.xlu0 %5387, %v2518
    %v5389 = vpop.permute.xlu0 %5388
    %5391 = vset.pattern.permute.xlu0 7
    %5392 = vperm.xlu0 %5391, %v2519
    %v5393 = vpop.permute.xlu0 %5392
    %5395 = vset.pattern.permute.xlu0 7
    %5396 = vperm.xlu0 %5395, %v2520
    %v5397 = vpop.permute.xlu0 %5396
    %5399 = vset.pattern.permute.xlu0 7
    %5400 = vperm.xlu0 %5399, %v2521
    %v5401 = vpop.permute.xlu0 %5400
    %5403 = vset.pattern.permute.xlu0 7
    %5404 = vperm.xlu0 %5403, %v2522
    %v5405 = vpop.permute.xlu0 %5404
    %5407 = vset.pattern.permute.xlu0 7
    %5408 = vperm.xlu0 %5407, %v2523
    %v5409 = vpop.permute.xlu0 %5408
    %5411 = vset.pattern.permute.xlu0 7
    %5412 = vperm.xlu0 %5411, %v2524
    %v5413 = vpop.permute.xlu0 %5412
    %5415 = vset.pattern.permute.xlu0 7
    %5416 = vperm.xlu0 %5415, %v2525
    %v5417 = vpop.permute.xlu0 %5416
    %5419 = vset.pattern.permute.xlu0 7
    %5420 = vperm.xlu0 %5419, %v2526
    %v5421 = vpop.permute.xlu0 %5420
    %5423 = vset.pattern.permute.xlu0 7
    %5424 = vperm.xlu0 %5423, %v2527
    %v5425 = vpop.permute.xlu0 %5424
    %5427 = vset.pattern.permute.xlu0 7
    %5428 = vperm.xlu0 %5427, %v2528
    %v5429 = vpop.permute.xlu0 %5428
    %5431 = vset.pattern.permute.xlu0 7
    %5432 = vperm.xlu0 %5431, %v2529
    %v5433 = vpop.permute.xlu0 %5432
    %5435 = vset.pattern.permute.xlu0 7
    %5436 = vperm.xlu0 %5435, %v2530
    %v5437 = vpop.permute.xlu0 %5436
    %5439 = vset.pattern.permute.xlu0 7
    %5440 = vperm.xlu0 %5439, %v2531
    %v5441 = vpop.permute.xlu0 %5440
    %5443 = vset.pattern.permute.xlu0 7
    %5444 = vperm.xlu0 %5443, %v2532
    %v5445 = vpop.permute.xlu0 %5444
    %5447 = vset.pattern.permute.xlu0 7
    %5448 = vperm.xlu0 %5447, %v2533
    %v5449 = vpop.permute.xlu0 %5448
    %5451 = vset.pattern.permute.xlu0 7
    %5452 = vperm.xlu0 %5451, %v2534
    %v5453 = vpop.permute.xlu0 %5452
    %5455 = vset.pattern.permute.xlu0 7
    %5456 = vperm.xlu0 %5455, %v2535
    %v5457 = vpop.permute.xlu0 %5456
    %5459 = vset.pattern.permute.xlu0 7
    %5460 = vperm.xlu0 %5459, %v2536
    %v5461 = vpop.permute.xlu0 %5460
    %5463 = vset.pattern.permute.xlu0 7
    %5464 = vperm.xlu0 %5463, %v2537
    %v5465 = vpop.permute.xlu0 %5464
    %5467 = vset.pattern.permute.xlu0 7
    %5468 = vperm.xlu0 %5467, %v2538
    %v5469 = vpop.permute.xlu0 %5468
    %5471 = vset.pattern.permute.xlu0 7
    %5472 = vperm.xlu0 %5471, %v2539
    %v5473 = vpop.permute.xlu0 %5472
    %5475 = vset.pattern.permute.xlu0 7
    %5476 = vperm.xlu0 %5475, %v2540
    %v5477 = vpop.permute.xlu0 %5476
    %5479 = vset.pattern.permute.xlu0 7
    %5480 = vperm.xlu0 %5479, %v2541
    %v5481 = vpop.permute.xlu0 %5480
    %5483 = vset.pattern.permute.xlu0 7
    %5484 = vperm.xlu0 %5483, %v2542
    %v5485 = vpop.permute.xlu0 %5484
    %v5487 = vmul.f32 %v5233, %v1874
    %v5488 = vmul.f32 %v5237, %v1878
    %v5489 = vmul.f32 %v5241, %v1884
    %v5490 = vmul.f32 %v5245, %v1888
    %v5491 = vmul.f32 %v5249, %v1894
    %v5492 = vmul.f32 %v5253, %v1898
    %v5493 = vmul.f32 %v5257, %v1904
    %v5494 = vmul.f32 %v5261, %v1908
    %v5495 = vmul.f32 %v5265, %v1914
    %v5496 = vmul.f32 %v5269, %v1918
    %v5497 = vmul.f32 %v5273, %v1924
    %v5498 = vmul.f32 %v5277, %v1928
    %v5499 = vmul.f32 %v5281, %v1934
    %v5500 = vmul.f32 %v5285, %v1938
    %v5501 = vmul.f32 %v5289, %v1944
    %v5502 = vmul.f32 %v5293, %v1948
    %v5503 = vmul.f32 %v5297, %v1954
    %v5504 = vmul.f32 %v5301, %v1958
    %v5505 = vmul.f32 %v5305, %v1964
    %v5506 = vmul.f32 %v5309, %v1968
    %v5507 = vmul.f32 %v5313, %v1974
    %v5508 = vmul.f32 %v5317, %v1978
    %v5509 = vmul.f32 %v5321, %v1984
    %v5510 = vmul.f32 %v5325, %v1988
    %v5511 = vmul.f32 %v5329, %v1994
    %v5512 = vmul.f32 %v5333, %v1998
    %v5513 = vmul.f32 %v5337, %v2004
    %v5514 = vmul.f32 %v5341, %v2008
    %v5515 = vmul.f32 %v5345, %v2014
    %v5516 = vmul.f32 %v5349, %v2018
    %v5517 = vmul.f32 %v5353, %v2024
    %v5518 = vmul.f32 %v5357, %v2028
    %v5519 = vmul.f32 %v5361, %v2034
    %v5520 = vmul.f32 %v5365, %v2038
    %v5521 = vmul.f32 %v5369, %v2044
    %v5522 = vmul.f32 %v5373, %v2048
    %v5523 = vmul.f32 %v5377, %v2054
    %v5524 = vmul.f32 %v5381, %v2058
    %v5525 = vmul.f32 %v5385, %v2064
    %v5526 = vmul.f32 %v5389, %v2068
    %v5527 = vmul.f32 %v5393, %v2074
    %v5528 = vmul.f32 %v5397, %v2078
    %v5529 = vmul.f32 %v5401, %v2084
    %v5530 = vmul.f32 %v5405, %v2088
    %v5531 = vmul.f32 %v5409, %v2094
    %v5532 = vmul.f32 %v5413, %v2098
    %v5533 = vmul.f32 %v5417, %v2104
    %v5534 = vmul.f32 %v5421, %v2108
    %v5535 = vmul.f32 %v5425, %v2114
    %v5536 = vmul.f32 %v5429, %v2118
    %v5537 = vmul.f32 %v5433, %v2124
    %v5538 = vmul.f32 %v5437, %v2128
    %v5539 = vmul.f32 %v5441, %v2134
    %v5540 = vmul.f32 %v5445, %v2138
    %v5541 = vmul.f32 %v5449, %v2144
    %v5542 = vmul.f32 %v5453, %v2148
    %v5543 = vmul.f32 %v5457, %v2154
    %v5544 = vmul.f32 %v5461, %v2158
    %v5545 = vmul.f32 %v5465, %v2164
    %v5546 = vmul.f32 %v5469, %v2168
    %v5547 = vmul.f32 %v5473, %v2174
    %v5548 = vmul.f32 %v5477, %v2178
    %v5549 = vmul.f32 %v5481, %v2184
    %v5550 = vmul.f32 %v5485, %v2188
    %v5551 = vadd.f32 %v5167, %v5487
    %v5552 = vadd.f32 %v5168, %v5488
    %v5553 = vadd.f32 %v5169, %v5489
    %v5554 = vadd.f32 %v5170, %v5490
    %v5555 = vadd.f32 %v5171, %v5491
    %v5556 = vadd.f32 %v5172, %v5492
    %v5557 = vadd.f32 %v5173, %v5493
    %v5558 = vadd.f32 %v5174, %v5494
    %v5559 = vadd.f32 %v5175, %v5495
    %v5560 = vadd.f32 %v5176, %v5496
    %v5561 = vadd.f32 %v5177, %v5497
    %v5562 = vadd.f32 %v5178, %v5498
    %v5563 = vadd.f32 %v5179, %v5499
    %v5564 = vadd.f32 %v5180, %v5500
    %v5565 = vadd.f32 %v5181, %v5501
    %v5566 = vadd.f32 %v5182, %v5502
    %v5567 = vadd.f32 %v5183, %v5503
    %v5568 = vadd.f32 %v5184, %v5504
    %v5569 = vadd.f32 %v5185, %v5505
    %v5570 = vadd.f32 %v5186, %v5506
    %v5571 = vadd.f32 %v5187, %v5507
    %v5572 = vadd.f32 %v5188, %v5508
    %v5573 = vadd.f32 %v5189, %v5509
    %v5574 = vadd.f32 %v5190, %v5510
    %v5575 = vadd.f32 %v5191, %v5511
    %v5576 = vadd.f32 %v5192, %v5512
    %v5577 = vadd.f32 %v5193, %v5513
    %v5578 = vadd.f32 %v5194, %v5514
    %v5579 = vadd.f32 %v5195, %v5515
    %v5580 = vadd.f32 %v5196, %v5516
    %v5581 = vadd.f32 %v5197, %v5517
    %v5582 = vadd.f32 %v5198, %v5518
    %v5583 = vadd.f32 %v5199, %v5519
    %v5584 = vadd.f32 %v5200, %v5520
    %v5585 = vadd.f32 %v5201, %v5521
    %v5586 = vadd.f32 %v5202, %v5522
    %v5587 = vadd.f32 %v5203, %v5523
    %v5588 = vadd.f32 %v5204, %v5524
    %v5589 = vadd.f32 %v5205, %v5525
    %v5590 = vadd.f32 %v5206, %v5526
    %v5591 = vadd.f32 %v5207, %v5527
    %v5592 = vadd.f32 %v5208, %v5528
    %v5593 = vadd.f32 %v5209, %v5529
    %v5594 = vadd.f32 %v5210, %v5530
    %v5595 = vadd.f32 %v5211, %v5531
    %v5596 = vadd.f32 %v5212, %v5532
    %v5597 = vadd.f32 %v5213, %v5533
    %v5598 = vadd.f32 %v5214, %v5534
    %v5599 = vadd.f32 %v5215, %v5535
    %v5600 = vadd.f32 %v5216, %v5536
    %v5601 = vadd.f32 %v5217, %v5537
    %v5602 = vadd.f32 %v5218, %v5538
    %v5603 = vadd.f32 %v5219, %v5539
    %v5604 = vadd.f32 %v5220, %v5540
    %v5605 = vadd.f32 %v5221, %v5541
    %v5606 = vadd.f32 %v5222, %v5542
    %v5607 = vadd.f32 %v5223, %v5543
    %v5608 = vadd.f32 %v5224, %v5544
    %v5609 = vadd.f32 %v5225, %v5545
    %v5610 = vadd.f32 %v5226, %v5546
    %v5611 = vadd.f32 %v5227, %v5547
    %v5612 = vadd.f32 %v5228, %v5548
    %v5613 = vadd.f32 %v5229, %v5549
    %v5614 = vadd.f32 %v5230, %v5550
    %5615 = vset.pattern.permute.xlu0 8
    %5616 = vperm.xlu0 %5615, %v2479
    %v5617 = vpop.permute.xlu0 %5616
    %5619 = vset.pattern.permute.xlu0 8
    %5620 = vperm.xlu0 %5619, %v2480
    %v5621 = vpop.permute.xlu0 %5620
    %5623 = vset.pattern.permute.xlu0 8
    %5624 = vperm.xlu0 %5623, %v2481
    %v5625 = vpop.permute.xlu0 %5624
    %5627 = vset.pattern.permute.xlu0 8
    %5628 = vperm.xlu0 %5627, %v2482
    %v5629 = vpop.permute.xlu0 %5628
    %5631 = vset.pattern.permute.xlu0 8
    %5632 = vperm.xlu0 %5631, %v2483
    %v5633 = vpop.permute.xlu0 %5632
    %5635 = vset.pattern.permute.xlu0 8
    %5636 = vperm.xlu0 %5635, %v2484
    %v5637 = vpop.permute.xlu0 %5636
    %5639 = vset.pattern.permute.xlu0 8
    %5640 = vperm.xlu0 %5639, %v2485
    %v5641 = vpop.permute.xlu0 %5640
    %5643 = vset.pattern.permute.xlu0 8
    %5644 = vperm.xlu0 %5643, %v2486
    %v5645 = vpop.permute.xlu0 %5644
    %5647 = vset.pattern.permute.xlu0 8
    %5648 = vperm.xlu0 %5647, %v2487
    %v5649 = vpop.permute.xlu0 %5648
    %5651 = vset.pattern.permute.xlu0 8
    %5652 = vperm.xlu0 %5651, %v2488
    %v5653 = vpop.permute.xlu0 %5652
    %5655 = vset.pattern.permute.xlu0 8
    %5656 = vperm.xlu0 %5655, %v2489
    %v5657 = vpop.permute.xlu0 %5656
    %5659 = vset.pattern.permute.xlu0 8
    %5660 = vperm.xlu0 %5659, %v2490
    %v5661 = vpop.permute.xlu0 %5660
    %5663 = vset.pattern.permute.xlu0 8
    %5664 = vperm.xlu0 %5663, %v2491
    %v5665 = vpop.permute.xlu0 %5664
    %5667 = vset.pattern.permute.xlu0 8
    %5668 = vperm.xlu0 %5667, %v2492
    %v5669 = vpop.permute.xlu0 %5668
    %5671 = vset.pattern.permute.xlu0 8
    %5672 = vperm.xlu0 %5671, %v2493
    %v5673 = vpop.permute.xlu0 %5672
    %5675 = vset.pattern.permute.xlu0 8
    %5676 = vperm.xlu0 %5675, %v2494
    %v5677 = vpop.permute.xlu0 %5676
    %5679 = vset.pattern.permute.xlu0 8
    %5680 = vperm.xlu0 %5679, %v2495
    %v5681 = vpop.permute.xlu0 %5680
    %5683 = vset.pattern.permute.xlu0 8
    %5684 = vperm.xlu0 %5683, %v2496
    %v5685 = vpop.permute.xlu0 %5684
    %5687 = vset.pattern.permute.xlu0 8
    %5688 = vperm.xlu0 %5687, %v2497
    %v5689 = vpop.permute.xlu0 %5688
    %5691 = vset.pattern.permute.xlu0 8
    %5692 = vperm.xlu0 %5691, %v2498
    %v5693 = vpop.permute.xlu0 %5692
    %5695 = vset.pattern.permute.xlu0 8
    %5696 = vperm.xlu0 %5695, %v2499
    %v5697 = vpop.permute.xlu0 %5696
    %5699 = vset.pattern.permute.xlu0 8
    %5700 = vperm.xlu0 %5699, %v2500
    %v5701 = vpop.permute.xlu0 %5700
    %5703 = vset.pattern.permute.xlu0 8
    %5704 = vperm.xlu0 %5703, %v2501
    %v5705 = vpop.permute.xlu0 %5704
    %5707 = vset.pattern.permute.xlu0 8
    %5708 = vperm.xlu0 %5707, %v2502
    %v5709 = vpop.permute.xlu0 %5708
    %5711 = vset.pattern.permute.xlu0 8
    %5712 = vperm.xlu0 %5711, %v2503
    %v5713 = vpop.permute.xlu0 %5712
    %5715 = vset.pattern.permute.xlu0 8
    %5716 = vperm.xlu0 %5715, %v2504
    %v5717 = vpop.permute.xlu0 %5716
    %5719 = vset.pattern.permute.xlu0 8
    %5720 = vperm.xlu0 %5719, %v2505
    %v5721 = vpop.permute.xlu0 %5720
    %5723 = vset.pattern.permute.xlu0 8
    %5724 = vperm.xlu0 %5723, %v2506
    %v5725 = vpop.permute.xlu0 %5724
    %5727 = vset.pattern.permute.xlu0 8
    %5728 = vperm.xlu0 %5727, %v2507
    %v5729 = vpop.permute.xlu0 %5728
    %5731 = vset.pattern.permute.xlu0 8
    %5732 = vperm.xlu0 %5731, %v2508
    %v5733 = vpop.permute.xlu0 %5732
    %5735 = vset.pattern.permute.xlu0 8
    %5736 = vperm.xlu0 %5735, %v2509
    %v5737 = vpop.permute.xlu0 %5736
    %5739 = vset.pattern.permute.xlu0 8
    %5740 = vperm.xlu0 %5739, %v2510
    %v5741 = vpop.permute.xlu0 %5740
    %5743 = vset.pattern.permute.xlu0 8
    %5744 = vperm.xlu0 %5743, %v2511
    %v5745 = vpop.permute.xlu0 %5744
    %5747 = vset.pattern.permute.xlu0 8
    %5748 = vperm.xlu0 %5747, %v2512
    %v5749 = vpop.permute.xlu0 %5748
    %5751 = vset.pattern.permute.xlu0 8
    %5752 = vperm.xlu0 %5751, %v2513
    %v5753 = vpop.permute.xlu0 %5752
    %5755 = vset.pattern.permute.xlu0 8
    %5756 = vperm.xlu0 %5755, %v2514
    %v5757 = vpop.permute.xlu0 %5756
    %5759 = vset.pattern.permute.xlu0 8
    %5760 = vperm.xlu0 %5759, %v2515
    %v5761 = vpop.permute.xlu0 %5760
    %5763 = vset.pattern.permute.xlu0 8
    %5764 = vperm.xlu0 %5763, %v2516
    %v5765 = vpop.permute.xlu0 %5764
    %5767 = vset.pattern.permute.xlu0 8
    %5768 = vperm.xlu0 %5767, %v2517
    %v5769 = vpop.permute.xlu0 %5768
    %5771 = vset.pattern.permute.xlu0 8
    %5772 = vperm.xlu0 %5771, %v2518
    %v5773 = vpop.permute.xlu0 %5772
    %5775 = vset.pattern.permute.xlu0 8
    %5776 = vperm.xlu0 %5775, %v2519
    %v5777 = vpop.permute.xlu0 %5776
    %5779 = vset.pattern.permute.xlu0 8
    %5780 = vperm.xlu0 %5779, %v2520
    %v5781 = vpop.permute.xlu0 %5780
    %5783 = vset.pattern.permute.xlu0 8
    %5784 = vperm.xlu0 %5783, %v2521
    %v5785 = vpop.permute.xlu0 %5784
    %5787 = vset.pattern.permute.xlu0 8
    %5788 = vperm.xlu0 %5787, %v2522
    %v5789 = vpop.permute.xlu0 %5788
    %5791 = vset.pattern.permute.xlu0 8
    %5792 = vperm.xlu0 %5791, %v2523
    %v5793 = vpop.permute.xlu0 %5792
    %5795 = vset.pattern.permute.xlu0 8
    %5796 = vperm.xlu0 %5795, %v2524
    %v5797 = vpop.permute.xlu0 %5796
    %5799 = vset.pattern.permute.xlu0 8
    %5800 = vperm.xlu0 %5799, %v2525
    %v5801 = vpop.permute.xlu0 %5800
    %5803 = vset.pattern.permute.xlu0 8
    %5804 = vperm.xlu0 %5803, %v2526
    %v5805 = vpop.permute.xlu0 %5804
    %5807 = vset.pattern.permute.xlu0 8
    %5808 = vperm.xlu0 %5807, %v2527
    %v5809 = vpop.permute.xlu0 %5808
    %5811 = vset.pattern.permute.xlu0 8
    %5812 = vperm.xlu0 %5811, %v2528
    %v5813 = vpop.permute.xlu0 %5812
    %5815 = vset.pattern.permute.xlu0 8
    %5816 = vperm.xlu0 %5815, %v2529
    %v5817 = vpop.permute.xlu0 %5816
    %5819 = vset.pattern.permute.xlu0 8
    %5820 = vperm.xlu0 %5819, %v2530
    %v5821 = vpop.permute.xlu0 %5820
    %5823 = vset.pattern.permute.xlu0 8
    %5824 = vperm.xlu0 %5823, %v2531
    %v5825 = vpop.permute.xlu0 %5824
    %5827 = vset.pattern.permute.xlu0 8
    %5828 = vperm.xlu0 %5827, %v2532
    %v5829 = vpop.permute.xlu0 %5828
    %5831 = vset.pattern.permute.xlu0 8
    %5832 = vperm.xlu0 %5831, %v2533
    %v5833 = vpop.permute.xlu0 %5832
    %5835 = vset.pattern.permute.xlu0 8
    %5836 = vperm.xlu0 %5835, %v2534
    %v5837 = vpop.permute.xlu0 %5836
    %5839 = vset.pattern.permute.xlu0 8
    %5840 = vperm.xlu0 %5839, %v2535
    %v5841 = vpop.permute.xlu0 %5840
    %5843 = vset.pattern.permute.xlu0 8
    %5844 = vperm.xlu0 %5843, %v2536
    %v5845 = vpop.permute.xlu0 %5844
    %5847 = vset.pattern.permute.xlu0 8
    %5848 = vperm.xlu0 %5847, %v2537
    %v5849 = vpop.permute.xlu0 %5848
    %5851 = vset.pattern.permute.xlu0 8
    %5852 = vperm.xlu0 %5851, %v2538
    %v5853 = vpop.permute.xlu0 %5852
    %5855 = vset.pattern.permute.xlu0 8
    %5856 = vperm.xlu0 %5855, %v2539
    %v5857 = vpop.permute.xlu0 %5856
    %5859 = vset.pattern.permute.xlu0 8
    %5860 = vperm.xlu0 %5859, %v2540
    %v5861 = vpop.permute.xlu0 %5860
    %5863 = vset.pattern.permute.xlu0 8
    %5864 = vperm.xlu0 %5863, %v2541
    %v5865 = vpop.permute.xlu0 %5864
    %5867 = vset.pattern.permute.xlu0 8
    %5868 = vperm.xlu0 %5867, %v2542
    %v5869 = vpop.permute.xlu0 %5868
    %v5871 = vmul.f32 %v5617, %v2225
    %v5872 = vmul.f32 %v5621, %v2228
    %v5873 = vmul.f32 %v5625, %v2233
    %v5874 = vmul.f32 %v5629, %v2236
    %v5875 = vmul.f32 %v5633, %v2241
    %v5876 = vmul.f32 %v5637, %v2244
    %v5877 = vmul.f32 %v5641, %v2249
    %v5878 = vmul.f32 %v5645, %v2252
    %v5879 = vmul.f32 %v5649, %v2257
    %v5880 = vmul.f32 %v5653, %v2260
    %v5881 = vmul.f32 %v5657, %v2265
    %v5882 = vmul.f32 %v5661, %v2268
    %v5883 = vmul.f32 %v5665, %v2273
    %v5884 = vmul.f32 %v5669, %v2276
    %v5885 = vmul.f32 %v5673, %v2281
    %v5886 = vmul.f32 %v5677, %v2284
    %v5887 = vmul.f32 %v5681, %v2289
    %v5888 = vmul.f32 %v5685, %v2292
    %v5889 = vmul.f32 %v5689, %v2297
    %v5890 = vmul.f32 %v5693, %v2300
    %v5891 = vmul.f32 %v5697, %v2305
    %v5892 = vmul.f32 %v5701, %v2308
    %v5893 = vmul.f32 %v5705, %v2313
    %v5894 = vmul.f32 %v5709, %v2316
    %v5895 = vmul.f32 %v5713, %v2321
    %v5896 = vmul.f32 %v5717, %v2324
    %v5897 = vmul.f32 %v5721, %v2329
    %v5898 = vmul.f32 %v5725, %v2332
    %v5899 = vmul.f32 %v5729, %v2337
    %v5900 = vmul.f32 %v5733, %v2340
    %v5901 = vmul.f32 %v5737, %v2345
    %v5902 = vmul.f32 %v5741, %v2348
    %v5903 = vmul.f32 %v5745, %v2353
    %v5904 = vmul.f32 %v5749, %v2356
    %v5905 = vmul.f32 %v5753, %v2361
    %v5906 = vmul.f32 %v5757, %v2364
    %v5907 = vmul.f32 %v5761, %v2369
    %v5908 = vmul.f32 %v5765, %v2372
    %v5909 = vmul.f32 %v5769, %v2377
    %v5910 = vmul.f32 %v5773, %v2380
    %v5911 = vmul.f32 %v5777, %v2385
    %v5912 = vmul.f32 %v5781, %v2388
    %v5913 = vmul.f32 %v5785, %v2393
    %v5914 = vmul.f32 %v5789, %v2396
    %v5915 = vmul.f32 %v5793, %v2401
    %v5916 = vmul.f32 %v5797, %v2404
    %v5917 = vmul.f32 %v5801, %v2409
    %v5918 = vmul.f32 %v5805, %v2412
    %v5919 = vmul.f32 %v5809, %v2417
    %v5920 = vmul.f32 %v5813, %v2420
    %v5921 = vmul.f32 %v5817, %v2425
    %v5922 = vmul.f32 %v5821, %v2428
    %v5923 = vmul.f32 %v5825, %v2433
    %v5924 = vmul.f32 %v5829, %v2436
    %v5925 = vmul.f32 %v5833, %v2441
    %v5926 = vmul.f32 %v5837, %v2444
    %v5927 = vmul.f32 %v5841, %v2449
    %v5928 = vmul.f32 %v5845, %v2452
    %v5929 = vmul.f32 %v5849, %v2457
    %v5930 = vmul.f32 %v5853, %v2460
    %v5931 = vmul.f32 %v5857, %v2465
    %v5932 = vmul.f32 %v5861, %v2468
    %v5933 = vmul.f32 %v5865, %v2473
    %v5934 = vmul.f32 %v5869, %v2476
    %v5935 = vadd.f32 %v5551, %v5871
    %v5936 = vadd.f32 %v5552, %v5872
    %v5937 = vadd.f32 %v5553, %v5873
    %v5938 = vadd.f32 %v5554, %v5874
    %v5939 = vadd.f32 %v5555, %v5875
    %v5940 = vadd.f32 %v5556, %v5876
    %v5941 = vadd.f32 %v5557, %v5877
    %v5942 = vadd.f32 %v5558, %v5878
    %v5943 = vadd.f32 %v5559, %v5879
    %v5944 = vadd.f32 %v5560, %v5880
    %v5945 = vadd.f32 %v5561, %v5881
    %v5946 = vadd.f32 %v5562, %v5882
    %v5947 = vadd.f32 %v5563, %v5883
    %v5948 = vadd.f32 %v5564, %v5884
    %v5949 = vadd.f32 %v5565, %v5885
    %v5950 = vadd.f32 %v5566, %v5886
    %v5951 = vadd.f32 %v5567, %v5887
    %v5952 = vadd.f32 %v5568, %v5888
    %v5953 = vadd.f32 %v5569, %v5889
    %v5954 = vadd.f32 %v5570, %v5890
    %v5955 = vadd.f32 %v5571, %v5891
    %v5956 = vadd.f32 %v5572, %v5892
    %v5957 = vadd.f32 %v5573, %v5893
    %v5958 = vadd.f32 %v5574, %v5894
    %v5959 = vadd.f32 %v5575, %v5895
    %v5960 = vadd.f32 %v5576, %v5896
    %v5961 = vadd.f32 %v5577, %v5897
    %v5962 = vadd.f32 %v5578, %v5898
    %v5963 = vadd.f32 %v5579, %v5899
    %v5964 = vadd.f32 %v5580, %v5900
    %v5965 = vadd.f32 %v5581, %v5901
    %v5966 = vadd.f32 %v5582, %v5902
    %v5967 = vadd.f32 %v5583, %v5903
    %v5968 = vadd.f32 %v5584, %v5904
    %v5969 = vadd.f32 %v5585, %v5905
    %v5970 = vadd.f32 %v5586, %v5906
    %v5971 = vadd.f32 %v5587, %v5907
    %v5972 = vadd.f32 %v5588, %v5908
    %v5973 = vadd.f32 %v5589, %v5909
    %v5974 = vadd.f32 %v5590, %v5910
    %v5975 = vadd.f32 %v5591, %v5911
    %v5976 = vadd.f32 %v5592, %v5912
    %v5977 = vadd.f32 %v5593, %v5913
    %v5978 = vadd.f32 %v5594, %v5914
    %v5979 = vadd.f32 %v5595, %v5915
    %v5980 = vadd.f32 %v5596, %v5916
    %v5981 = vadd.f32 %v5597, %v5917
    %v5982 = vadd.f32 %v5598, %v5918
    %v5983 = vadd.f32 %v5599, %v5919
    %v5984 = vadd.f32 %v5600, %v5920
    %v5985 = vadd.f32 %v5601, %v5921
    %v5986 = vadd.f32 %v5602, %v5922
    %v5987 = vadd.f32 %v5603, %v5923
    %v5988 = vadd.f32 %v5604, %v5924
    %v5989 = vadd.f32 %v5605, %v5925
    %v5990 = vadd.f32 %v5606, %v5926
    %v5991 = vadd.f32 %v5607, %v5927
    %v5992 = vadd.f32 %v5608, %v5928
    %v5993 = vadd.f32 %v5609, %v5929
    %v5994 = vadd.f32 %v5610, %v5930
    %v5995 = vadd.f32 %v5611, %v5931
    %v5996 = vadd.f32 %v5612, %v5932
    %v5997 = vadd.f32 %v5613, %v5933
    %v5998 = vadd.f32 %v5614, %v5934
    %v5999 = vlaneseq
    %v6000 = vshrl.u32 %v5999, 7
    %v6001 = vadd.s32 %v6000, 8
    %v6002 = vadd.s32 %v6000, 16
    %v6003 = vadd.s32 %v6000, 24
    %v6004 = vadd.s32 %v6000, 32
    %v6005 = vadd.s32 %v6000, 40
    %v6006 = vadd.s32 %v6000, 48
    %v6007 = vadd.s32 %v6000, 56
    %v6008 = vld [vmem:[%s2] sm:$0xf]
    %v6009 = vlaneseq
    %v6010 = vshrl.u32 %v6009, 7
    %v6011 = vsub.s32 0, %v6010
    %v6012 = vrot.slane %v6008, %v6011
    %v6013 = vlaneseq
    %v6014 = vshrl.u32 %v6013, 7
    %v6015 = vsub.s32 1, %v6014
    %v6016 = vrot.slane %v6008, %v6015
    %v6017 = vlaneseq
    %v6018 = vshrl.u32 %v6017, 7
    %v6019 = vsub.s32 2, %v6018
    %v6020 = vrot.slane %v6008, %v6019
    %v6021 = vlaneseq
    %v6022 = vshrl.u32 %v6021, 7
    %v6023 = vsub.s32 3, %v6022
    %v6024 = vrot.slane %v6008, %v6023
    %vm6025 = vcmp.eq.s32.totalorder %v6012, %v6000
    %vm6026 = vcmp.eq.s32.totalorder %v6016, %v6000
    %vm6027 = vcmp.eq.s32.totalorder %v6020, %v6000
    %vm6028 = vcmp.eq.s32.totalorder %v6024, %v6000
    %vm6029 = vcmp.eq.s32.totalorder %v6012, %v6001
    %vm6030 = vcmp.eq.s32.totalorder %v6016, %v6001
    %vm6031 = vcmp.eq.s32.totalorder %v6020, %v6001
    %vm6032 = vcmp.eq.s32.totalorder %v6024, %v6001
    %vm6033 = vcmp.eq.s32.totalorder %v6012, %v6002
    %vm6034 = vcmp.eq.s32.totalorder %v6016, %v6002
    %vm6035 = vcmp.eq.s32.totalorder %v6020, %v6002
    %vm6036 = vcmp.eq.s32.totalorder %v6024, %v6002
    %vm6037 = vcmp.eq.s32.totalorder %v6012, %v6003
    %vm6038 = vcmp.eq.s32.totalorder %v6016, %v6003
    %vm6039 = vcmp.eq.s32.totalorder %v6020, %v6003
    %vm6040 = vcmp.eq.s32.totalorder %v6024, %v6003
    %vm6041 = vcmp.eq.s32.totalorder %v6012, %v6004
    %vm6042 = vcmp.eq.s32.totalorder %v6016, %v6004
    %vm6043 = vcmp.eq.s32.totalorder %v6020, %v6004
    %vm6044 = vcmp.eq.s32.totalorder %v6024, %v6004
    %vm6045 = vcmp.eq.s32.totalorder %v6012, %v6005
    %vm6046 = vcmp.eq.s32.totalorder %v6016, %v6005
    %vm6047 = vcmp.eq.s32.totalorder %v6020, %v6005
    %vm6048 = vcmp.eq.s32.totalorder %v6024, %v6005
    %vm6049 = vcmp.eq.s32.totalorder %v6012, %v6006
    %vm6050 = vcmp.eq.s32.totalorder %v6016, %v6006
    %vm6051 = vcmp.eq.s32.totalorder %v6020, %v6006
    %vm6052 = vcmp.eq.s32.totalorder %v6024, %v6006
    %vm6053 = vcmp.eq.s32.totalorder %v6012, %v6007
    %vm6054 = vcmp.eq.s32.totalorder %v6016, %v6007
    %vm6055 = vcmp.eq.s32.totalorder %v6020, %v6007
    %vm6056 = vcmp.eq.s32.totalorder %v6024, %v6007
    %v6057 = vsel %vm6025, 1, 0
    %v6058 = vsel %vm6026, 1, 0
    %v6059 = vsel %vm6027, 1, 0
    %v6060 = vsel %vm6028, 1, 0
    %v6061 = vsel %vm6029, 1, 0
    %v6062 = vsel %vm6030, 1, 0
    %v6063 = vsel %vm6031, 1, 0
    %v6064 = vsel %vm6032, 1, 0
    %v6065 = vsel %vm6033, 1, 0
    %v6066 = vsel %vm6034, 1, 0
    %v6067 = vsel %vm6035, 1, 0
    %v6068 = vsel %vm6036, 1, 0
    %v6069 = vsel %vm6037, 1, 0
    %v6070 = vsel %vm6038, 1, 0
    %v6071 = vsel %vm6039, 1, 0
    %v6072 = vsel %vm6040, 1, 0
    %v6073 = vsel %vm6041, 1, 0
    %v6074 = vsel %vm6042, 1, 0
    %v6075 = vsel %vm6043, 1, 0
    %v6076 = vsel %vm6044, 1, 0
    %v6077 = vsel %vm6045, 1, 0
    %v6078 = vsel %vm6046, 1, 0
    %v6079 = vsel %vm6047, 1, 0
    %v6080 = vsel %vm6048, 1, 0
    %v6081 = vsel %vm6049, 1, 0
    %v6082 = vsel %vm6050, 1, 0
    %v6083 = vsel %vm6051, 1, 0
    %v6084 = vsel %vm6052, 1, 0
    %v6085 = vsel %vm6053, 1, 0
    %v6086 = vsel %vm6054, 1, 0
    %v6087 = vsel %vm6055, 1, 0
    %v6088 = vsel %vm6056, 1, 0
    %v6089 = vcvt.s32.f32 %v6057
    %v6090 = vcvt.s32.f32 %v6058
    %v6091 = vcvt.s32.f32 %v6059
    %v6092 = vcvt.s32.f32 %v6060
    %v6093 = vcvt.s32.f32 %v6061
    %v6094 = vcvt.s32.f32 %v6062
    %v6095 = vcvt.s32.f32 %v6063
    %v6096 = vcvt.s32.f32 %v6064
    %v6097 = vcvt.s32.f32 %v6065
    %v6098 = vcvt.s32.f32 %v6066
    %v6099 = vcvt.s32.f32 %v6067
    %v6100 = vcvt.s32.f32 %v6068
    %v6101 = vcvt.s32.f32 %v6069
    %v6102 = vcvt.s32.f32 %v6070
    %v6103 = vcvt.s32.f32 %v6071
    %v6104 = vcvt.s32.f32 %v6072
    %v6105 = vcvt.s32.f32 %v6073
    %v6106 = vcvt.s32.f32 %v6074
    %v6107 = vcvt.s32.f32 %v6075
    %v6108 = vcvt.s32.f32 %v6076
    %v6109 = vcvt.s32.f32 %v6077
    %v6110 = vcvt.s32.f32 %v6078
    %v6111 = vcvt.s32.f32 %v6079
    %v6112 = vcvt.s32.f32 %v6080
    %v6113 = vcvt.s32.f32 %v6081
    %v6114 = vcvt.s32.f32 %v6082
    %v6115 = vcvt.s32.f32 %v6083
    %v6116 = vcvt.s32.f32 %v6084
    %v6117 = vcvt.s32.f32 %v6085
    %v6118 = vcvt.s32.f32 %v6086
    %v6119 = vcvt.s32.f32 %v6087
    %v6120 = vcvt.s32.f32 %v6088
    %v6121 = vpack.c.bf16 %v6093, %v6089
    %v6122 = vpack.c.bf16 %v6094, %v6090
    %v6123 = vpack.c.bf16 %v6095, %v6091
    %v6124 = vpack.c.bf16 %v6096, %v6092
    %v6125 = vpack.c.bf16 %v6101, %v6097
    %v6126 = vpack.c.bf16 %v6102, %v6098
    %v6127 = vpack.c.bf16 %v6103, %v6099
    %v6128 = vpack.c.bf16 %v6104, %v6100
    %v6129 = vpack.c.bf16 %v6109, %v6105
    %v6130 = vpack.c.bf16 %v6110, %v6106
    %v6131 = vpack.c.bf16 %v6111, %v6107
    %v6132 = vpack.c.bf16 %v6112, %v6108
    %v6133 = vpack.c.bf16 %v6117, %v6113
    %v6134 = vpack.c.bf16 %v6118, %v6114
    %v6135 = vpack.c.bf16 %v6119, %v6115
    %v6136 = vpack.c.bf16 %v6120, %v6116
    %v6137 = vld [vmem:[#allocation7] sm:$0xff]
    %v6138 = vld [vmem:[#allocation7 + $0x8] sm:$0xff]
    %v6139 = vld [vmem:[#allocation7 + $0x10] sm:$0xff]
    %v6140 = vld [vmem:[#allocation7 + $0x18] sm:$0xff]
    %v6141 = vld [vmem:[#allocation7 + $0x20] sm:$0xff]
    %v6142 = vld [vmem:[#allocation7 + $0x28] sm:$0xff]
    %v6143 = vld [vmem:[#allocation7 + $0x30] sm:$0xff]
    %v6144 = vld [vmem:[#allocation7 + $0x38] sm:$0xff]
    %v6145 = vpack.c.bf16 %v5936, %v5935
    %v6146 = vpack.c.bf16 %v5938, %v5937
    %v6147 = vpack.c.bf16 %v5940, %v5939
    %v6148 = vpack.c.bf16 %v5942, %v5941
    %v6149 = vpack.c.bf16 %v5944, %v5943
    %v6150 = vpack.c.bf16 %v5946, %v5945
    %v6151 = vpack.c.bf16 %v5948, %v5947
    %v6152 = vpack.c.bf16 %v5950, %v5949
    %v6153 = vpack.c.bf16 %v5952, %v5951
    %v6154 = vpack.c.bf16 %v5954, %v5953
    %v6155 = vpack.c.bf16 %v5956, %v5955
    %v6156 = vpack.c.bf16 %v5958, %v5957
    %v6157 = vpack.c.bf16 %v5960, %v5959
    %v6158 = vpack.c.bf16 %v5962, %v5961
    %v6159 = vpack.c.bf16 %v5964, %v5963
    %v6160 = vpack.c.bf16 %v5966, %v5965
    %v6161 = vpack.c.bf16 %v5968, %v5967
    %v6162 = vpack.c.bf16 %v5970, %v5969
    %v6163 = vpack.c.bf16 %v5972, %v5971
    %v6164 = vpack.c.bf16 %v5974, %v5973
    %v6165 = vpack.c.bf16 %v5976, %v5975
    %v6166 = vpack.c.bf16 %v5978, %v5977
    %v6167 = vpack.c.bf16 %v5980, %v5979
    %v6168 = vpack.c.bf16 %v5982, %v5981
    %v6169 = vpack.c.bf16 %v5984, %v5983
    %v6170 = vpack.c.bf16 %v5986, %v5985
    %v6171 = vpack.c.bf16 %v5988, %v5987
    %v6172 = vpack.c.bf16 %v5990, %v5989
    %v6173 = vpack.c.bf16 %v5992, %v5991
    %v6174 = vpack.c.bf16 %v5994, %v5993
    %v6175 = vpack.c.bf16 %v5996, %v5995
    %v6176 = vpack.c.bf16 %v5998, %v5997
    %6177 = vmatprep.subr.bf16.mxu0 0
    %6178 = vmatpush1.bf16.msra.mxu0 %v6145
    %6179 = vmatprep.subr.bf16.mxu0 0
    %6180 = vmatpush1.bf16.msra.mxu0 %v6146
    %6181 = vmatprep.subr.bf16.mxu0 0
    %6182 = vmatpush1.bf16.msra.mxu0 %v6147
    %6183 = vmatprep.subr.bf16.mxu0 0
    %6184 = vmatpush1.bf16.msra.mxu0 %v6148
    %6185 = vmatprep.subr.bf16.mxu0 0
    %6186 = vmatpush1.bf16.msra.mxu0 %v6149
    %6187 = vmatprep.subr.bf16.mxu0 0
    %6188 = vmatpush1.bf16.msra.mxu0 %v6150
    %6189 = vmatprep.subr.bf16.mxu0 0
    %6190 = vmatpush1.bf16.msra.mxu0 %v6151
    %6191 = vmatprep.subr.bf16.mxu0 0
    %6192 = vmatpush1.bf16.msra.mxu0 %v6152
    %6193 = vmatprep.subr.bf16.mxu0 0
    %6194 = vmatpush1.bf16.msra.mxu0 %v6153
    %6195 = vmatprep.subr.bf16.mxu0 0
    %6196 = vmatpush1.bf16.msra.mxu0 %v6154
    %6197 = vmatprep.subr.bf16.mxu0 0
    %6198 = vmatpush1.bf16.msra.mxu0 %v6155
    %6199 = vmatprep.subr.bf16.mxu0 0
    %6200 = vmatpush1.bf16.msra.mxu0 %v6156
    %6201 = vmatprep.subr.bf16.mxu0 0
    %6202 = vmatpush1.bf16.msra.mxu0 %v6157
    %6203 = vmatprep.subr.bf16.mxu0 0
    %6204 = vmatpush1.bf16.msra.mxu0 %v6158
    %6205 = vmatprep.subr.bf16.mxu0 0
    %6206 = vmatpush1.bf16.msra.mxu0 %v6159
    %6207 = vmatprep.subr.bf16.mxu0 0
    %6208 = vmatpush1.bf16.msra.mxu0 %v6160
    %6209 = vmatprep.mubr.bf16.mxu0 %v6122
    %6210 = vmatmul.mubr.bf16.gmra.mrb[0].mxu0 %v6121
    %v6211 = vpop.f32.mrb[0].mxu0
    %v6212 = vadd.f32 0.0, %v6211
    %v6213 = vpop.f32.mrb[0].mxu0
    %v6214 = vpop.f32.mrb[0].mxu0
    %v6215 = vadd.f32 0.0, %v6214
    %v6216 = vpop.f32.mrb[0].mxu0
    %6217 = vmatprep.mubr.bf16.mxu0 %v6126
    %6218 = vmatmul.mubr.bf16.gmra.mrb[0].mxu0 %v6125
    %v6219 = vpop.f32.mrb[0].mxu0
    %v6220 = vadd.f32 0.0, %v6219
    %v6221 = vpop.f32.mrb[0].mxu0
    %v6222 = vpop.f32.mrb[0].mxu0
    %v6223 = vadd.f32 0.0, %v6222
    %v6224 = vpop.f32.mrb[0].mxu0
    %6225 = vmatprep.mubr.bf16.mxu0 %v6130
    %6226 = vmatmul.mubr.bf16.gmra.mrb[0].mxu0 %v6129
    %v6227 = vpop.f32.mrb[0].mxu0
    %v6228 = vadd.f32 0.0, %v6227
    %v6229 = vpop.f32.mrb[0].mxu0
    %v6230 = vpop.f32.mrb[0].mxu0
    %v6231 = vadd.f32 0.0, %v6230
    %v6232 = vpop.f32.mrb[0].mxu0
    %6233 = vmatprep.mubr.bf16.mxu0 %v6134
    %6234 = vmatmul.mubr.bf16.gmra.mrb[0].mxu0 %v6133
    %v6235 = vpop.f32.mrb[0].mxu0
    %v6236 = vadd.f32 0.0, %v6235
    %v6237 = vpop.f32.mrb[0].mxu0
    %v6238 = vpop.f32.mrb[0].mxu0
    %v6239 = vadd.f32 0.0, %v6238
    %v6240 = vpop.f32.mrb[0].mxu0
    %6241 = vdwg.mxu0
    %6242 = vmatprep.subr.bf16.mxu0 0
    %6243 = vmatpush1.bf16.msra.mxu0 %v6161
    %6244 = vmatprep.subr.bf16.mxu0 0
    %6245 = vmatpush1.bf16.msra.mxu0 %v6162
    %6246 = vmatprep.subr.bf16.mxu0 0
    %6247 = vmatpush1.bf16.msra.mxu0 %v6163
    %6248 = vmatprep.subr.bf16.mxu0 0
    %6249 = vmatpush1.bf16.msra.mxu0 %v6164
    %6250 = vmatprep.subr.bf16.mxu0 0
    %6251 = vmatpush1.bf16.msra.mxu0 %v6165
    %6252 = vmatprep.subr.bf16.mxu0 0
    %6253 = vmatpush1.bf16.msra.mxu0 %v6166
    %6254 = vmatprep.subr.bf16.mxu0 0
    %6255 = vmatpush1.bf16.msra.mxu0 %v6167
    %6256 = vmatprep.subr.bf16.mxu0 0
    %6257 = vmatpush1.bf16.msra.mxu0 %v6168
    %6258 = vmatprep.subr.bf16.mxu0 0
    %6259 = vmatpush1.bf16.msra.mxu0 %v6169
    %6260 = vmatprep.subr.bf16.mxu0 0
    %6261 = vmatpush1.bf16.msra.mxu0 %v6170
    %6262 = vmatprep.subr.bf16.mxu0 0
    %6263 = vmatpush1.bf16.msra.mxu0 %v6171
    %6264 = vmatprep.subr.bf16.mxu0 0
    %6265 = vmatpush1.bf16.msra.mxu0 %v6172
    %6266 = vmatprep.subr.bf16.mxu0 0
    %6267 = vmatpush1.bf16.msra.mxu0 %v6173
    %6268 = vmatprep.subr.bf16.mxu0 0
    %6269 = vmatpush1.bf16.msra.mxu0 %v6174
    %6270 = vmatprep.subr.bf16.mxu0 0
    %6271 = vmatpush1.bf16.msra.mxu0 %v6175
    %6272 = vmatprep.subr.bf16.mxu0 0
    %6273 = vmatpush1.bf16.msra.mxu0 %v6176
    %6274 = vmatprep.mubr.bf16.mxu0 %v6124
    %6275 = vmatmul.mubr.bf16.gmra.mrb[0].mxu0 %v6123
    %v6276 = vpop.f32.mrb[0].mxu0
    %v6277 = vadd.f32 %v6212, %v6276
    %v6278 = vpop.f32.mrb[0].mxu0
    %v6279 = vpop.f32.mrb[0].mxu0
    %v6280 = vadd.f32 %v6215, %v6279
    %v6281 = vpop.f32.mrb[0].mxu0
    %6282 = vmatprep.mubr.bf16.mxu0 %v6128
    %6283 = vmatmul.mubr.bf16.gmra.mrb[0].mxu0 %v6127
    %v6284 = vpop.f32.mrb[0].mxu0
    %v6285 = vadd.f32 %v6220, %v6284
    %v6286 = vpop.f32.mrb[0].mxu0
    %v6287 = vpop.f32.mrb[0].mxu0
    %v6288 = vadd.f32 %v6223, %v6287
    %v6289 = vpop.f32.mrb[0].mxu0
    %6290 = vmatprep.mubr.bf16.mxu0 %v6132
    %6291 = vmatmul.mubr.bf16.gmra.mrb[0].mxu0 %v6131
    %v6292 = vpop.f32.mrb[0].mxu0
    %v6293 = vadd.f32 %v6228, %v6292
    %v6294 = vpop.f32.mrb[0].mxu0
    %v6295 = vpop.f32.mrb[0].mxu0
    %v6296 = vadd.f32 %v6231, %v6295
    %v6297 = vpop.f32.mrb[0].mxu0
    %6298 = vmatprep.mubr.bf16.mxu0 %v6136
    %6299 = vmatmul.mubr.bf16.gmra.mrb[0].mxu0 %v6135
    %v6300 = vpop.f32.mrb[0].mxu0
    %v6301 = vadd.f32 %v6236, %v6300
    %v6302 = vpop.f32.mrb[0].mxu0
    %v6303 = vpop.f32.mrb[0].mxu0
    %v6304 = vadd.f32 %v6239, %v6303
    %v6305 = vpop.f32.mrb[0].mxu0
    %6306 = vdwg.mxu0
    %v6307 = vadd.f32 %v6137, %v6277
    %v6308 = vadd.f32 %v6138, %v6280
    %v6309 = vadd.f32 %v6139, %v6285
    %v6310 = vadd.f32 %v6140, %v6288
    %v6311 = vadd.f32 %v6141, %v6293
    %v6312 = vadd.f32 %v6142, %v6296
    %v6313 = vadd.f32 %v6143, %v6301
    %v6314 = vadd.f32 %v6144, %v6304
    %6315 = vst [vmem:[#allocation7] sm:$0xff] %v6307
    %6316 = vst [vmem:[#allocation7 + $0x8] sm:$0xff] %v6308
    %6317 = vst [vmem:[#allocation7 + $0x10] sm:$0xff] %v6309
    %6318 = vst [vmem:[#allocation7 + $0x18] sm:$0xff] %v6310
    %6319 = vst [vmem:[#allocation7 + $0x20] sm:$0xff] %v6311
    %6320 = vst [vmem:[#allocation7 + $0x28] sm:$0xff] %v6312
    %6321 = vst [vmem:[#allocation7 + $0x30] sm:$0xff] %v6313
    %6322 = vst [vmem:[#allocation7 + $0x38] sm:$0xff] %v6314
    // Predicated region
    $region50: #{tpu_custom_call.1} parent=1 // pred_check
      %p6323 = pneg %p62
    $region51: #{tpu_custom_call.1} parent=1 // pred_check_branch
      %6325 = sbr.rel (%p6323) target = $region53
    $region52: #{tpu_custom_call.1} parent=1 // pred_region
      %v6326 = vld [vmem:[#allocation7] sm:$0xff]
      %v6327 = vld [vmem:[#allocation7 + $0x8] sm:$0xff]
      %v6328 = vld [vmem:[#allocation7 + $0x10] sm:$0xff]
      %v6329 = vld [vmem:[#allocation7 + $0x18] sm:$0xff]
      %v6330 = vld [vmem:[#allocation7 + $0x20] sm:$0xff]
      %v6331 = vld [vmem:[#allocation7 + $0x28] sm:$0xff]
      %v6332 = vld [vmem:[#allocation7 + $0x30] sm:$0xff]
      %v6333 = vld [vmem:[#allocation7 + $0x38] sm:$0xff]
      %v6334 = vld [vmem:[%s6] sm:$0xff]
      %v6335 = vld [vmem:[%s6 + $0x8] sm:$0xff]
      %v6336 = vld [vmem:[%s6 + $0x10] sm:$0xff]
      %v6337 = vld [vmem:[%s6 + $0x18] sm:$0xff]
      %v6338 = vld [vmem:[%s6 + $0x20] sm:$0xff]
      %v6339 = vld [vmem:[%s6 + $0x28] sm:$0xff]
      %v6340 = vld [vmem:[%s6 + $0x30] sm:$0xff]
      %v6341 = vld [vmem:[%s6 + $0x38] sm:$0xff]
      %6343 = vset.pattern.permute.xlu0 0
      %6344 = vperm.xlu0 %6343, %v6334
      %v6345 = vpop.permute.xlu0 %6344
      %6348 = vset.pattern.permute.xlu0 0
      %6349 = vperm.xlu0 %6348, %v6335
      %v6350 = vpop.permute.xlu0 %6349
      %6353 = vset.pattern.permute.xlu0 0
      %6354 = vperm.xlu0 %6353, %v6336
      %v6355 = vpop.permute.xlu0 %6354
      %6358 = vset.pattern.permute.xlu0 0
      %6359 = vperm.xlu0 %6358, %v6337
      %v6360 = vpop.permute.xlu0 %6359
      %6363 = vset.pattern.permute.xlu0 0
      %6364 = vperm.xlu0 %6363, %v6338
      %v6365 = vpop.permute.xlu0 %6364
      %6368 = vset.pattern.permute.xlu0 0
      %6369 = vperm.xlu0 %6368, %v6339
      %v6370 = vpop.permute.xlu0 %6369
      %6373 = vset.pattern.permute.xlu0 0
      %6374 = vperm.xlu0 %6373, %v6340
      %v6375 = vpop.permute.xlu0 %6374
      %6378 = vset.pattern.permute.xlu0 0
      %6379 = vperm.xlu0 %6378, %v6341
      %v6380 = vpop.permute.xlu0 %6379
      %v6382 = vmul.f32 %v6326, %v6345
      %v6383 = vmul.f32 %v6327, %v6350
      %v6384 = vmul.f32 %v6328, %v6355
      %v6385 = vmul.f32 %v6329, %v6360
      %v6386 = vmul.f32 %v6330, %v6365
      %v6387 = vmul.f32 %v6331, %v6370
      %v6388 = vmul.f32 %v6332, %v6375
      %v6389 = vmul.f32 %v6333, %v6380
      %v6390 = vld [vmem:[#allocation5] sm:$0xf]
      %v6391 = vld [vmem:[#allocation5 + $0x4] sm:$0xf]
      %v6392 = vld [vmem:[#allocation5 + $0x8] sm:$0xf]
      %v6393 = vld [vmem:[#allocation5 + $0xc] sm:$0xf]
      %v6394 = vld [vmem:[#allocation5 + $0x10] sm:$0xf]
      %v6395 = vld [vmem:[#allocation5 + $0x14] sm:$0xf]
      %v6396 = vld [vmem:[#allocation5 + $0x18] sm:$0xf]
      %v6397 = vld [vmem:[#allocation5 + $0x1c] sm:$0xf]
      %v6398 = vld [vmem:[%s5] sm:$0xf]
      %v6399 = vld [vmem:[%s5 + $0x4] sm:$0xf]
      %v6400 = vld [vmem:[%s5 + $0x8] sm:$0xf]
      %v6401 = vld [vmem:[%s5 + $0xc] sm:$0xf]
      %v6402 = vld [vmem:[%s5 + $0x10] sm:$0xf]
      %v6403 = vld [vmem:[%s5 + $0x14] sm:$0xf]
      %v6404 = vld [vmem:[%s5 + $0x18] sm:$0xf]
      %v6405 = vld [vmem:[%s5 + $0x1c] sm:$0xf]
      %v6406 = vld [vmem:[%s5 + $0x20] sm:$0xf]
      %v6407 = vld [vmem:[%s5 + $0x24] sm:$0xf]
      %v6408 = vld [vmem:[%s5 + $0x28] sm:$0xf]
      %v6409 = vld [vmem:[%s5 + $0x2c] sm:$0xf]
      %v6410 = vld [vmem:[%s5 + $0x30] sm:$0xf]
      %v6411 = vld [vmem:[%s5 + $0x34] sm:$0xf]
      %v6412 = vld [vmem:[%s5 + $0x38] sm:$0xf]
      %v6413 = vld [vmem:[%s5 + $0x3c] sm:$0xf]
      %v6422 = vunpack.c.l.b16 %v6390
      %v6423 = vunpack.c.l.b16 %v6391
      %v6424 = vunpack.c.l.b16 %v6392
      %v6425 = vunpack.c.l.b16 %v6393
      %v6426 = vunpack.c.l.b16 %v6394
      %v6427 = vunpack.c.l.b16 %v6395
      %v6428 = vunpack.c.l.b16 %v6396
      %v6429 = vunpack.c.l.b16 %v6397
      %v6430 = vpack.c.b16 %v6423, %v6422
      %v6431 = vpack.c.b16 %v6425, %v6424
      %v6432 = vpack.c.b16 %v6427, %v6426
      %v6433 = vpack.c.b16 %v6429, %v6428
      %v6454 = vunpack.c.l.b16 %v6398
      %v6455 = vunpack.c.l.b16 %v6399
      %v6456 = vunpack.c.l.b16 %v6400
      %v6457 = vunpack.c.l.b16 %v6401
      %v6458 = vunpack.c.l.b16 %v6402
      %v6459 = vunpack.c.l.b16 %v6403
      %v6460 = vunpack.c.l.b16 %v6404
      %v6461 = vunpack.c.l.b16 %v6405
      %v6462 = vunpack.c.l.b16 %v6406
      %v6463 = vunpack.c.l.b16 %v6407
      %v6464 = vunpack.c.l.b16 %v6408
      %v6465 = vunpack.c.l.b16 %v6409
      %v6466 = vunpack.c.l.b16 %v6410
      %v6467 = vunpack.c.l.b16 %v6411
      %v6468 = vunpack.c.l.b16 %v6412
      %v6469 = vunpack.c.l.b16 %v6413
      %v6470 = vpack.c.b16 %v6455, %v6454
      %v6471 = vpack.c.b16 %v6457, %v6456
      %v6472 = vpack.c.b16 %v6459, %v6458
      %v6473 = vpack.c.b16 %v6461, %v6460
      %v6474 = vpack.c.b16 %v6463, %v6462
      %v6475 = vpack.c.b16 %v6465, %v6464
      %v6476 = vpack.c.b16 %v6467, %v6466
      %v6477 = vpack.c.b16 %v6469, %v6468
      %6486 = vmatprep.subr.bf16.mxu0 0
      %6487 = vmatpush1.bf16.msra.mxu0 %v6470
      %6488 = vmatprep.subr.bf16.mxu0 0
      %6489 = vmatpush1.bf16.msra.mxu0 %v6471
      %6490 = vmatprep.subr.bf16.mxu0 0
      %6491 = vmatpush1.bf16.msra.mxu0 %v6472
      %6492 = vmatprep.subr.bf16.mxu0 0
      %6493 = vmatpush1.bf16.msra.mxu0 %v6473
      %6494 = vmatprep.subr.bf16.mxu0 0
      %6495 = vmatpush1.bf16.msra.mxu0 %v6474
      %6496 = vmatprep.subr.bf16.mxu0 0
      %6497 = vmatpush1.bf16.msra.mxu0 %v6475
      %6498 = vmatprep.subr.bf16.mxu0 0
      %6499 = vmatpush1.bf16.msra.mxu0 %v6476
      %6500 = vmatprep.subr.bf16.mxu0 0
      %6501 = vmatpush1.bf16.msra.mxu0 %v6477
      %6502 = vmatprep.subr.bf16.mxu0 0
      %6503 = vmatpush1.bf16.msra.mxu0 0
      %6504 = vmatprep.subr.bf16.mxu0 0
      %6505 = vmatpush1.bf16.msra.mxu0 0
      %6506 = vmatprep.subr.bf16.mxu0 0
      %6507 = vmatpush1.bf16.msra.mxu0 0
      %6508 = vmatprep.subr.bf16.mxu0 0
      %6509 = vmatpush1.bf16.msra.mxu0 0
      %6510 = vmatprep.subr.bf16.mxu0 0
      %6511 = vmatpush1.bf16.msra.mxu0 0
      %6512 = vmatprep.subr.bf16.mxu0 0
      %6513 = vmatpush1.bf16.msra.mxu0 0
      %6514 = vmatprep.subr.bf16.mxu0 0
      %6515 = vmatpush1.bf16.msra.mxu0 0
      %6516 = vmatprep.subr.bf16.mxu0 0
      %6517 = vmatpush1.bf16.msra.mxu0 0
      %6518 = vmatprep.mubr.bf16.mxu0 0
      %6519 = vmatmul.mubr.bf16.gmra.mrb[0].mxu0 %v6430
      %v6520 = vpop.f32.mrb[0].mxu0
      %v6521 = vadd.f32 0.0, %v6520
      %v6522 = vpop.f32.mrb[0].mxu0
      %v6523 = vpop.f32.mrb[0].mxu0
      %v6524 = vadd.f32 0.0, %v6523
      %v6525 = vpop.f32.mrb[0].mxu0
      %6526 = vmatprep.mubr.bf16.mxu0 0
      %6527 = vmatmul.mubr.bf16.gmra.mrb[0].mxu0 %v6431
      %v6528 = vpop.f32.mrb[0].mxu0
      %v6529 = vadd.f32 0.0, %v6528
      %v6530 = vpop.f32.mrb[0].mxu0
      %v6531 = vpop.f32.mrb[0].mxu0
      %v6532 = vadd.f32 0.0, %v6531
      %v6533 = vpop.f32.mrb[0].mxu0
      %6534 = vmatprep.mubr.bf16.mxu0 0
      %6535 = vmatmul.mubr.bf16.gmra.mrb[0].mxu0 %v6432
      %v6536 = vpop.f32.mrb[0].mxu0
      %v6537 = vadd.f32 0.0, %v6536
      %v6538 = vpop.f32.mrb[0].mxu0
      %v6539 = vpop.f32.mrb[0].mxu0
      %v6540 = vadd.f32 0.0, %v6539
      %v6541 = vpop.f32.mrb[0].mxu0
      %6542 = vmatprep.mubr.bf16.mxu0 0
      %6543 = vmatmul.mubr.bf16.gmra.mrb[0].mxu0 %v6433
      %v6544 = vpop.f32.mrb[0].mxu0
      %v6545 = vadd.f32 0.0, %v6544
      %v6546 = vpop.f32.mrb[0].mxu0
      %v6547 = vpop.f32.mrb[0].mxu0
      %v6548 = vadd.f32 0.0, %v6547
      %v6549 = vpop.f32.mrb[0].mxu0
      %6550 = vdwg.mxu0
      %v6551 = vadd.f32 %v6382, %v6521
      %v6552 = vadd.f32 %v6383, %v6524
      %v6553 = vadd.f32 %v6384, %v6529
      %v6554 = vadd.f32 %v6385, %v6532
      %v6555 = vadd.f32 %v6386, %v6537
      %v6556 = vadd.f32 %v6387, %v6540
      %v6557 = vadd.f32 %v6388, %v6545
      %v6558 = vadd.f32 %v6389, %v6548
      %v6559 = vld [vmem:[%s7] sm:$0x1]
      %v6560 = vld [vmem:[%s8] sm:$0x1]
      %v6561 = vadd.f32 %v6551, %v6552
      %v6562 = vadd.f32 %v6561, %v6553
      %v6563 = vadd.f32 %v6562, %v6554
      %v6564 = vadd.f32 %v6563, %v6555
      %v6565 = vadd.f32 %v6564, %v6556
      %v6566 = vadd.f32 %v6565, %v6557
      %v6567 = vadd.f32 %v6566, %v6558
      %v6568 = vrot.slane %v6567, 4
      %v6569 = vadd.f32 %v6567, %v6568
      %v6570 = vrot.slane %v6569, 2
      %v6571 = vadd.f32 %v6569, %v6570
      %v6572 = vrot.slane %v6571, 1
      %v6573 = vadd.f32 %v6571, %v6572
      %v6574 = vrcp.pop 64.0
      %v6575 = vmul.f32 %v6573, %v6574
      %v6576 = vsub.f32 %v6551, %v6575
      %v6577 = vsub.f32 %v6552, %v6575
      %v6578 = vsub.f32 %v6553, %v6575
      %v6579 = vsub.f32 %v6554, %v6575
      %v6580 = vsub.f32 %v6555, %v6575
      %v6581 = vsub.f32 %v6556, %v6575
      %v6582 = vsub.f32 %v6557, %v6575
      %v6583 = vsub.f32 %v6558, %v6575
      %v6584 = vmul.f32 %v6576, %v6576
      %v6585 = vmul.f32 %v6577, %v6577
      %v6586 = vmul.f32 %v6578, %v6578
      %v6587 = vmul.f32 %v6579, %v6579
      %v6588 = vmul.f32 %v6580, %v6580
      %v6589 = vmul.f32 %v6581, %v6581
      %v6590 = vmul.f32 %v6582, %v6582
      %v6591 = vmul.f32 %v6583, %v6583
      %v6592 = vadd.f32 %v6584, %v6585
      %v6593 = vadd.f32 %v6592, %v6586
      %v6594 = vadd.f32 %v6593, %v6587
      %v6595 = vadd.f32 %v6594, %v6588
      %v6596 = vadd.f32 %v6595, %v6589
      %v6597 = vadd.f32 %v6596, %v6590
      %v6598 = vadd.f32 %v6597, %v6591
      %v6599 = vrot.slane %v6598, 4
      %v6600 = vadd.f32 %v6598, %v6599
      %v6601 = vrot.slane %v6600, 2
      %v6602 = vadd.f32 %v6600, %v6601
      %v6603 = vrot.slane %v6602, 1
      %v6604 = vadd.f32 %v6602, %v6603
      %v6605 = vmul.f32 %v6604, %v6574
      %v6606 = vadd.f32 %v6605, 1e-05
      %v6607 = vrsqrt.pop %v6606
      %v6608 = vmul.f32 %v6576, %v6607
      %v6609 = vmul.f32 %v6577, %v6607
      %v6610 = vmul.f32 %v6578, %v6607
      %v6611 = vmul.f32 %v6579, %v6607
      %v6612 = vmul.f32 %v6580, %v6607
      %v6613 = vmul.f32 %v6581, %v6607
      %v6614 = vmul.f32 %v6582, %v6607
      %v6615 = vmul.f32 %v6583, %v6607
      %v6617 = vlaneseq
      %v6618 = vshrl.u32 %v6617, 7
      %v6619 = vsub.s32 0, %v6618
      %v6620 = vrot.slane %v6559, %v6619
      %v6622 = vmul.f32 %v6608, %v6620
      %v6623 = vmul.f32 %v6609, %v6620
      %v6624 = vmul.f32 %v6610, %v6620
      %v6625 = vmul.f32 %v6611, %v6620
      %v6626 = vmul.f32 %v6612, %v6620
      %v6627 = vmul.f32 %v6613, %v6620
      %v6628 = vmul.f32 %v6614, %v6620
      %v6629 = vmul.f32 %v6615, %v6620
      %v6631 = vlaneseq
      %v6632 = vshrl.u32 %v6631, 7
      %v6633 = vsub.s32 0, %v6632
      %v6634 = vrot.slane %v6560, %v6633
      %v6636 = vadd.f32 %v6622, %v6634
      %v6637 = vadd.f32 %v6623, %v6634
      %v6638 = vadd.f32 %v6624, %v6634
      %v6639 = vadd.f32 %v6625, %v6634
      %v6640 = vadd.f32 %v6626, %v6634
      %v6641 = vadd.f32 %v6627, %v6634
      %v6642 = vadd.f32 %v6628, %v6634
      %v6643 = vadd.f32 %v6629, %v6634
      %vm6644 = vcmp.gt.f32.partialorder %v6636, 0.0
      %vm6645 = vcmp.gt.f32.partialorder %v6637, 0.0
      %vm6646 = vcmp.gt.f32.partialorder %v6638, 0.0
      %vm6647 = vcmp.gt.f32.partialorder %v6639, 0.0
      %vm6648 = vcmp.gt.f32.partialorder %v6640, 0.0
      %vm6649 = vcmp.gt.f32.partialorder %v6641, 0.0
      %vm6650 = vcmp.gt.f32.partialorder %v6642, 0.0
      %vm6651 = vcmp.gt.f32.partialorder %v6643, 0.0
      %v6652 = vmin.f32 %v6636, 0.0
      %v6653 = vmin.f32 %v6637, 0.0
      %v6654 = vmin.f32 %v6638, 0.0
      %v6655 = vmin.f32 %v6639, 0.0
      %v6656 = vmin.f32 %v6640, 0.0
      %v6657 = vmin.f32 %v6641, 0.0
      %v6658 = vmin.f32 %v6642, 0.0
      %v6659 = vmin.f32 %v6643, 0.0
      %v6660 = vmul.f32 %v6652, 1.442695
      %v6661 = vpow.pop %v6660
      %v6662 = vmul.f32 %v6653, 1.442695
      %v6663 = vpow.pop %v6662
      %v6664 = vmul.f32 %v6654, 1.442695
      %v6665 = vpow.pop %v6664
      %v6666 = vmul.f32 %v6655, 1.442695
      %v6667 = vpow.pop %v6666
      %v6668 = vmul.f32 %v6656, 1.442695
      %v6669 = vpow.pop %v6668
      %v6670 = vmul.f32 %v6657, 1.442695
      %v6671 = vpow.pop %v6670
      %v6672 = vmul.f32 %v6658, 1.442695
      %v6673 = vpow.pop %v6672
      %v6674 = vmul.f32 %v6659, 1.442695
      %v6675 = vpow.pop %v6674
      %v6676 = vsub.f32 %v6661, 1.0
      %v6677 = vsub.f32 %v6663, 1.0
      %v6678 = vsub.f32 %v6665, 1.0
      %v6679 = vsub.f32 %v6667, 1.0
      %v6680 = vsub.f32 %v6669, 1.0
      %v6681 = vsub.f32 %v6671, 1.0
      %v6682 = vsub.f32 %v6673, 1.0
      %v6683 = vsub.f32 %v6675, 1.0
      %v6684 = vsel %vm6644, %v6636, %v6676
      %v6685 = vsel %vm6645, %v6637, %v6677
      %v6686 = vsel %vm6646, %v6638, %v6678
      %v6687 = vsel %vm6647, %v6639, %v6679
      %v6688 = vsel %vm6648, %v6640, %v6680
      %v6689 = vsel %vm6649, %v6641, %v6681
      %v6690 = vsel %vm6650, %v6642, %v6682
      %v6691 = vsel %vm6651, %v6643, %v6683
      %6692 = vst [vmem:[#allocation7] sm:$0xff] %v6684
      %6693 = vst [vmem:[#allocation7 + $0x8] sm:$0xff] %v6685
      %6694 = vst [vmem:[#allocation7 + $0x10] sm:$0xff] %v6686
      %6695 = vst [vmem:[#allocation7 + $0x18] sm:$0xff] %v6687
      %6696 = vst [vmem:[#allocation7 + $0x20] sm:$0xff] %v6688
      %6697 = vst [vmem:[#allocation7 + $0x28] sm:$0xff] %v6689
      %6698 = vst [vmem:[#allocation7 + $0x30] sm:$0xff] %v6690
      %6699 = vst [vmem:[#allocation7 + $0x38] sm:$0xff] %v6691
    $region53: #{tpu_custom_call.1} parent=1 // pred_fallthru
      _
    // Predicated region
    $region54: #{tpu_custom_call.1} parent=1 // pred_check
      _
    $region55: #{tpu_custom_call.1} parent=1 // pred_check_branch
      %6701 = sbr.rel (0) target = $region57
    $region56: #{tpu_custom_call.1} parent=1 // pred_region
      %s6703 = ssub.s32 1024, 1024
      %6704 = vsyncadd [#allocation4], %s6703
      %s6705 = sshll.u32 [#allocation7], 4
      %s6706 = int_to_ptr.vmem [resolvable:$true] %s6705
      %6711 = dma.vmem_to_hbm [thread:$0]  %s6706, 1024, %s9, [#allocation4], 128, 128, 8
    $region57: #{tpu_custom_call.1} parent=1 // pred_fallthru
      _
    // Predicated region
    $region58: #{tpu_custom_call.1} parent=1 // pred_check
      _
    $region59: #{tpu_custom_call.1} parent=1 // pred_check_branch
      %6713 = sbr.rel (0) target = $region61
    $region60: #{tpu_custom_call.1} parent=1 // pred_region
      %6714 = dma.done [#allocation4], 1024
    $region61: #{tpu_custom_call.1} parent=1 // pred_fallthru
      _
    %6715 = vsyncpa [#allocation3], 1
    %6716 = vsyncpa [#allocation6], 1
    %6717 = vsyncpa [#allocation4], 1

</llo_original>
